<compile_context>
chip_gen: v5e
topology: v5e:2x2
jax: 0.10.0
libtpu: 0.0.40
codegen_flags: <defaults>
</compile_context>

<pallas_src>
import jax
import jax.numpy as jnp
from jax import lax
from jax.experimental import pallas as pl
from jax.experimental.pallas import tpu as pltpu


def _round_up(x, m):
    return (x + m - 1) // m * m


# PyTorch stacks gates as (i, f, g, o); the kernel uses (i, f, o, g) so one sigmoid
# covers the first 3*Hp lanes and one tanh covers the last Hp lanes.
_GATE_PERM = (0, 1, 3, 2)


def _pad_gates(w, H, Hp):
    """(rows, 4H) in (i,f,g,o) order -> (rows, 4Hp) in (i,f,o,g) order, zero-padded per
    gate.  Zero padding keeps valid lanes bit-exact (padded lanes stay at h=c=0)."""
    rows = w.shape[0]
    w = w.reshape(rows, 4, H)[:, _GATE_PERM, :]
    w = jnp.pad(w, ((0, 0), (0, 0), (0, Hp - H)))
    return w.reshape(rows, 4 * Hp)


def bilstm_kernel(emb_ref,                 # (L*Bp, Ep)   bf16
                  wih_ref,                 # (Ep, 8Hp)    bf16  [fwd gates | bwd gates]
                  b_ref,                   # (1, 8Hp)     f32   [fwd | bwd]
                  whh_f_ref, whh_b_ref,    # (Hp, 4Hp)    bf16
                  out_ref,                 # (L, Bp, 2Hp) f32
                  hid_ref, cell_ref,       # (Bp, 2Hp)    f32
                  gi):                     # VMEM scratch (L*Bp, 8Hp) f32
    L, Bp, twoHp = out_ref.shape
    Hp = twoHp // 2
    G = 4 * Hp

    # ---- Hoisted input projection for BOTH directions: one large MXU gemm ----
    gi[...] = (jnp.dot(emb_ref[...], wih_ref[...],
                       preferred_element_type=jnp.float32) + b_ref[...])

    def lstm_cell(gates, c_prev):
        # (i, f, o, g) layout -> 1 sigmoid + 1 tanh EUP launch for the pre-activations.
        sg = jax.nn.sigmoid(gates[:, :3 * Hp])
        i = sg[:, 0 * Hp:1 * Hp]
        f = sg[:, 1 * Hp:2 * Hp]
        o = sg[:, 2 * Hp:3 * Hp]
        g = jnp.tanh(gates[:, 3 * Hp:])
        c = f * c_prev + i * g
        h = o * jnp.tanh(c)
        return h, c

    zeros = jnp.zeros((Bp, Hp), jnp.float32)

    # ---- Fused bidirectional recurrence: two independent chains per iteration ----
    def body(t, carry):
        h_f, c_f, h_b, c_b = carry
        tb = L - 1 - t
        row_f = pl.multiple_of(t * Bp, 8)
        row_b = pl.multiple_of(tb * Bp, 8)

        gates_f = gi[pl.ds(row_f, Bp), :G] + jnp.dot(
            h_f.astype(jnp.bfloat16), whh_f_ref[...],
            preferred_element_type=jnp.float32)
        gates_b = gi[pl.ds(row_b, Bp), G:] + jnp.dot(
            h_b.astype(jnp.bfloat16), whh_b_ref[...],
            preferred_element_type=jnp.float32)

        h_f, c_f = lstm_cell(gates_f, c_f)
        h_b, c_b = lstm_cell(gates_b, c_b)

        out_ref[t, :, :Hp] = h_f      # forward half, lane-dense (Hp multiple of 128)
        out_ref[tb, :, Hp:] = h_b     # backward half
        return h_f, c_f, h_b, c_b

    h_f, c_f, h_b, c_b = lax.fori_loop(
        0, L, body, (zeros, zeros, zeros, zeros), unroll=min(L, 8))

    # ---- final states (module's chunk/cat -> concat fwd/bwd along features) ----
    hid_ref[:, :Hp] = h_f
    hid_ref[:, Hp:] = h_b
    cell_ref[:, :Hp] = c_f
    cell_ref[:, Hp:] = c_b


def simple_lstm_encoder_forward(params, src):
    """src: (B, L) int32 token ids. Returns the SimpleLSTMEncoder.forward dict."""
    # Embedding lookup (gather glue, plain JAX); dropout is eval-mode identity.
    emb = params["embedding"][src].astype(jnp.float32)          # (B, L, E)
    B, L, E = emb.shape
    H = params["w_hh_f"].shape[0]

    Bp = _round_up(B, 8)            # sublane alignment
    Ep = _round_up(E, 128)          # lane alignment of the contraction dim
    Hp = _round_up(H, 128)          # lane-aligned gates / outputs

    # time-major, padded, flattened to (L*Bp, Ep); bf16 MXU operand (f32 accumulate).
    x = jnp.transpose(emb, (1, 0, 2))
    x = jnp.pad(x, ((0, 0), (0, Bp - B), (0, Ep - E)))
    x = x.reshape(L * Bp, Ep).astype(jnp.bfloat16)

    # bf16 MXU weights; biases stay f32 (added after the f32-accumulated gemm).
    w_ih = jnp.concatenate(
        [jnp.pad(_pad_gates(params["w_ih_f"], H, Hp), ((0, Ep - E), (0, 0))),
         jnp.pad(_pad_gates(params["w_ih_b"], H, Hp), ((0, Ep - E), (0, 0)))],
        axis=-1).astype(jnp.bfloat16)                                    # (Ep, 8Hp)
    b_all = jnp.concatenate(
        [_pad_gates(params["b_f"], H, Hp), _pad_gates(params["b_b"], H, Hp)],
        axis=-1).astype(jnp.float32)                                     # (1, 8Hp)
    w_hh_f = jnp.pad(_pad_gates(params["w_hh_f"], H, Hp),
                     ((0, Hp - H), (0, 0))).astype(jnp.bfloat16)         # (Hp, 4Hp)
    w_hh_b = jnp.pad(_pad_gates(params["w_hh_b"], H, Hp),
                     ((0, Hp - H), (0, 0))).astype(jnp.bfloat16)

    vmem = pl.BlockSpec(memory_space=pltpu.MemorySpace.VMEM)
    inputs = (x, w_ih, b_all, w_hh_f, w_hh_b)

    # VMEM budget from the actual buffer sizes (+ headroom), capped under v7x's 64 MiB.
    def nbytes(shape, dtype):
        n = 1
        for s in shape:
            n *= s
        return n * jnp.dtype(dtype).itemsize

    used = (sum(nbytes(a.shape, a.dtype) for a in inputs)
            + nbytes((L, Bp, 2 * Hp), jnp.float32)
            + 2 * nbytes((Bp, 2 * Hp), jnp.float32)
            + nbytes((L * Bp, 8 * Hp), jnp.float32))
    vmem_limit = int(min(max(2 * used + (4 << 20), 16 << 20), 48 << 20))

    out_pad, hid_pad, cell_pad = pl.pallas_call(
        bilstm_kernel,
        out_shape=(
            jax.ShapeDtypeStruct((L, Bp, 2 * Hp), jnp.float32),
            jax.ShapeDtypeStruct((Bp, 2 * Hp), jnp.float32),
            jax.ShapeDtypeStruct((Bp, 2 * Hp), jnp.float32),
        ),
        in_specs=[vmem] * len(inputs),
        out_specs=(vmem, vmem, vmem),
        scratch_shapes=[
            pltpu.VMEM((L * Bp, 8 * Hp), jnp.float32),   # hoisted gi, both directions
        ],
        compiler_params=pltpu.CompilerParams(vmem_limit_bytes=vmem_limit),
    )(*inputs)

    # Un-pad and assemble PyTorch layouts.
    enc_out = jnp.concatenate(
        [out_pad[:, :B, :H], out_pad[:, :B, Hp:Hp + H]], axis=-1)   # (L, B, 2H)
    enc_out = jnp.transpose(enc_out, (1, 0, 2))                      # (B, L, 2H)
    hidden = jnp.concatenate([hid_pad[:B, :H], hid_pad[:B, Hp:Hp + H]], axis=-1)[None]
    cell = jnp.concatenate([cell_pad[:B, :H], cell_pad[:B, Hp:Hp + H]], axis=-1)[None]
    return {"encoder_output": enc_out, "hidden": hidden, "cell": cell}


# ---------------- pure-JAX reference (same math, f32 throughout) ----------------
def lstm_encoder_reference(params, src):
    emb = params["embedding"][src].astype(jnp.float32)       # (B, L, E)
    B, L, _ = emb.shape
    H = params["w_hh_f"].shape[0]

    def run_dir(xs, w_ih, w_hh, b):
        def step(carry, xx):
            h, c = carry
            gates = xx @ w_ih + h @ w_hh + b[0]
            i = jax.nn.sigmoid(gates[:, 0 * H:1 * H])
            f = jax.nn.sigmoid(gates[:, 1 * H:2 * H])
            g = jnp.tanh(gates[:, 2 * H:3 * H])
            o = jax.nn.sigmoid(gates[:, 3 * H:4 * H])
            c = f * c + i * g
            h = o * jnp.tanh(c)
            return (h, c), h
        init = (jnp.zeros((B, H), jnp.float32), jnp.zeros((B, H), jnp.float32))
        (hT, cT), hs = lax.scan(step, init, xs)
        return hs, hT, cT

    xs = jnp.transpose(emb, (1, 0, 2))                        # (L, B, E)
    hs_f, h_f, c_f = run_dir(xs, params["w_ih_f"], params["w_hh_f"], params["b_f"])
    hs_b, h_b, c_b = run_dir(xs[::-1], params["w_ih_b"], params["w_hh_b"], params["b_b"])
    hs_b = hs_b[::-1]
    enc_out = jnp.transpose(jnp.concatenate([hs_f, hs_b], axis=-1), (1, 0, 2))
    hidden = jnp.concatenate([h_f, h_b], axis=-1)[None]
    cell = jnp.concatenate([c_f, c_b], axis=-1)[None]
    return {"encoder_output": enc_out, "hidden": hidden, "cell": cell}


def init_params(key, vocab=32, emb=32, hidden=32):
    ks = jax.random.split(key, 7)
    s = 0.1

    def w(k, shape):
        return s * jax.random.normal(k, shape, jnp.float32)

    # Weights stored transposed vs PyTorch ((in, 4H) instead of (4H, in)); biases
    # combined (b_ih + b_hh) as a single (1, 4H) row, PyTorch gate order (i,f,g,o).
    return {
        "embedding": w(ks[0], (vocab, emb)),
        "w_ih_f": w(ks[1], (emb, 4 * hidden)),
        "w_hh_f": w(ks[2], (hidden, 4 * hidden)),
        "b_f": w(ks[3], (1, 4 * hidden)),
        "w_ih_b": w(ks[4], (emb, 4 * hidden)),
        "w_hh_b": w(ks[5], (hidden, 4 * hidden)),
        "b_b": w(ks[6], (1, 4 * hidden)),
    }


if __name__ == "__main__":
    key = jax.random.PRNGKey(0)
    k_p, k_src = jax.random.split(key, 2)

    VOCAB, EMB, HIDDEN = 32, 32, 32
    B, SEQ = 2, 8

    params = init_params(k_p, vocab=VOCAB, emb=EMB, hidden=HIDDEN)
    src = jax.random.randint(k_src, (B, SEQ), 0, VOCAB, dtype=jnp.int32)

    out = jax.jit(simple_lstm_encoder_forward)(params, src)
    out = jax.block_until_ready(out)

    ref = lstm_encoder_reference(params, src)

    assert out["encoder_output"].shape == (B, SEQ, 2 * HIDDEN)
    assert out["hidden"].shape == (1, B, 2 * HIDDEN)
    assert out["cell"].shape == (1, B, 2 * HIDDEN)
    # Tolerances loosened vs the all-f32 version: MXU operands are bf16 (f32 accumulate).
    assert jnp.allclose(out["encoder_output"], ref["encoder_output"], atol=1e-2, rtol=1e-2)
    assert jnp.allclose(out["hidden"], ref["hidden"], atol=1e-2, rtol=1e-2)
    assert jnp.allclose(out["cell"], ref["cell"], atol=1e-2, rtol=1e-2)

    print("KERNEL_OK")
</pallas_src>

<mosaic_0001>
module attributes {stable_mosaic.version = 11 : i64} {
  func.func @bilstm_kernel(%arg0: memref<64x128xbf16, #tpu.memory_space<vmem>>, %arg1: memref<128x1024xbf16, #tpu.memory_space<vmem>>, %arg2: memref<1x1024xf32, #tpu.memory_space<vmem>>, %arg3: memref<128x512xbf16, #tpu.memory_space<vmem>>, %arg4: memref<128x512xbf16, #tpu.memory_space<vmem>>, %arg5: memref<8x8x256xf32, #tpu.memory_space<vmem>>, %arg6: memref<8x256xf32, #tpu.memory_space<vmem>>, %arg7: memref<8x256xf32, #tpu.memory_space<vmem>>, %arg8: memref<64x1024xf32, #tpu.memory_space<vmem>>) attributes {dimension_semantics = [], scalar_prefetch = 0 : i64, scratch_operands = 1 : i64, tpu.core_type = #tpu.core_type<tc>} {
    %c0 = arith.constant 0 : index
    %c0_0 = arith.constant 0 : index
    %0 = vector.load %arg0[%c0, %c0_0] : memref<64x128xbf16, #tpu.memory_space<vmem>>, vector<64x128xbf16>
    %c0_1 = arith.constant 0 : index
    %c0_2 = arith.constant 0 : index
    %1 = vector.load %arg1[%c0_1, %c0_2] : memref<128x1024xbf16, #tpu.memory_space<vmem>>, vector<128x1024xbf16>
    %cst = arith.constant dense<0.000000e+00> : vector<64x1024xf32>
    %2 = tpu.matmul %0, %1, %cst {dimension_numbers = #tpu.dot_dimension_numbers<[1], [0], [0], [1], [0, 0, 1, 1], [], []>} : vector<64x128xbf16>, vector<128x1024xbf16>, vector<64x1024xf32> -> vector<64x1024xf32>
    %c0_3 = arith.constant 0 : index
    %c0_4 = arith.constant 0 : index
    %3 = vector.load %arg2[%c0_3, %c0_4] : memref<1x1024xf32, #tpu.memory_space<vmem>>, vector<1x1024xf32>
    %4 = vector.broadcast %3 : vector<1x1024xf32> to vector<64x1024xf32>
    %5 = arith.addf %2, %4 : vector<64x1024xf32>
    %c0_5 = arith.constant 0 : index
    %c0_6 = arith.constant 0 : index
    %6 = vector.load %arg8[%c0_5, %c0_6] : memref<64x1024xf32, #tpu.memory_space<vmem>>, vector<64x1024xf32>
    tpu.vector_store %arg8[%c0_5, %c0_6], %5 {strides = array<i32>} : memref<64x1024xf32, #tpu.memory_space<vmem>>, vector<64x1024xf32>,
    %cst_7 = arith.constant 0.000000e+00 : f32
    %7 = vector.broadcast %cst_7 : f32 to vector<8x128xf32>
    %c0_i32 = arith.constant 0 : i32
    %c7_i32 = arith.constant 7 : i32
    %8 = arith.subi %c7_i32, %c0_i32 : i32
    %c8_i32 = arith.constant 8 : i32
    %9 = arith.muli %c0_i32, %c8_i32 : i32
    %10 = tpu.assume_multiple %9, 8 : i32
    %c8_i32_8 = arith.constant 8 : i32
    %11 = arith.muli %8, %c8_i32_8 : i32
    %12 = tpu.assume_multiple %11, 8 : i32
    %13 = arith.index_cast %10 : i32 to index
    %c0_9 = arith.constant 0 : index
    %14 = vector.load %arg8[%13, %c0_9] : memref<64x1024xf32, #tpu.memory_space<vmem>>, vector<8x512xf32>
    %15 = arith.truncf %7 : vector<8x128xf32> to vector<8x128xbf16>
    %c0_10 = arith.constant 0 : index
    %c0_11 = arith.constant 0 : index
    %16 = vector.load %arg3[%c0_10, %c0_11] : memref<128x512xbf16, #tpu.memory_space<vmem>>, vector<128x512xbf16>
    %cst_12 = arith.constant dense<0.000000e+00> : vector<8x512xf32>
    %17 = tpu.matmul %15, %16, %cst_12 {dimension_numbers = #tpu.dot_dimension_numbers<[1], [0], [0], [1], [0, 0, 1, 1], [], []>} : vector<8x128xbf16>, vector<128x512xbf16>, vector<8x512xf32> -> vector<8x512xf32>
    %18 = arith.addf %14, %17 : vector<8x512xf32>
    %19 = arith.index_cast %12 : i32 to index
    %c512 = arith.constant 512 : index
    %20 = vector.load %arg8[%19, %c512] : memref<64x1024xf32, #tpu.memory_space<vmem>>, vector<8x512xf32>
    %21 = arith.truncf %7 : vector<8x128xf32> to vector<8x128xbf16>
    %c0_13 = arith.constant 0 : index
    %c0_14 = arith.constant 0 : index
    %22 = vector.load %arg4[%c0_13, %c0_14] : memref<128x512xbf16, #tpu.memory_space<vmem>>, vector<128x512xbf16>
    %cst_15 = arith.constant dense<0.000000e+00> : vector<8x512xf32>
    %23 = tpu.matmul %21, %22, %cst_15 {dimension_numbers = #tpu.dot_dimension_numbers<[1], [0], [0], [1], [0, 0, 1, 1], [], []>} : vector<8x128xbf16>, vector<128x512xbf16>, vector<8x512xf32> -> vector<8x512xf32>
    %24 = arith.addf %20, %23 : vector<8x512xf32>
    %25 = vector.extract_strided_slice %18 {offsets = [0, 0], sizes = [8, 384], strides = [1, 1]} : vector<8x512xf32> to vector<8x384xf32>
    %26 = arith.negf %25 : vector<8x384xf32>
    %27 = math.exp %26 : vector<8x384xf32>
    %cst_16 = arith.constant 1.000000e+00 : f32
    %28 = vector.broadcast %cst_16 : f32 to vector<8x384xf32>
    %29 = arith.addf %28, %27 : vector<8x384xf32>
    %30 = arith.divf %28, %29 : vector<8x384xf32>
    %31 = vector.extract_strided_slice %30 {offsets = [0, 0], sizes = [8, 128], strides = [1, 1]} : vector<8x384xf32> to vector<8x128xf32>
    %32 = vector.extract_strided_slice %30 {offsets = [0, 128], sizes = [8, 128], strides = [1, 1]} : vector<8x384xf32> to vector<8x128xf32>
    %33 = vector.extract_strided_slice %30 {offsets = [0, 256], sizes = [8, 128], strides = [1, 1]} : vector<8x384xf32> to vector<8x128xf32>
    %34 = vector.extract_strided_slice %18 {offsets = [0, 384], sizes = [8, 128], strides = [1, 1]} : vector<8x512xf32> to vector<8x128xf32>
    %35 = math.tanh %34 : vector<8x128xf32>
    %36 = arith.mulf %32, %7 : vector<8x128xf32>
    %37 = arith.mulf %31, %35 : vector<8x128xf32>
    %38 = arith.addf %36, %37 : vector<8x128xf32>
    %39 = math.tanh %38 : vector<8x128xf32>
    %40 = arith.mulf %33, %39 : vector<8x128xf32>
    %41 = vector.extract_strided_slice %24 {offsets = [0, 0], sizes = [8, 384], strides = [1, 1]} : vector<8x512xf32> to vector<8x384xf32>
    %42 = arith.negf %41 : vector<8x384xf32>
    %43 = math.exp %42 : vector<8x384xf32>
    %cst_17 = arith.constant 1.000000e+00 : f32
    %44 = vector.broadcast %cst_17 : f32 to vector<8x384xf32>
    %45 = arith.addf %44, %43 : vector<8x384xf32>
    %46 = arith.divf %44, %45 : vector<8x384xf32>
    %47 = vector.extract_strided_slice %46 {offsets = [0, 0], sizes = [8, 128], strides = [1, 1]} : vector<8x384xf32> to vector<8x128xf32>
    %48 = vector.extract_strided_slice %46 {offsets = [0, 128], sizes = [8, 128], strides = [1, 1]} : vector<8x384xf32> to vector<8x128xf32>
    %49 = vector.extract_strided_slice %46 {offsets = [0, 256], sizes = [8, 128], strides = [1, 1]} : vector<8x384xf32> to vector<8x128xf32>
    %50 = vector.extract_strided_slice %24 {offsets = [0, 384], sizes = [8, 128], strides = [1, 1]} : vector<8x512xf32> to vector<8x128xf32>
    %51 = math.tanh %50 : vector<8x128xf32>
    %52 = arith.mulf %48, %7 : vector<8x128xf32>
    %53 = arith.mulf %47, %51 : vector<8x128xf32>
    %54 = arith.addf %52, %53 : vector<8x128xf32>
    %55 = math.tanh %54 : vector<8x128xf32>
    %56 = arith.mulf %49, %55 : vector<8x128xf32>
    %57 = arith.index_cast %c0_i32 : i32 to index
    %c0_18 = arith.constant 0 : index
    %c0_19 = arith.constant 0 : index
    %58 = vector.load %arg5[%57, %c0_18, %c0_19] : memref<8x8x256xf32, #tpu.memory_space<vmem>>, vector<1x8x128xf32>
    %59 = vector.shape_cast %58 : vector<1x8x128xf32> to vector<8x128xf32>
    %60 = vector.shape_cast %40 : vector<8x128xf32> to vector<1x8x128xf32>
    tpu.vector_store %arg5[%57, %c0_18, %c0_19], %60 {strides = array<i32>} : memref<8x8x256xf32, #tpu.memory_space<vmem>>, vector<1x8x128xf32>,
    %61 = arith.index_cast %8 : i32 to index
    %c0_20 = arith.constant 0 : index
    %c128 = arith.constant 128 : index
    %62 = vector.load %arg5[%61, %c0_20, %c128] : memref<8x8x256xf32, #tpu.memory_space<vmem>>, vector<1x8x128xf32>
    %63 = vector.shape_cast %62 : vector<1x8x128xf32> to vector<8x128xf32>
    %64 = vector.shape_cast %56 : vector<8x128xf32> to vector<1x8x128xf32>
    tpu.vector_store %arg5[%61, %c0_20, %c128], %64 {strides = array<i32>} : memref<8x8x256xf32, #tpu.memory_space<vmem>>, vector<1x8x128xf32>,
    %c1_i32 = arith.constant 1 : i32
    %c7_i32_21 = arith.constant 7 : i32
    %65 = arith.subi %c7_i32_21, %c1_i32 : i32
    %c8_i32_22 = arith.constant 8 : i32
    %66 = arith.muli %c1_i32, %c8_i32_22 : i32
    %67 = tpu.assume_multiple %66, 8 : i32
    %c8_i32_23 = arith.constant 8 : i32
    %68 = arith.muli %65, %c8_i32_23 : i32
    %69 = tpu.assume_multiple %68, 8 : i32
    %70 = arith.index_cast %67 : i32 to index
    %c0_24 = arith.constant 0 : index
    %71 = vector.load %arg8[%70, %c0_24] : memref<64x1024xf32, #tpu.memory_space<vmem>>, vector<8x512xf32>
    %72 = arith.truncf %40 : vector<8x128xf32> to vector<8x128xbf16>
    %c0_25 = arith.constant 0 : index
    %c0_26 = arith.constant 0 : index
    %73 = vector.load %arg3[%c0_25, %c0_26] : memref<128x512xbf16, #tpu.memory_space<vmem>>, vector<128x512xbf16>
    %cst_27 = arith.constant dense<0.000000e+00> : vector<8x512xf32>
    %74 = tpu.matmul %72, %73, %cst_27 {dimension_numbers = #tpu.dot_dimension_numbers<[1], [0], [0], [1], [0, 0, 1, 1], [], []>} : vector<8x128xbf16>, vector<128x512xbf16>, vector<8x512xf32> -> vector<8x512xf32>
    %75 = arith.addf %71, %74 : vector<8x512xf32>
    %76 = arith.index_cast %69 : i32 to index
    %c512_28 = arith.constant 512 : index
    %77 = vector.load %arg8[%76, %c512_28] : memref<64x1024xf32, #tpu.memory_space<vmem>>, vector<8x512xf32>
    %78 = arith.truncf %56 : vector<8x128xf32> to vector<8x128xbf16>
    %c0_29 = arith.constant 0 : index
    %c0_30 = arith.constant 0 : index
    %79 = vector.load %arg4[%c0_29, %c0_30] : memref<128x512xbf16, #tpu.memory_space<vmem>>, vector<128x512xbf16>
    %cst_31 = arith.constant dense<0.000000e+00> : vector<8x512xf32>
    %80 = tpu.matmul %78, %79, %cst_31 {dimension_numbers = #tpu.dot_dimension_numbers<[1], [0], [0], [1], [0, 0, 1, 1], [], []>} : vector<8x128xbf16>, vector<128x512xbf16>, vector<8x512xf32> -> vector<8x512xf32>
    %81 = arith.addf %77, %80 : vector<8x512xf32>
    %82 = vector.extract_strided_slice %75 {offsets = [0, 0], sizes = [8, 384], strides = [1, 1]} : vector<8x512xf32> to vector<8x384xf32>
    %83 = arith.negf %82 : vector<8x384xf32>
    %84 = math.exp %83 : vector<8x384xf32>
    %cst_32 = arith.constant 1.000000e+00 : f32
    %85 = vector.broadcast %cst_32 : f32 to vector<8x384xf32>
    %86 = arith.addf %85, %84 : vector<8x384xf32>
    %87 = arith.divf %85, %86 : vector<8x384xf32>
    %88 = vector.extract_strided_slice %87 {offsets = [0, 0], sizes = [8, 128], strides = [1, 1]} : vector<8x384xf32> to vector<8x128xf32>
    %89 = vector.extract_strided_slice %87 {offsets = [0, 128], sizes = [8, 128], strides = [1, 1]} : vector<8x384xf32> to vector<8x128xf32>
    %90 = vector.extract_strided_slice %87 {offsets = [0, 256], sizes = [8, 128], strides = [1, 1]} : vector<8x384xf32> to vector<8x128xf32>
    %91 = vector.extract_strided_slice %75 {offsets = [0, 384], sizes = [8, 128], strides = [1, 1]} : vector<8x512xf32> to vector<8x128xf32>
    %92 = math.tanh %91 : vector<8x128xf32>
    %93 = arith.mulf %89, %38 : vector<8x128xf32>
    %94 = arith.mulf %88, %92 : vector<8x128xf32>
    %95 = arith.addf %93, %94 : vector<8x128xf32>
    %96 = math.tanh %95 : vector<8x128xf32>
    %97 = arith.mulf %90, %96 : vector<8x128xf32>
    %98 = vector.extract_strided_slice %81 {offsets = [0, 0], sizes = [8, 384], strides = [1, 1]} : vector<8x512xf32> to vector<8x384xf32>
    %99 = arith.negf %98 : vector<8x384xf32>
    %100 = math.exp %99 : vector<8x384xf32>
    %cst_33 = arith.constant 1.000000e+00 : f32
    %101 = vector.broadcast %cst_33 : f32 to vector<8x384xf32>
    %102 = arith.addf %101, %100 : vector<8x384xf32>
    %103 = arith.divf %101, %102 : vector<8x384xf32>
    %104 = vector.extract_strided_slice %103 {offsets = [0, 0], sizes = [8, 128], strides = [1, 1]} : vector<8x384xf32> to vector<8x128xf32>
    %105 = vector.extract_strided_slice %103 {offsets = [0, 128], sizes = [8, 128], strides = [1, 1]} : vector<8x384xf32> to vector<8x128xf32>
    %106 = vector.extract_strided_slice %103 {offsets = [0, 256], sizes = [8, 128], strides = [1, 1]} : vector<8x384xf32> to vector<8x128xf32>
    %107 = vector.extract_strided_slice %81 {offsets = [0, 384], sizes = [8, 128], strides = [1, 1]} : vector<8x512xf32> to vector<8x128xf32>
    %108 = math.tanh %107 : vector<8x128xf32>
    %109 = arith.mulf %105, %54 : vector<8x128xf32>
    %110 = arith.mulf %104, %108 : vector<8x128xf32>
    %111 = arith.addf %109, %110 : vector<8x128xf32>
    %112 = math.tanh %111 : vector<8x128xf32>
    %113 = arith.mulf %106, %112 : vector<8x128xf32>
    %114 = arith.index_cast %c1_i32 : i32 to index
    %c0_34 = arith.constant 0 : index
    %c0_35 = arith.constant 0 : index
    %115 = vector.load %arg5[%114, %c0_34, %c0_35] : memref<8x8x256xf32, #tpu.memory_space<vmem>>, vector<1x8x128xf32>
    %116 = vector.shape_cast %115 : vector<1x8x128xf32> to vector<8x128xf32>
    %117 = vector.shape_cast %97 : vector<8x128xf32> to vector<1x8x128xf32>
    tpu.vector_store %arg5[%114, %c0_34, %c0_35], %117 {strides = array<i32>} : memref<8x8x256xf32, #tpu.memory_space<vmem>>, vector<1x8x128xf32>,
    %118 = arith.index_cast %65 : i32 to index
    %c0_36 = arith.constant 0 : index
    %c128_37 = arith.constant 128 : index
    %119 = vector.load %arg5[%118, %c0_36, %c128_37] : memref<8x8x256xf32, #tpu.memory_space<vmem>>, vector<1x8x128xf32>
    %120 = vector.shape_cast %119 : vector<1x8x128xf32> to vector<8x128xf32>
    %121 = vector.shape_cast %113 : vector<8x128xf32> to vector<1x8x128xf32>
    tpu.vector_store %arg5[%118, %c0_36, %c128_37], %121 {strides = array<i32>} : memref<8x8x256xf32, #tpu.memory_space<vmem>>, vector<1x8x128xf32>,
    %c2_i32 = arith.constant 2 : i32
    %c7_i32_38 = arith.constant 7 : i32
    %122 = arith.subi %c7_i32_38, %c2_i32 : i32
    %c8_i32_39 = arith.constant 8 : i32
    %123 = arith.muli %c2_i32, %c8_i32_39 : i32
    %124 = tpu.assume_multiple %123, 8 : i32
    %c8_i32_40 = arith.constant 8 : i32
    %125 = arith.muli %122, %c8_i32_40 : i32
    %126 = tpu.assume_multiple %125, 8 : i32
    %127 = arith.index_cast %124 : i32 to index
    %c0_41 = arith.constant 0 : index
    %128 = vector.load %arg8[%127, %c0_41] : memref<64x1024xf32, #tpu.memory_space<vmem>>, vector<8x512xf32>
    %129 = arith.truncf %97 : vector<8x128xf32> to vector<8x128xbf16>
    %c0_42 = arith.constant 0 : index
    %c0_43 = arith.constant 0 : index
    %130 = vector.load %arg3[%c0_42, %c0_43] : memref<128x512xbf16, #tpu.memory_space<vmem>>, vector<128x512xbf16>
    %cst_44 = arith.constant dense<0.000000e+00> : vector<8x512xf32>
    %131 = tpu.matmul %129, %130, %cst_44 {dimension_numbers = #tpu.dot_dimension_numbers<[1], [0], [0], [1], [0, 0, 1, 1], [], []>} : vector<8x128xbf16>, vector<128x512xbf16>, vector<8x512xf32> -> vector<8x512xf32>
    %132 = arith.addf %128, %131 : vector<8x512xf32>
    %133 = arith.index_cast %126 : i32 to index
    %c512_45 = arith.constant 512 : index
    %134 = vector.load %arg8[%133, %c512_45] : memref<64x1024xf32, #tpu.memory_space<vmem>>, vector<8x512xf32>
    %135 = arith.truncf %113 : vector<8x128xf32> to vector<8x128xbf16>
    %c0_46 = arith.constant 0 : index
    %c0_47 = arith.constant 0 : index
    %136 = vector.load %arg4[%c0_46, %c0_47] : memref<128x512xbf16, #tpu.memory_space<vmem>>, vector<128x512xbf16>
    %cst_48 = arith.constant dense<0.000000e+00> : vector<8x512xf32>
    %137 = tpu.matmul %135, %136, %cst_48 {dimension_numbers = #tpu.dot_dimension_numbers<[1], [0], [0], [1], [0, 0, 1, 1], [], []>} : vector<8x128xbf16>, vector<128x512xbf16>, vector<8x512xf32> -> vector<8x512xf32>
    %138 = arith.addf %134, %137 : vector<8x512xf32>
    %139 = vector.extract_strided_slice %132 {offsets = [0, 0], sizes = [8, 384], strides = [1, 1]} : vector<8x512xf32> to vector<8x384xf32>
    %140 = arith.negf %139 : vector<8x384xf32>
    %141 = math.exp %140 : vector<8x384xf32>
    %cst_49 = arith.constant 1.000000e+00 : f32
    %142 = vector.broadcast %cst_49 : f32 to vector<8x384xf32>
    %143 = arith.addf %142, %141 : vector<8x384xf32>
    %144 = arith.divf %142, %143 : vector<8x384xf32>
    %145 = vector.extract_strided_slice %144 {offsets = [0, 0], sizes = [8, 128], strides = [1, 1]} : vector<8x384xf32> to vector<8x128xf32>
    %146 = vector.extract_strided_slice %144 {offsets = [0, 128], sizes = [8, 128], strides = [1, 1]} : vector<8x384xf32> to vector<8x128xf32>
    %147 = vector.extract_strided_slice %144 {offsets = [0, 256], sizes = [8, 128], strides = [1, 1]} : vector<8x384xf32> to vector<8x128xf32>
    %148 = vector.extract_strided_slice %132 {offsets = [0, 384], sizes = [8, 128], strides = [1, 1]} : vector<8x512xf32> to vector<8x128xf32>
    %149 = math.tanh %148 : vector<8x128xf32>
    %150 = arith.mulf %146, %95 : vector<8x128xf32>
    %151 = arith.mulf %145, %149 : vector<8x128xf32>
    %152 = arith.addf %150, %151 : vector<8x128xf32>
    %153 = math.tanh %152 : vector<8x128xf32>
    %154 = arith.mulf %147, %153 : vector<8x128xf32>
    %155 = vector.extract_strided_slice %138 {offsets = [0, 0], sizes = [8, 384], strides = [1, 1]} : vector<8x512xf32> to vector<8x384xf32>
    %156 = arith.negf %155 : vector<8x384xf32>
    %157 = math.exp %156 : vector<8x384xf32>
    %cst_50 = arith.constant 1.000000e+00 : f32
    %158 = vector.broadcast %cst_50 : f32 to vector<8x384xf32>
    %159 = arith.addf %158, %157 : vector<8x384xf32>
    %160 = arith.divf %158, %159 : vector<8x384xf32>
    %161 = vector.extract_strided_slice %160 {offsets = [0, 0], sizes = [8, 128], strides = [1, 1]} : vector<8x384xf32> to vector<8x128xf32>
    %162 = vector.extract_strided_slice %160 {offsets = [0, 128], sizes = [8, 128], strides = [1, 1]} : vector<8x384xf32> to vector<8x128xf32>
    %163 = vector.extract_strided_slice %160 {offsets = [0, 256], sizes = [8, 128], strides = [1, 1]} : vector<8x384xf32> to vector<8x128xf32>
    %164 = vector.extract_strided_slice %138 {offsets = [0, 384], sizes = [8, 128], strides = [1, 1]} : vector<8x512xf32> to vector<8x128xf32>
    %165 = math.tanh %164 : vector<8x128xf32>
    %166 = arith.mulf %162, %111 : vector<8x128xf32>
    %167 = arith.mulf %161, %165 : vector<8x128xf32>
    %168 = arith.addf %166, %167 : vector<8x128xf32>
    %169 = math.tanh %168 : vector<8x128xf32>
    %170 = arith.mulf %163, %169 : vector<8x128xf32>
    %171 = arith.index_cast %c2_i32 : i32 to index
    %c0_51 = arith.constant 0 : index
    %c0_52 = arith.constant 0 : index
    %172 = vector.load %arg5[%171, %c0_51, %c0_52] : memref<8x8x256xf32, #tpu.memory_space<vmem>>, vector<1x8x128xf32>
    %173 = vector.shape_cast %172 : vector<1x8x128xf32> to vector<8x128xf32>
    %174 = vector.shape_cast %154 : vector<8x128xf32> to vector<1x8x128xf32>
    tpu.vector_store %arg5[%171, %c0_51, %c0_52], %174 {strides = array<i32>} : memref<8x8x256xf32, #tpu.memory_space<vmem>>, vector<1x8x128xf32>,
    %175 = arith.index_cast %122 : i32 to index
    %c0_53 = arith.constant 0 : index
    %c128_54 = arith.constant 128 : index
    %176 = vector.load %arg5[%175, %c0_53, %c128_54] : memref<8x8x256xf32, #tpu.memory_space<vmem>>, vector<1x8x128xf32>
    %177 = vector.shape_cast %176 : vector<1x8x128xf32> to vector<8x128xf32>
    %178 = vector.shape_cast %170 : vector<8x128xf32> to vector<1x8x128xf32>
    tpu.vector_store %arg5[%175, %c0_53, %c128_54], %178 {strides = array<i32>} : memref<8x8x256xf32, #tpu.memory_space<vmem>>, vector<1x8x128xf32>,
    %c3_i32 = arith.constant 3 : i32
    %c7_i32_55 = arith.constant 7 : i32
    %179 = arith.subi %c7_i32_55, %c3_i32 : i32
    %c8_i32_56 = arith.constant 8 : i32
    %180 = arith.muli %c3_i32, %c8_i32_56 : i32
    %181 = tpu.assume_multiple %180, 8 : i32
    %c8_i32_57 = arith.constant 8 : i32
    %182 = arith.muli %179, %c8_i32_57 : i32
    %183 = tpu.assume_multiple %182, 8 : i32
    %184 = arith.index_cast %181 : i32 to index
    %c0_58 = arith.constant 0 : index
    %185 = vector.load %arg8[%184, %c0_58] : memref<64x1024xf32, #tpu.memory_space<vmem>>, vector<8x512xf32>
    %186 = arith.truncf %154 : vector<8x128xf32> to vector<8x128xbf16>
    %c0_59 = arith.constant 0 : index
    %c0_60 = arith.constant 0 : index
    %187 = vector.load %arg3[%c0_59, %c0_60] : memref<128x512xbf16, #tpu.memory_space<vmem>>, vector<128x512xbf16>
    %cst_61 = arith.constant dense<0.000000e+00> : vector<8x512xf32>
    %188 = tpu.matmul %186, %187, %cst_61 {dimension_numbers = #tpu.dot_dimension_numbers<[1], [0], [0], [1], [0, 0, 1, 1], [], []>} : vector<8x128xbf16>, vector<128x512xbf16>, vector<8x512xf32> -> vector<8x512xf32>
    %189 = arith.addf %185, %188 : vector<8x512xf32>
    %190 = arith.index_cast %183 : i32 to index
    %c512_62 = arith.constant 512 : index
    %191 = vector.load %arg8[%190, %c512_62] : memref<64x1024xf32, #tpu.memory_space<vmem>>, vector<8x512xf32>
    %192 = arith.truncf %170 : vector<8x128xf32> to vector<8x128xbf16>
    %c0_63 = arith.constant 0 : index
    %c0_64 = arith.constant 0 : index
    %193 = vector.load %arg4[%c0_63, %c0_64] : memref<128x512xbf16, #tpu.memory_space<vmem>>, vector<128x512xbf16>
    %cst_65 = arith.constant dense<0.000000e+00> : vector<8x512xf32>
    %194 = tpu.matmul %192, %193, %cst_65 {dimension_numbers = #tpu.dot_dimension_numbers<[1], [0], [0], [1], [0, 0, 1, 1], [], []>} : vector<8x128xbf16>, vector<128x512xbf16>, vector<8x512xf32> -> vector<8x512xf32>
    %195 = arith.addf %191, %194 : vector<8x512xf32>
    %196 = vector.extract_strided_slice %189 {offsets = [0, 0], sizes = [8, 384], strides = [1, 1]} : vector<8x512xf32> to vector<8x384xf32>
    %197 = arith.negf %196 : vector<8x384xf32>
    %198 = math.exp %197 : vector<8x384xf32>
    %cst_66 = arith.constant 1.000000e+00 : f32
    %199 = vector.broadcast %cst_66 : f32 to vector<8x384xf32>
    %200 = arith.addf %199, %198 : vector<8x384xf32>
    %201 = arith.divf %199, %200 : vector<8x384xf32>
    %202 = vector.extract_strided_slice %201 {offsets = [0, 0], sizes = [8, 128], strides = [1, 1]} : vector<8x384xf32> to vector<8x128xf32>
    %203 = vector.extract_strided_slice %201 {offsets = [0, 128], sizes = [8, 128], strides = [1, 1]} : vector<8x384xf32> to vector<8x128xf32>
    %204 = vector.extract_strided_slice %201 {offsets = [0, 256], sizes = [8, 128], strides = [1, 1]} : vector<8x384xf32> to vector<8x128xf32>
    %205 = vector.extract_strided_slice %189 {offsets = [0, 384], sizes = [8, 128], strides = [1, 1]} : vector<8x512xf32> to vector<8x128xf32>
    %206 = math.tanh %205 : vector<8x128xf32>
    %207 = arith.mulf %203, %152 : vector<8x128xf32>
    %208 = arith.mulf %202, %206 : vector<8x128xf32>
    %209 = arith.addf %207, %208 : vector<8x128xf32>
    %210 = math.tanh %209 : vector<8x128xf32>
    %211 = arith.mulf %204, %210 : vector<8x128xf32>
    %212 = vector.extract_strided_slice %195 {offsets = [0, 0], sizes = [8, 384], strides = [1, 1]} : vector<8x512xf32> to vector<8x384xf32>
    %213 = arith.negf %212 : vector<8x384xf32>
    %214 = math.exp %213 : vector<8x384xf32>
    %cst_67 = arith.constant 1.000000e+00 : f32
    %215 = vector.broadcast %cst_67 : f32 to vector<8x384xf32>
    %216 = arith.addf %215, %214 : vector<8x384xf32>
    %217 = arith.divf %215, %216 : vector<8x384xf32>
    %218 = vector.extract_strided_slice %217 {offsets = [0, 0], sizes = [8, 128], strides = [1, 1]} : vector<8x384xf32> to vector<8x128xf32>
    %219 = vector.extract_strided_slice %217 {offsets = [0, 128], sizes = [8, 128], strides = [1, 1]} : vector<8x384xf32> to vector<8x128xf32>
    %220 = vector.extract_strided_slice %217 {offsets = [0, 256], sizes = [8, 128], strides = [1, 1]} : vector<8x384xf32> to vector<8x128xf32>
    %221 = vector.extract_strided_slice %195 {offsets = [0, 384], sizes = [8, 128], strides = [1, 1]} : vector<8x512xf32> to vector<8x128xf32>
    %222 = math.tanh %221 : vector<8x128xf32>
    %223 = arith.mulf %219, %168 : vector<8x128xf32>
    %224 = arith.mulf %218, %222 : vector<8x128xf32>
    %225 = arith.addf %223, %224 : vector<8x128xf32>
    %226 = math.tanh %225 : vector<8x128xf32>
    %227 = arith.mulf %220, %226 : vector<8x128xf32>
    %228 = arith.index_cast %c3_i32 : i32 to index
    %c0_68 = arith.constant 0 : index
    %c0_69 = arith.constant 0 : index
    %229 = vector.load %arg5[%228, %c0_68, %c0_69] : memref<8x8x256xf32, #tpu.memory_space<vmem>>, vector<1x8x128xf32>
    %230 = vector.shape_cast %229 : vector<1x8x128xf32> to vector<8x128xf32>
    %231 = vector.shape_cast %211 : vector<8x128xf32> to vector<1x8x128xf32>
    tpu.vector_store %arg5[%228, %c0_68, %c0_69], %231 {strides = array<i32>} : memref<8x8x256xf32, #tpu.memory_space<vmem>>, vector<1x8x128xf32>,
    %232 = arith.index_cast %179 : i32 to index
    %c0_70 = arith.constant 0 : index
    %c128_71 = arith.constant 128 : index
    %233 = vector.load %arg5[%232, %c0_70, %c128_71] : memref<8x8x256xf32, #tpu.memory_space<vmem>>, vector<1x8x128xf32>
    %234 = vector.shape_cast %233 : vector<1x8x128xf32> to vector<8x128xf32>
    %235 = vector.shape_cast %227 : vector<8x128xf32> to vector<1x8x128xf32>
    tpu.vector_store %arg5[%232, %c0_70, %c128_71], %235 {strides = array<i32>} : memref<8x8x256xf32, #tpu.memory_space<vmem>>, vector<1x8x128xf32>,
    %c4_i32 = arith.constant 4 : i32
    %c7_i32_72 = arith.constant 7 : i32
    %236 = arith.subi %c7_i32_72, %c4_i32 : i32
    %c8_i32_73 = arith.constant 8 : i32
    %237 = arith.muli %c4_i32, %c8_i32_73 : i32
    %238 = tpu.assume_multiple %237, 8 : i32
    %c8_i32_74 = arith.constant 8 : i32
    %239 = arith.muli %236, %c8_i32_74 : i32
    %240 = tpu.assume_multiple %239, 8 : i32
    %241 = arith.index_cast %238 : i32 to index
    %c0_75 = arith.constant 0 : index
    %242 = vector.load %arg8[%241, %c0_75] : memref<64x1024xf32, #tpu.memory_space<vmem>>, vector<8x512xf32>
    %243 = arith.truncf %211 : vector<8x128xf32> to vector<8x128xbf16>
    %c0_76 = arith.constant 0 : index
    %c0_77 = arith.constant 0 : index
    %244 = vector.load %arg3[%c0_76, %c0_77] : memref<128x512xbf16, #tpu.memory_space<vmem>>, vector<128x512xbf16>
    %cst_78 = arith.constant dense<0.000000e+00> : vector<8x512xf32>
    %245 = tpu.matmul %243, %244, %cst_78 {dimension_numbers = #tpu.dot_dimension_numbers<[1], [0], [0], [1], [0, 0, 1, 1], [], []>} : vector<8x128xbf16>, vector<128x512xbf16>, vector<8x512xf32> -> vector<8x512xf32>
    %246 = arith.addf %242, %245 : vector<8x512xf32>
    %247 = arith.index_cast %240 : i32 to index
    %c512_79 = arith.constant 512 : index
    %248 = vector.load %arg8[%247, %c512_79] : memref<64x1024xf32, #tpu.memory_space<vmem>>, vector<8x512xf32>
    %249 = arith.truncf %227 : vector<8x128xf32> to vector<8x128xbf16>
    %c0_80 = arith.constant 0 : index
    %c0_81 = arith.constant 0 : index
    %250 = vector.load %arg4[%c0_80, %c0_81] : memref<128x512xbf16, #tpu.memory_space<vmem>>, vector<128x512xbf16>
    %cst_82 = arith.constant dense<0.000000e+00> : vector<8x512xf32>
    %251 = tpu.matmul %249, %250, %cst_82 {dimension_numbers = #tpu.dot_dimension_numbers<[1], [0], [0], [1], [0, 0, 1, 1], [], []>} : vector<8x128xbf16>, vector<128x512xbf16>, vector<8x512xf32> -> vector<8x512xf32>
    %252 = arith.addf %248, %251 : vector<8x512xf32>
    %253 = vector.extract_strided_slice %246 {offsets = [0, 0], sizes = [8, 384], strides = [1, 1]} : vector<8x512xf32> to vector<8x384xf32>
    %254 = arith.negf %253 : vector<8x384xf32>
    %255 = math.exp %254 : vector<8x384xf32>
    %cst_83 = arith.constant 1.000000e+00 : f32
    %256 = vector.broadcast %cst_83 : f32 to vector<8x384xf32>
    %257 = arith.addf %256, %255 : vector<8x384xf32>
    %258 = arith.divf %256, %257 : vector<8x384xf32>
    %259 = vector.extract_strided_slice %258 {offsets = [0, 0], sizes = [8, 128], strides = [1, 1]} : vector<8x384xf32> to vector<8x128xf32>
    %260 = vector.extract_strided_slice %258 {offsets = [0, 128], sizes = [8, 128], strides = [1, 1]} : vector<8x384xf32> to vector<8x128xf32>
    %261 = vector.extract_strided_slice %258 {offsets = [0, 256], sizes = [8, 128], strides = [1, 1]} : vector<8x384xf32> to vector<8x128xf32>
    %262 = vector.extract_strided_slice %246 {offsets = [0, 384], sizes = [8, 128], strides = [1, 1]} : vector<8x512xf32> to vector<8x128xf32>
    %263 = math.tanh %262 : vector<8x128xf32>
    %264 = arith.mulf %260, %209 : vector<8x128xf32>
    %265 = arith.mulf %259, %263 : vector<8x128xf32>
    %266 = arith.addf %264, %265 : vector<8x128xf32>
    %267 = math.tanh %266 : vector<8x128xf32>
    %268 = arith.mulf %261, %267 : vector<8x128xf32>
    %269 = vector.extract_strided_slice %252 {offsets = [0, 0], sizes = [8, 384], strides = [1, 1]} : vector<8x512xf32> to vector<8x384xf32>
    %270 = arith.negf %269 : vector<8x384xf32>
    %271 = math.exp %270 : vector<8x384xf32>
    %cst_84 = arith.constant 1.000000e+00 : f32
    %272 = vector.broadcast %cst_84 : f32 to vector<8x384xf32>
    %273 = arith.addf %272, %271 : vector<8x384xf32>
    %274 = arith.divf %272, %273 : vector<8x384xf32>
    %275 = vector.extract_strided_slice %274 {offsets = [0, 0], sizes = [8, 128], strides = [1, 1]} : vector<8x384xf32> to vector<8x128xf32>
    %276 = vector.extract_strided_slice %274 {offsets = [0, 128], sizes = [8, 128], strides = [1, 1]} : vector<8x384xf32> to vector<8x128xf32>
    %277 = vector.extract_strided_slice %274 {offsets = [0, 256], sizes = [8, 128], strides = [1, 1]} : vector<8x384xf32> to vector<8x128xf32>
    %278 = vector.extract_strided_slice %252 {offsets = [0, 384], sizes = [8, 128], strides = [1, 1]} : vector<8x512xf32> to vector<8x128xf32>
    %279 = math.tanh %278 : vector<8x128xf32>
    %280 = arith.mulf %276, %225 : vector<8x128xf32>
    %281 = arith.mulf %275, %279 : vector<8x128xf32>
    %282 = arith.addf %280, %281 : vector<8x128xf32>
    %283 = math.tanh %282 : vector<8x128xf32>
    %284 = arith.mulf %277, %283 : vector<8x128xf32>
    %285 = arith.index_cast %c4_i32 : i32 to index
    %c0_85 = arith.constant 0 : index
    %c0_86 = arith.constant 0 : index
    %286 = vector.load %arg5[%285, %c0_85, %c0_86] : memref<8x8x256xf32, #tpu.memory_space<vmem>>, vector<1x8x128xf32>
    %287 = vector.shape_cast %286 : vector<1x8x128xf32> to vector<8x128xf32>
    %288 = vector.shape_cast %268 : vector<8x128xf32> to vector<1x8x128xf32>
    tpu.vector_store %arg5[%285, %c0_85, %c0_86], %288 {strides = array<i32>} : memref<8x8x256xf32, #tpu.memory_space<vmem>>, vector<1x8x128xf32>,
    %289 = arith.index_cast %236 : i32 to index
    %c0_87 = arith.constant 0 : index
    %c128_88 = arith.constant 128 : index
    %290 = vector.load %arg5[%289, %c0_87, %c128_88] : memref<8x8x256xf32, #tpu.memory_space<vmem>>, vector<1x8x128xf32>
    %291 = vector.shape_cast %290 : vector<1x8x128xf32> to vector<8x128xf32>
    %292 = vector.shape_cast %284 : vector<8x128xf32> to vector<1x8x128xf32>
    tpu.vector_store %arg5[%289, %c0_87, %c128_88], %292 {strides = array<i32>} : memref<8x8x256xf32, #tpu.memory_space<vmem>>, vector<1x8x128xf32>,
    %c5_i32 = arith.constant 5 : i32
    %c7_i32_89 = arith.constant 7 : i32
    %293 = arith.subi %c7_i32_89, %c5_i32 : i32
    %c8_i32_90 = arith.constant 8 : i32
    %294 = arith.muli %c5_i32, %c8_i32_90 : i32
    %295 = tpu.assume_multiple %294, 8 : i32
    %c8_i32_91 = arith.constant 8 : i32
    %296 = arith.muli %293, %c8_i32_91 : i32
    %297 = tpu.assume_multiple %296, 8 : i32
    %298 = arith.index_cast %295 : i32 to index
    %c0_92 = arith.constant 0 : index
    %299 = vector.load %arg8[%298, %c0_92] : memref<64x1024xf32, #tpu.memory_space<vmem>>, vector<8x512xf32>
    %300 = arith.truncf %268 : vector<8x128xf32> to vector<8x128xbf16>
    %c0_93 = arith.constant 0 : index
    %c0_94 = arith.constant 0 : index
    %301 = vector.load %arg3[%c0_93, %c0_94] : memref<128x512xbf16, #tpu.memory_space<vmem>>, vector<128x512xbf16>
    %cst_95 = arith.constant dense<0.000000e+00> : vector<8x512xf32>
    %302 = tpu.matmul %300, %301, %cst_95 {dimension_numbers = #tpu.dot_dimension_numbers<[1], [0], [0], [1], [0, 0, 1, 1], [], []>} : vector<8x128xbf16>, vector<128x512xbf16>, vector<8x512xf32> -> vector<8x512xf32>
    %303 = arith.addf %299, %302 : vector<8x512xf32>
    %304 = arith.index_cast %297 : i32 to index
    %c512_96 = arith.constant 512 : index
    %305 = vector.load %arg8[%304, %c512_96] : memref<64x1024xf32, #tpu.memory_space<vmem>>, vector<8x512xf32>
    %306 = arith.truncf %284 : vector<8x128xf32> to vector<8x128xbf16>
    %c0_97 = arith.constant 0 : index
    %c0_98 = arith.constant 0 : index
    %307 = vector.load %arg4[%c0_97, %c0_98] : memref<128x512xbf16, #tpu.memory_space<vmem>>, vector<128x512xbf16>
    %cst_99 = arith.constant dense<0.000000e+00> : vector<8x512xf32>
    %308 = tpu.matmul %306, %307, %cst_99 {dimension_numbers = #tpu.dot_dimension_numbers<[1], [0], [0], [1], [0, 0, 1, 1], [], []>} : vector<8x128xbf16>, vector<128x512xbf16>, vector<8x512xf32> -> vector<8x512xf32>
    %309 = arith.addf %305, %308 : vector<8x512xf32>
    %310 = vector.extract_strided_slice %303 {offsets = [0, 0], sizes = [8, 384], strides = [1, 1]} : vector<8x512xf32> to vector<8x384xf32>
    %311 = arith.negf %310 : vector<8x384xf32>
    %312 = math.exp %311 : vector<8x384xf32>
    %cst_100 = arith.constant 1.000000e+00 : f32
    %313 = vector.broadcast %cst_100 : f32 to vector<8x384xf32>
    %314 = arith.addf %313, %312 : vector<8x384xf32>
    %315 = arith.divf %313, %314 : vector<8x384xf32>
    %316 = vector.extract_strided_slice %315 {offsets = [0, 0], sizes = [8, 128], strides = [1, 1]} : vector<8x384xf32> to vector<8x128xf32>
    %317 = vector.extract_strided_slice %315 {offsets = [0, 128], sizes = [8, 128], strides = [1, 1]} : vector<8x384xf32> to vector<8x128xf32>
    %318 = vector.extract_strided_slice %315 {offsets = [0, 256], sizes = [8, 128], strides = [1, 1]} : vector<8x384xf32> to vector<8x128xf32>
    %319 = vector.extract_strided_slice %303 {offsets = [0, 384], sizes = [8, 128], strides = [1, 1]} : vector<8x512xf32> to vector<8x128xf32>
    %320 = math.tanh %319 : vector<8x128xf32>
    %321 = arith.mulf %317, %266 : vector<8x128xf32>
    %322 = arith.mulf %316, %320 : vector<8x128xf32>
    %323 = arith.addf %321, %322 : vector<8x128xf32>
    %324 = math.tanh %323 : vector<8x128xf32>
    %325 = arith.mulf %318, %324 : vector<8x128xf32>
    %326 = vector.extract_strided_slice %309 {offsets = [0, 0], sizes = [8, 384], strides = [1, 1]} : vector<8x512xf32> to vector<8x384xf32>
    %327 = arith.negf %326 : vector<8x384xf32>
    %328 = math.exp %327 : vector<8x384xf32>
    %cst_101 = arith.constant 1.000000e+00 : f32
    %329 = vector.broadcast %cst_101 : f32 to vector<8x384xf32>
    %330 = arith.addf %329, %328 : vector<8x384xf32>
    %331 = arith.divf %329, %330 : vector<8x384xf32>
    %332 = vector.extract_strided_slice %331 {offsets = [0, 0], sizes = [8, 128], strides = [1, 1]} : vector<8x384xf32> to vector<8x128xf32>
    %333 = vector.extract_strided_slice %331 {offsets = [0, 128], sizes = [8, 128], strides = [1, 1]} : vector<8x384xf32> to vector<8x128xf32>
    %334 = vector.extract_strided_slice %331 {offsets = [0, 256], sizes = [8, 128], strides = [1, 1]} : vector<8x384xf32> to vector<8x128xf32>
    %335 = vector.extract_strided_slice %309 {offsets = [0, 384], sizes = [8, 128], strides = [1, 1]} : vector<8x512xf32> to vector<8x128xf32>
    %336 = math.tanh %335 : vector<8x128xf32>
    %337 = arith.mulf %333, %282 : vector<8x128xf32>
    %338 = arith.mulf %332, %336 : vector<8x128xf32>
    %339 = arith.addf %337, %338 : vector<8x128xf32>
    %340 = math.tanh %339 : vector<8x128xf32>
    %341 = arith.mulf %334, %340 : vector<8x128xf32>
    %342 = arith.index_cast %c5_i32 : i32 to index
    %c0_102 = arith.constant 0 : index
    %c0_103 = arith.constant 0 : index
    %343 = vector.load %arg5[%342, %c0_102, %c0_103] : memref<8x8x256xf32, #tpu.memory_space<vmem>>, vector<1x8x128xf32>
    %344 = vector.shape_cast %343 : vector<1x8x128xf32> to vector<8x128xf32>
    %345 = vector.shape_cast %325 : vector<8x128xf32> to vector<1x8x128xf32>
    tpu.vector_store %arg5[%342, %c0_102, %c0_103], %345 {strides = array<i32>} : memref<8x8x256xf32, #tpu.memory_space<vmem>>, vector<1x8x128xf32>,
    %346 = arith.index_cast %293 : i32 to index
    %c0_104 = arith.constant 0 : index
    %c128_105 = arith.constant 128 : index
    %347 = vector.load %arg5[%346, %c0_104, %c128_105] : memref<8x8x256xf32, #tpu.memory_space<vmem>>, vector<1x8x128xf32>
    %348 = vector.shape_cast %347 : vector<1x8x128xf32> to vector<8x128xf32>
    %349 = vector.shape_cast %341 : vector<8x128xf32> to vector<1x8x128xf32>
    tpu.vector_store %arg5[%346, %c0_104, %c128_105], %349 {strides = array<i32>} : memref<8x8x256xf32, #tpu.memory_space<vmem>>, vector<1x8x128xf32>,
    %c6_i32 = arith.constant 6 : i32
    %c7_i32_106 = arith.constant 7 : i32
    %350 = arith.subi %c7_i32_106, %c6_i32 : i32
    %c8_i32_107 = arith.constant 8 : i32
    %351 = arith.muli %c6_i32, %c8_i32_107 : i32
    %352 = tpu.assume_multiple %351, 8 : i32
    %c8_i32_108 = arith.constant 8 : i32
    %353 = arith.muli %350, %c8_i32_108 : i32
    %354 = tpu.assume_multiple %353, 8 : i32
    %355 = arith.index_cast %352 : i32 to index
    %c0_109 = arith.constant 0 : index
    %356 = vector.load %arg8[%355, %c0_109] : memref<64x1024xf32, #tpu.memory_space<vmem>>, vector<8x512xf32>
    %357 = arith.truncf %325 : vector<8x128xf32> to vector<8x128xbf16>
    %c0_110 = arith.constant 0 : index
    %c0_111 = arith.constant 0 : index
    %358 = vector.load %arg3[%c0_110, %c0_111] : memref<128x512xbf16, #tpu.memory_space<vmem>>, vector<128x512xbf16>
    %cst_112 = arith.constant dense<0.000000e+00> : vector<8x512xf32>
    %359 = tpu.matmul %357, %358, %cst_112 {dimension_numbers = #tpu.dot_dimension_numbers<[1], [0], [0], [1], [0, 0, 1, 1], [], []>} : vector<8x128xbf16>, vector<128x512xbf16>, vector<8x512xf32> -> vector<8x512xf32>
    %360 = arith.addf %356, %359 : vector<8x512xf32>
    %361 = arith.index_cast %354 : i32 to index
    %c512_113 = arith.constant 512 : index
    %362 = vector.load %arg8[%361, %c512_113] : memref<64x1024xf32, #tpu.memory_space<vmem>>, vector<8x512xf32>
    %363 = arith.truncf %341 : vector<8x128xf32> to vector<8x128xbf16>
    %c0_114 = arith.constant 0 : index
    %c0_115 = arith.constant 0 : index
    %364 = vector.load %arg4[%c0_114, %c0_115] : memref<128x512xbf16, #tpu.memory_space<vmem>>, vector<128x512xbf16>
    %cst_116 = arith.constant dense<0.000000e+00> : vector<8x512xf32>
    %365 = tpu.matmul %363, %364, %cst_116 {dimension_numbers = #tpu.dot_dimension_numbers<[1], [0], [0], [1], [0, 0, 1, 1], [], []>} : vector<8x128xbf16>, vector<128x512xbf16>, vector<8x512xf32> -> vector<8x512xf32>
    %366 = arith.addf %362, %365 : vector<8x512xf32>
    %367 = vector.extract_strided_slice %360 {offsets = [0, 0], sizes = [8, 384], strides = [1, 1]} : vector<8x512xf32> to vector<8x384xf32>
    %368 = arith.negf %367 : vector<8x384xf32>
    %369 = math.exp %368 : vector<8x384xf32>
    %cst_117 = arith.constant 1.000000e+00 : f32
    %370 = vector.broadcast %cst_117 : f32 to vector<8x384xf32>
    %371 = arith.addf %370, %369 : vector<8x384xf32>
    %372 = arith.divf %370, %371 : vector<8x384xf32>
    %373 = vector.extract_strided_slice %372 {offsets = [0, 0], sizes = [8, 128], strides = [1, 1]} : vector<8x384xf32> to vector<8x128xf32>
    %374 = vector.extract_strided_slice %372 {offsets = [0, 128], sizes = [8, 128], strides = [1, 1]} : vector<8x384xf32> to vector<8x128xf32>
    %375 = vector.extract_strided_slice %372 {offsets = [0, 256], sizes = [8, 128], strides = [1, 1]} : vector<8x384xf32> to vector<8x128xf32>
    %376 = vector.extract_strided_slice %360 {offsets = [0, 384], sizes = [8, 128], strides = [1, 1]} : vector<8x512xf32> to vector<8x128xf32>
    %377 = math.tanh %376 : vector<8x128xf32>
    %378 = arith.mulf %374, %323 : vector<8x128xf32>
    %379 = arith.mulf %373, %377 : vector<8x128xf32>
    %380 = arith.addf %378, %379 : vector<8x128xf32>
    %381 = math.tanh %380 : vector<8x128xf32>
    %382 = arith.mulf %375, %381 : vector<8x128xf32>
    %383 = vector.extract_strided_slice %366 {offsets = [0, 0], sizes = [8, 384], strides = [1, 1]} : vector<8x512xf32> to vector<8x384xf32>
    %384 = arith.negf %383 : vector<8x384xf32>
    %385 = math.exp %384 : vector<8x384xf32>
    %cst_118 = arith.constant 1.000000e+00 : f32
    %386 = vector.broadcast %cst_118 : f32 to vector<8x384xf32>
    %387 = arith.addf %386, %385 : vector<8x384xf32>
    %388 = arith.divf %386, %387 : vector<8x384xf32>
    %389 = vector.extract_strided_slice %388 {offsets = [0, 0], sizes = [8, 128], strides = [1, 1]} : vector<8x384xf32> to vector<8x128xf32>
    %390 = vector.extract_strided_slice %388 {offsets = [0, 128], sizes = [8, 128], strides = [1, 1]} : vector<8x384xf32> to vector<8x128xf32>
    %391 = vector.extract_strided_slice %388 {offsets = [0, 256], sizes = [8, 128], strides = [1, 1]} : vector<8x384xf32> to vector<8x128xf32>
    %392 = vector.extract_strided_slice %366 {offsets = [0, 384], sizes = [8, 128], strides = [1, 1]} : vector<8x512xf32> to vector<8x128xf32>
    %393 = math.tanh %392 : vector<8x128xf32>
    %394 = arith.mulf %390, %339 : vector<8x128xf32>
    %395 = arith.mulf %389, %393 : vector<8x128xf32>
    %396 = arith.addf %394, %395 : vector<8x128xf32>
    %397 = math.tanh %396 : vector<8x128xf32>
    %398 = arith.mulf %391, %397 : vector<8x128xf32>
    %399 = arith.index_cast %c6_i32 : i32 to index
    %c0_119 = arith.constant 0 : index
    %c0_120 = arith.constant 0 : index
    %400 = vector.load %arg5[%399, %c0_119, %c0_120] : memref<8x8x256xf32, #tpu.memory_space<vmem>>, vector<1x8x128xf32>
    %401 = vector.shape_cast %400 : vector<1x8x128xf32> to vector<8x128xf32>
    %402 = vector.shape_cast %382 : vector<8x128xf32> to vector<1x8x128xf32>
    tpu.vector_store %arg5[%399, %c0_119, %c0_120], %402 {strides = array<i32>} : memref<8x8x256xf32, #tpu.memory_space<vmem>>, vector<1x8x128xf32>,
    %403 = arith.index_cast %350 : i32 to index
    %c0_121 = arith.constant 0 : index
    %c128_122 = arith.constant 128 : index
    %404 = vector.load %arg5[%403, %c0_121, %c128_122] : memref<8x8x256xf32, #tpu.memory_space<vmem>>, vector<1x8x128xf32>
    %405 = vector.shape_cast %404 : vector<1x8x128xf32> to vector<8x128xf32>
    %406 = vector.shape_cast %398 : vector<8x128xf32> to vector<1x8x128xf32>
    tpu.vector_store %arg5[%403, %c0_121, %c128_122], %406 {strides = array<i32>} : memref<8x8x256xf32, #tpu.memory_space<vmem>>, vector<1x8x128xf32>,
    %c7_i32_123 = arith.constant 7 : i32
    %c7_i32_124 = arith.constant 7 : i32
    %407 = arith.subi %c7_i32_124, %c7_i32_123 : i32
    %c8_i32_125 = arith.constant 8 : i32
    %408 = arith.muli %c7_i32_123, %c8_i32_125 : i32
    %409 = tpu.assume_multiple %408, 8 : i32
    %c8_i32_126 = arith.constant 8 : i32
    %410 = arith.muli %407, %c8_i32_126 : i32
    %411 = tpu.assume_multiple %410, 8 : i32
    %412 = arith.index_cast %409 : i32 to index
    %c0_127 = arith.constant 0 : index
    %413 = vector.load %arg8[%412, %c0_127] : memref<64x1024xf32, #tpu.memory_space<vmem>>, vector<8x512xf32>
    %414 = arith.truncf %382 : vector<8x128xf32> to vector<8x128xbf16>
    %c0_128 = arith.constant 0 : index
    %c0_129 = arith.constant 0 : index
    %415 = vector.load %arg3[%c0_128, %c0_129] : memref<128x512xbf16, #tpu.memory_space<vmem>>, vector<128x512xbf16>
    %cst_130 = arith.constant dense<0.000000e+00> : vector<8x512xf32>
    %416 = tpu.matmul %414, %415, %cst_130 {dimension_numbers = #tpu.dot_dimension_numbers<[1], [0], [0], [1], [0, 0, 1, 1], [], []>} : vector<8x128xbf16>, vector<128x512xbf16>, vector<8x512xf32> -> vector<8x512xf32>
    %417 = arith.addf %413, %416 : vector<8x512xf32>
    %418 = arith.index_cast %411 : i32 to index
    %c512_131 = arith.constant 512 : index
    %419 = vector.load %arg8[%418, %c512_131] : memref<64x1024xf32, #tpu.memory_space<vmem>>, vector<8x512xf32>
    %420 = arith.truncf %398 : vector<8x128xf32> to vector<8x128xbf16>
    %c0_132 = arith.constant 0 : index
    %c0_133 = arith.constant 0 : index
    %421 = vector.load %arg4[%c0_132, %c0_133] : memref<128x512xbf16, #tpu.memory_space<vmem>>, vector<128x512xbf16>
    %cst_134 = arith.constant dense<0.000000e+00> : vector<8x512xf32>
    %422 = tpu.matmul %420, %421, %cst_134 {dimension_numbers = #tpu.dot_dimension_numbers<[1], [0], [0], [1], [0, 0, 1, 1], [], []>} : vector<8x128xbf16>, vector<128x512xbf16>, vector<8x512xf32> -> vector<8x512xf32>
    %423 = arith.addf %419, %422 : vector<8x512xf32>
    %424 = vector.extract_strided_slice %417 {offsets = [0, 0], sizes = [8, 384], strides = [1, 1]} : vector<8x512xf32> to vector<8x384xf32>
    %425 = arith.negf %424 : vector<8x384xf32>
    %426 = math.exp %425 : vector<8x384xf32>
    %cst_135 = arith.constant 1.000000e+00 : f32
    %427 = vector.broadcast %cst_135 : f32 to vector<8x384xf32>
    %428 = arith.addf %427, %426 : vector<8x384xf32>
    %429 = arith.divf %427, %428 : vector<8x384xf32>
    %430 = vector.extract_strided_slice %429 {offsets = [0, 0], sizes = [8, 128], strides = [1, 1]} : vector<8x384xf32> to vector<8x128xf32>
    %431 = vector.extract_strided_slice %429 {offsets = [0, 128], sizes = [8, 128], strides = [1, 1]} : vector<8x384xf32> to vector<8x128xf32>
    %432 = vector.extract_strided_slice %429 {offsets = [0, 256], sizes = [8, 128], strides = [1, 1]} : vector<8x384xf32> to vector<8x128xf32>
    %433 = vector.extract_strided_slice %417 {offsets = [0, 384], sizes = [8, 128], strides = [1, 1]} : vector<8x512xf32> to vector<8x128xf32>
    %434 = math.tanh %433 : vector<8x128xf32>
    %435 = arith.mulf %431, %380 : vector<8x128xf32>
    %436 = arith.mulf %430, %434 : vector<8x128xf32>
    %437 = arith.addf %435, %436 : vector<8x128xf32>
    %438 = math.tanh %437 : vector<8x128xf32>
    %439 = arith.mulf %432, %438 : vector<8x128xf32>
    %440 = vector.extract_strided_slice %423 {offsets = [0, 0], sizes = [8, 384], strides = [1, 1]} : vector<8x512xf32> to vector<8x384xf32>
    %441 = arith.negf %440 : vector<8x384xf32>
    %442 = math.exp %441 : vector<8x384xf32>
    %cst_136 = arith.constant 1.000000e+00 : f32
    %443 = vector.broadcast %cst_136 : f32 to vector<8x384xf32>
    %444 = arith.addf %443, %442 : vector<8x384xf32>
    %445 = arith.divf %443, %444 : vector<8x384xf32>
    %446 = vector.extract_strided_slice %445 {offsets = [0, 0], sizes = [8, 128], strides = [1, 1]} : vector<8x384xf32> to vector<8x128xf32>
    %447 = vector.extract_strided_slice %445 {offsets = [0, 128], sizes = [8, 128], strides = [1, 1]} : vector<8x384xf32> to vector<8x128xf32>
    %448 = vector.extract_strided_slice %445 {offsets = [0, 256], sizes = [8, 128], strides = [1, 1]} : vector<8x384xf32> to vector<8x128xf32>
    %449 = vector.extract_strided_slice %423 {offsets = [0, 384], sizes = [8, 128], strides = [1, 1]} : vector<8x512xf32> to vector<8x128xf32>
    %450 = math.tanh %449 : vector<8x128xf32>
    %451 = arith.mulf %447, %396 : vector<8x128xf32>
    %452 = arith.mulf %446, %450 : vector<8x128xf32>
    %453 = arith.addf %451, %452 : vector<8x128xf32>
    %454 = math.tanh %453 : vector<8x128xf32>
    %455 = arith.mulf %448, %454 : vector<8x128xf32>
    %456 = arith.index_cast %c7_i32_123 : i32 to index
    %c0_137 = arith.constant 0 : index
    %c0_138 = arith.constant 0 : index
    %457 = vector.load %arg5[%456, %c0_137, %c0_138] : memref<8x8x256xf32, #tpu.memory_space<vmem>>, vector<1x8x128xf32>
    %458 = vector.shape_cast %457 : vector<1x8x128xf32> to vector<8x128xf32>
    %459 = vector.shape_cast %439 : vector<8x128xf32> to vector<1x8x128xf32>
    tpu.vector_store %arg5[%456, %c0_137, %c0_138], %459 {strides = array<i32>} : memref<8x8x256xf32, #tpu.memory_space<vmem>>, vector<1x8x128xf32>,
    %460 = arith.index_cast %407 : i32 to index
    %c0_139 = arith.constant 0 : index
    %c128_140 = arith.constant 128 : index
    %461 = vector.load %arg5[%460, %c0_139, %c128_140] : memref<8x8x256xf32, #tpu.memory_space<vmem>>, vector<1x8x128xf32>
    %462 = vector.shape_cast %461 : vector<1x8x128xf32> to vector<8x128xf32>
    %463 = vector.shape_cast %455 : vector<8x128xf32> to vector<1x8x128xf32>
    tpu.vector_store %arg5[%460, %c0_139, %c128_140], %463 {strides = array<i32>} : memref<8x8x256xf32, #tpu.memory_space<vmem>>, vector<1x8x128xf32>,
    %c8_i32_141 = arith.constant 8 : i32
    %c0_142 = arith.constant 0 : index
    %c0_143 = arith.constant 0 : index
    %464 = vector.load %arg6[%c0_142, %c0_143] : memref<8x256xf32, #tpu.memory_space<vmem>>, vector<8x128xf32>
    tpu.vector_store %arg6[%c0_142, %c0_143], %439 {strides = array<i32>} : memref<8x256xf32, #tpu.memory_space<vmem>>, vector<8x128xf32>,
    %c0_144 = arith.constant 0 : index
    %c128_145 = arith.constant 128 : index
    %465 = vector.load %arg6[%c0_144, %c128_145] : memref<8x256xf32, #tpu.memory_space<vmem>>, vector<8x128xf32>
    tpu.vector_store %arg6[%c0_144, %c128_145], %455 {strides = array<i32>} : memref<8x256xf32, #tpu.memory_space<vmem>>, vector<8x128xf32>,
    %c0_146 = arith.constant 0 : index
    %c0_147 = arith.constant 0 : index
    %466 = vector.load %arg7[%c0_146, %c0_147] : memref<8x256xf32, #tpu.memory_space<vmem>>, vector<8x128xf32>
    tpu.vector_store %arg7[%c0_146, %c0_147], %437 {strides = array<i32>} : memref<8x256xf32, #tpu.memory_space<vmem>>, vector<8x128xf32>,
    %c0_148 = arith.constant 0 : index
    %c128_149 = arith.constant 128 : index
    %467 = vector.load %arg7[%c0_148, %c128_149] : memref<8x256xf32, #tpu.memory_space<vmem>>, vector<8x128xf32>
    tpu.vector_store %arg7[%c0_148, %c128_149], %453 {strides = array<i32>} : memref<8x256xf32, #tpu.memory_space<vmem>>, vector<8x128xf32>,
    return
  }
}

</mosaic_0001>

<llo_original>
// kernel: simple_lstm_encoder_forward.1
$region0: #{simple_lstm_encoder_forward.1}
  #allocation0 [shape = 'u32[]', space=smem, size = 0x4, offset = 0x4, fixed_abs, tag = 'smem constant byte address 0x4 - core index']
  #allocation1 [shape = 'u32[72,128]{1,0:T(1,128)}', space=vmem, size = 0x9000, scoped, tag = 'internal scratch']
  #allocation2 [shape = 'f32[64,1024]{1,0:T(8,128)}', space=vmem, size = 0x40000, scoped, tag = 'scratch operand']
  %s0 = inlined_call_operand.vmem [shape: bf16[64,128], index: 0, kind: input, shape index: {}]
  %s1 = inlined_call_operand.vmem [shape: bf16[128,1024], index: 1, kind: input, shape index: {}]
  %s2 = inlined_call_operand.vmem [shape: f32[1,1024], index: 2, kind: input, shape index: {}]
  %s3 = inlined_call_operand.vmem [shape: bf16[128,512], index: 3, kind: input, shape index: {}]
  %s4 = inlined_call_operand.vmem [shape: bf16[128,512], index: 4, kind: input, shape index: {}]
  %s5 = inlined_call_operand.vmem [shape: f32[8,8,256], index: 5, kind: output, shape index: {0}]
  %s6 = inlined_call_operand.vmem [shape: f32[8,256], index: 6, kind: output, shape index: {1}]
  %s7 = inlined_call_operand.vmem [shape: f32[8,256], index: 7, kind: output, shape index: {2}]
  %8 = xla_tuple %s5, %s6, %s7
  %s9 = sld [smem:[#allocation0]]
  $region46: #{simple_lstm_encoder_forward.1} parent=0
    _
  %s11 = ssub.s32 1, %s9
  %s12 = scalar_select 0, %s11, %s9
  // Predicated region
  $region2: #{simple_lstm_encoder_forward.1} parent=0 // pred_check
    _
  $region3: #{simple_lstm_encoder_forward.1} parent=0 // pred_check_branch
    %14 = sbr.rel (0) target = $region5
  $region4: #{simple_lstm_encoder_forward.1} parent=0 // pred_region
    _
  $region5: #{simple_lstm_encoder_forward.1} parent=0 // pred_fallthru
    _
  // Predicated region
  $region6: #{simple_lstm_encoder_forward.1} parent=0 // pred_check
    _
  $region7: #{simple_lstm_encoder_forward.1} parent=0 // pred_check_branch
    %16 = sbr.rel (0) target = $region9
  $region8: #{simple_lstm_encoder_forward.1} parent=0 // pred_region
    _
  $region9: #{simple_lstm_encoder_forward.1} parent=0 // pred_fallthru
    _
  // Predicated region
  $region10: #{simple_lstm_encoder_forward.1} parent=0 // pred_check
    _
  $region11: #{simple_lstm_encoder_forward.1} parent=0 // pred_check_branch
    %18 = sbr.rel (0) target = $region13
  $region12: #{simple_lstm_encoder_forward.1} parent=0 // pred_region
    _
  $region13: #{simple_lstm_encoder_forward.1} parent=0 // pred_fallthru
    _
  // Predicated region
  $region14: #{simple_lstm_encoder_forward.1} parent=0 // pred_check
    _
  $region15: #{simple_lstm_encoder_forward.1} parent=0 // pred_check_branch
    %20 = sbr.rel (0) target = $region17
  $region16: #{simple_lstm_encoder_forward.1} parent=0 // pred_region
    _
  $region17: #{simple_lstm_encoder_forward.1} parent=0 // pred_fallthru
    _
  // Predicated region
  $region18: #{simple_lstm_encoder_forward.1} parent=0 // pred_check
    _
  $region19: #{simple_lstm_encoder_forward.1} parent=0 // pred_check_branch
    %22 = sbr.rel (0) target = $region21
  $region20: #{simple_lstm_encoder_forward.1} parent=0 // pred_region
    _
  $region21: #{simple_lstm_encoder_forward.1} parent=0 // pred_fallthru
    _
  %v24 = vld [vmem:[%s0] sm:$0xf]
  %v25 = vld [vmem:[%s0 + $0x4] sm:$0xf]
  %v26 = vld [vmem:[%s0 + $0x8] sm:$0xf]
  %v27 = vld [vmem:[%s0 + $0xc] sm:$0xf]
  %v28 = vld [vmem:[%s0 + $0x10] sm:$0xf]
  %v29 = vld [vmem:[%s0 + $0x14] sm:$0xf]
  %v30 = vld [vmem:[%s0 + $0x18] sm:$0xf]
  %v31 = vld [vmem:[%s0 + $0x1c] sm:$0xf]
  %v32 = vld [vmem:[%s1] sm:$0xff]
  %v33 = vld [vmem:[%s1 + $0x8] sm:$0xff]
  %v34 = vld [vmem:[%s1 + $0x10] sm:$0xff]
  %v35 = vld [vmem:[%s1 + $0x18] sm:$0xff]
  %v36 = vld [vmem:[%s1 + $0x20] sm:$0xff]
  %v37 = vld [vmem:[%s1 + $0x28] sm:$0xff]
  %v38 = vld [vmem:[%s1 + $0x30] sm:$0xff]
  %v39 = vld [vmem:[%s1 + $0x38] sm:$0xff]
  %v40 = vld [vmem:[%s1 + $0x40] sm:$0xff]
  %v41 = vld [vmem:[%s1 + $0x48] sm:$0xff]
  %v42 = vld [vmem:[%s1 + $0x50] sm:$0xff]
  %v43 = vld [vmem:[%s1 + $0x58] sm:$0xff]
  %v44 = vld [vmem:[%s1 + $0x60] sm:$0xff]
  %v45 = vld [vmem:[%s1 + $0x68] sm:$0xff]
  %v46 = vld [vmem:[%s1 + $0x70] sm:$0xff]
  %v47 = vld [vmem:[%s1 + $0x78] sm:$0xff]
  %v48 = vld [vmem:[%s1 + $0x80] sm:$0xff]
  %v49 = vld [vmem:[%s1 + $0x88] sm:$0xff]
  %v50 = vld [vmem:[%s1 + $0x90] sm:$0xff]
  %v51 = vld [vmem:[%s1 + $0x98] sm:$0xff]
  %v52 = vld [vmem:[%s1 + $0xa0] sm:$0xff]
  %v53 = vld [vmem:[%s1 + $0xa8] sm:$0xff]
  %v54 = vld [vmem:[%s1 + $0xb0] sm:$0xff]
  %v55 = vld [vmem:[%s1 + $0xb8] sm:$0xff]
  %v56 = vld [vmem:[%s1 + $0xc0] sm:$0xff]
  %v57 = vld [vmem:[%s1 + $0xc8] sm:$0xff]
  %v58 = vld [vmem:[%s1 + $0xd0] sm:$0xff]
  %v59 = vld [vmem:[%s1 + $0xd8] sm:$0xff]
  %v60 = vld [vmem:[%s1 + $0xe0] sm:$0xff]
  %v61 = vld [vmem:[%s1 + $0xe8] sm:$0xff]
  %v62 = vld [vmem:[%s1 + $0xf0] sm:$0xff]
  %v63 = vld [vmem:[%s1 + $0xf8] sm:$0xff]
  %v64 = vld [vmem:[%s1 + $0x100] sm:$0xff]
  %v65 = vld [vmem:[%s1 + $0x108] sm:$0xff]
  %v66 = vld [vmem:[%s1 + $0x110] sm:$0xff]
  %v67 = vld [vmem:[%s1 + $0x118] sm:$0xff]
  %v68 = vld [vmem:[%s1 + $0x120] sm:$0xff]
  %v69 = vld [vmem:[%s1 + $0x128] sm:$0xff]
  %v70 = vld [vmem:[%s1 + $0x130] sm:$0xff]
  %v71 = vld [vmem:[%s1 + $0x138] sm:$0xff]
  %v72 = vld [vmem:[%s1 + $0x140] sm:$0xff]
  %v73 = vld [vmem:[%s1 + $0x148] sm:$0xff]
  %v74 = vld [vmem:[%s1 + $0x150] sm:$0xff]
  %v75 = vld [vmem:[%s1 + $0x158] sm:$0xff]
  %v76 = vld [vmem:[%s1 + $0x160] sm:$0xff]
  %v77 = vld [vmem:[%s1 + $0x168] sm:$0xff]
  %v78 = vld [vmem:[%s1 + $0x170] sm:$0xff]
  %v79 = vld [vmem:[%s1 + $0x178] sm:$0xff]
  %v80 = vld [vmem:[%s1 + $0x180] sm:$0xff]
  %v81 = vld [vmem:[%s1 + $0x188] sm:$0xff]
  %v82 = vld [vmem:[%s1 + $0x190] sm:$0xff]
  %v83 = vld [vmem:[%s1 + $0x198] sm:$0xff]
  %v84 = vld [vmem:[%s1 + $0x1a0] sm:$0xff]
  %v85 = vld [vmem:[%s1 + $0x1a8] sm:$0xff]
  %v86 = vld [vmem:[%s1 + $0x1b0] sm:$0xff]
  %v87 = vld [vmem:[%s1 + $0x1b8] sm:$0xff]
  %v88 = vld [vmem:[%s1 + $0x1c0] sm:$0xff]
  %v89 = vld [vmem:[%s1 + $0x1c8] sm:$0xff]
  %v90 = vld [vmem:[%s1 + $0x1d0] sm:$0xff]
  %v91 = vld [vmem:[%s1 + $0x1d8] sm:$0xff]
  %v92 = vld [vmem:[%s1 + $0x1e0] sm:$0xff]
  %v93 = vld [vmem:[%s1 + $0x1e8] sm:$0xff]
  %v94 = vld [vmem:[%s1 + $0x1f0] sm:$0xff]
  %v95 = vld [vmem:[%s1 + $0x1f8] sm:$0xff]
  %v96 = vld [vmem:[%s2] sm:$0xff]
  %v98 = vperm.slane %v96, 0
  %v99 = vperm.slane %v96, 1
  %v100 = vperm.slane %v96, 2
  %v101 = vperm.slane %v96, 3
  %v102 = vperm.slane %v96, 4
  %v103 = vperm.slane %v96, 5
  %v104 = vperm.slane %v96, 6
  %v105 = vperm.slane %v96, 7
  %v122 = vunpack.c.l.b16 %v24
  %v123 = vunpack.c.l.b16 %v25
  %v124 = vunpack.c.l.b16 %v26
  %v125 = vunpack.c.l.b16 %v27
  %v126 = vunpack.c.l.b16 %v28
  %v127 = vunpack.c.l.b16 %v29
  %v128 = vunpack.c.l.b16 %v30
  %v129 = vunpack.c.l.b16 %v31
  %v130 = vpack.c.b16 %v123, %v122
  %v131 = vpack.c.b16 %v125, %v124
  %v132 = vpack.c.b16 %v127, %v126
  %v133 = vpack.c.b16 %v129, %v128
  %v202 = vunpack.c.l.b16 %v32
  %v203 = vunpack.c.h.b16 %v32
  %v204 = vunpack.c.l.b16 %v33
  %v205 = vunpack.c.h.b16 %v33
  %v206 = vunpack.c.l.b16 %v34
  %v207 = vunpack.c.h.b16 %v34
  %v208 = vunpack.c.l.b16 %v35
  %v209 = vunpack.c.h.b16 %v35
  %v210 = vunpack.c.l.b16 %v36
  %v211 = vunpack.c.h.b16 %v36
  %v212 = vunpack.c.l.b16 %v37
  %v213 = vunpack.c.h.b16 %v37
  %v214 = vunpack.c.l.b16 %v38
  %v215 = vunpack.c.h.b16 %v38
  %v216 = vunpack.c.l.b16 %v39
  %v217 = vunpack.c.h.b16 %v39
  %v218 = vunpack.c.l.b16 %v40
  %v219 = vunpack.c.h.b16 %v40
  %v220 = vunpack.c.l.b16 %v41
  %v221 = vunpack.c.h.b16 %v41
  %v222 = vunpack.c.l.b16 %v42
  %v223 = vunpack.c.h.b16 %v42
  %v224 = vunpack.c.l.b16 %v43
  %v225 = vunpack.c.h.b16 %v43
  %v226 = vunpack.c.l.b16 %v44
  %v227 = vunpack.c.h.b16 %v44
  %v228 = vunpack.c.l.b16 %v45
  %v229 = vunpack.c.h.b16 %v45
  %v230 = vunpack.c.l.b16 %v46
  %v231 = vunpack.c.h.b16 %v46
  %v232 = vunpack.c.l.b16 %v47
  %v233 = vunpack.c.h.b16 %v47
  %v234 = vunpack.c.l.b16 %v48
  %v235 = vunpack.c.h.b16 %v48
  %v236 = vunpack.c.l.b16 %v49
  %v237 = vunpack.c.h.b16 %v49
  %v238 = vunpack.c.l.b16 %v50
  %v239 = vunpack.c.h.b16 %v50
  %v240 = vunpack.c.l.b16 %v51
  %v241 = vunpack.c.h.b16 %v51
  %v242 = vunpack.c.l.b16 %v52
  %v243 = vunpack.c.h.b16 %v52
  %v244 = vunpack.c.l.b16 %v53
  %v245 = vunpack.c.h.b16 %v53
  %v246 = vunpack.c.l.b16 %v54
  %v247 = vunpack.c.h.b16 %v54
  %v248 = vunpack.c.l.b16 %v55
  %v249 = vunpack.c.h.b16 %v55
  %v250 = vunpack.c.l.b16 %v56
  %v251 = vunpack.c.h.b16 %v56
  %v252 = vunpack.c.l.b16 %v57
  %v253 = vunpack.c.h.b16 %v57
  %v254 = vunpack.c.l.b16 %v58
  %v255 = vunpack.c.h.b16 %v58
  %v256 = vunpack.c.l.b16 %v59
  %v257 = vunpack.c.h.b16 %v59
  %v258 = vunpack.c.l.b16 %v60
  %v259 = vunpack.c.h.b16 %v60
  %v260 = vunpack.c.l.b16 %v61
  %v261 = vunpack.c.h.b16 %v61
  %v262 = vunpack.c.l.b16 %v62
  %v263 = vunpack.c.h.b16 %v62
  %v264 = vunpack.c.l.b16 %v63
  %v265 = vunpack.c.h.b16 %v63
  %v266 = vunpack.c.l.b16 %v64
  %v267 = vunpack.c.h.b16 %v64
  %v268 = vunpack.c.l.b16 %v65
  %v269 = vunpack.c.h.b16 %v65
  %v270 = vunpack.c.l.b16 %v66
  %v271 = vunpack.c.h.b16 %v66
  %v272 = vunpack.c.l.b16 %v67
  %v273 = vunpack.c.h.b16 %v67
  %v274 = vunpack.c.l.b16 %v68
  %v275 = vunpack.c.h.b16 %v68
  %v276 = vunpack.c.l.b16 %v69
  %v277 = vunpack.c.h.b16 %v69
  %v278 = vunpack.c.l.b16 %v70
  %v279 = vunpack.c.h.b16 %v70
  %v280 = vunpack.c.l.b16 %v71
  %v281 = vunpack.c.h.b16 %v71
  %v282 = vunpack.c.l.b16 %v72
  %v283 = vunpack.c.h.b16 %v72
  %v284 = vunpack.c.l.b16 %v73
  %v285 = vunpack.c.h.b16 %v73
  %v286 = vunpack.c.l.b16 %v74
  %v287 = vunpack.c.h.b16 %v74
  %v288 = vunpack.c.l.b16 %v75
  %v289 = vunpack.c.h.b16 %v75
  %v290 = vunpack.c.l.b16 %v76
  %v291 = vunpack.c.h.b16 %v76
  %v292 = vunpack.c.l.b16 %v77
  %v293 = vunpack.c.h.b16 %v77
  %v294 = vunpack.c.l.b16 %v78
  %v295 = vunpack.c.h.b16 %v78
  %v296 = vunpack.c.l.b16 %v79
  %v297 = vunpack.c.h.b16 %v79
  %v298 = vunpack.c.l.b16 %v80
  %v299 = vunpack.c.h.b16 %v80
  %v300 = vunpack.c.l.b16 %v81
  %v301 = vunpack.c.h.b16 %v81
  %v302 = vunpack.c.l.b16 %v82
  %v303 = vunpack.c.h.b16 %v82
  %v304 = vunpack.c.l.b16 %v83
  %v305 = vunpack.c.h.b16 %v83
  %v306 = vunpack.c.l.b16 %v84
  %v307 = vunpack.c.h.b16 %v84
  %v308 = vunpack.c.l.b16 %v85
  %v309 = vunpack.c.h.b16 %v85
  %v310 = vunpack.c.l.b16 %v86
  %v311 = vunpack.c.h.b16 %v86
  %v312 = vunpack.c.l.b16 %v87
  %v313 = vunpack.c.h.b16 %v87
  %v314 = vunpack.c.l.b16 %v88
  %v315 = vunpack.c.h.b16 %v88
  %v316 = vunpack.c.l.b16 %v89
  %v317 = vunpack.c.h.b16 %v89
  %v318 = vunpack.c.l.b16 %v90
  %v319 = vunpack.c.h.b16 %v90
  %v320 = vunpack.c.l.b16 %v91
  %v321 = vunpack.c.h.b16 %v91
  %v322 = vunpack.c.l.b16 %v92
  %v323 = vunpack.c.h.b16 %v92
  %v324 = vunpack.c.l.b16 %v93
  %v325 = vunpack.c.h.b16 %v93
  %v326 = vunpack.c.l.b16 %v94
  %v327 = vunpack.c.h.b16 %v94
  %v328 = vunpack.c.l.b16 %v95
  %v329 = vunpack.c.h.b16 %v95
  %v330 = vpack.c.b16 %v210, %v202
  %v331 = vpack.c.b16 %v211, %v203
  %v332 = vpack.c.b16 %v212, %v204
  %v333 = vpack.c.b16 %v213, %v205
  %v334 = vpack.c.b16 %v214, %v206
  %v335 = vpack.c.b16 %v215, %v207
  %v336 = vpack.c.b16 %v216, %v208
  %v337 = vpack.c.b16 %v217, %v209
  %v338 = vpack.c.b16 %v226, %v218
  %v339 = vpack.c.b16 %v227, %v219
  %v340 = vpack.c.b16 %v228, %v220
  %v341 = vpack.c.b16 %v229, %v221
  %v342 = vpack.c.b16 %v230, %v222
  %v343 = vpack.c.b16 %v231, %v223
  %v344 = vpack.c.b16 %v232, %v224
  %v345 = vpack.c.b16 %v233, %v225
  %v346 = vpack.c.b16 %v242, %v234
  %v347 = vpack.c.b16 %v243, %v235
  %v348 = vpack.c.b16 %v244, %v236
  %v349 = vpack.c.b16 %v245, %v237
  %v350 = vpack.c.b16 %v246, %v238
  %v351 = vpack.c.b16 %v247, %v239
  %v352 = vpack.c.b16 %v248, %v240
  %v353 = vpack.c.b16 %v249, %v241
  %v354 = vpack.c.b16 %v258, %v250
  %v355 = vpack.c.b16 %v259, %v251
  %v356 = vpack.c.b16 %v260, %v252
  %v357 = vpack.c.b16 %v261, %v253
  %v358 = vpack.c.b16 %v262, %v254
  %v359 = vpack.c.b16 %v263, %v255
  %v360 = vpack.c.b16 %v264, %v256
  %v361 = vpack.c.b16 %v265, %v257
  %v362 = vpack.c.b16 %v274, %v266
  %v363 = vpack.c.b16 %v275, %v267
  %v364 = vpack.c.b16 %v276, %v268
  %v365 = vpack.c.b16 %v277, %v269
  %v366 = vpack.c.b16 %v278, %v270
  %v367 = vpack.c.b16 %v279, %v271
  %v368 = vpack.c.b16 %v280, %v272
  %v369 = vpack.c.b16 %v281, %v273
  %v370 = vpack.c.b16 %v290, %v282
  %v371 = vpack.c.b16 %v291, %v283
  %v372 = vpack.c.b16 %v292, %v284
  %v373 = vpack.c.b16 %v293, %v285
  %v374 = vpack.c.b16 %v294, %v286
  %v375 = vpack.c.b16 %v295, %v287
  %v376 = vpack.c.b16 %v296, %v288
  %v377 = vpack.c.b16 %v297, %v289
  %v378 = vpack.c.b16 %v306, %v298
  %v379 = vpack.c.b16 %v307, %v299
  %v380 = vpack.c.b16 %v308, %v300
  %v381 = vpack.c.b16 %v309, %v301
  %v382 = vpack.c.b16 %v310, %v302
  %v383 = vpack.c.b16 %v311, %v303
  %v384 = vpack.c.b16 %v312, %v304
  %v385 = vpack.c.b16 %v313, %v305
  %v386 = vpack.c.b16 %v322, %v314
  %v387 = vpack.c.b16 %v323, %v315
  %v388 = vpack.c.b16 %v324, %v316
  %v389 = vpack.c.b16 %v325, %v317
  %v390 = vpack.c.b16 %v326, %v318
  %v391 = vpack.c.b16 %v327, %v319
  %v392 = vpack.c.b16 %v328, %v320
  %v393 = vpack.c.b16 %v329, %v321
  %458 = vmatpush.bf16.msra.mxu0 %v386
  %459 = vmatpush.bf16.msra.mxu0 %v378
  %460 = vmatpush.bf16.msra.mxu0 %v370
  %461 = vmatpush.bf16.msra.mxu0 %v362
  %462 = vmatpush.bf16.msra.mxu0 %v354
  %463 = vmatpush.bf16.msra.mxu0 %v346
  %464 = vmatpush.bf16.msra.mxu0 %v338
  %465 = vmatpush.bf16.msra.mxu0 %v330
  %466 = vmatmul.bf16.gmra.mxu0 %v130
  %v467 = vpop.f32.mrf.mxu0
  %v468 = vadd.f32 %v98, %v467
  %v469 = vpop.f32.mrf.mxu0
  %v470 = vadd.f32 %v98, %v469
  %471 = vmatmul.bf16.gmra.mxu0 %v131
  %v472 = vpop.f32.mrf.mxu0
  %v473 = vadd.f32 %v98, %v472
  %v474 = vpop.f32.mrf.mxu0
  %v475 = vadd.f32 %v98, %v474
  %476 = vmatmul.bf16.gmra.mxu0 %v132
  %v477 = vpop.f32.mrf.mxu0
  %v478 = vadd.f32 %v98, %v477
  %v479 = vpop.f32.mrf.mxu0
  %v480 = vadd.f32 %v98, %v479
  %481 = vmatmul.bf16.gmra.mxu0 %v133
  %v482 = vpop.f32.mrf.mxu0
  %v483 = vadd.f32 %v98, %v482
  %v484 = vpop.f32.mrf.mxu0
  %v485 = vadd.f32 %v98, %v484
  %486 = vdwg.mxu0
  %487 = vmatpush.bf16.msra.mxu0 %v387
  %488 = vmatpush.bf16.msra.mxu0 %v379
  %489 = vmatpush.bf16.msra.mxu0 %v371
  %490 = vmatpush.bf16.msra.mxu0 %v363
  %491 = vmatpush.bf16.msra.mxu0 %v355
  %492 = vmatpush.bf16.msra.mxu0 %v347
  %493 = vmatpush.bf16.msra.mxu0 %v339
  %494 = vmatpush.bf16.msra.mxu0 %v331
  %495 = vmatmul.bf16.gmra.mxu0 %v130
  %v496 = vpop.f32.mrf.mxu0
  %v497 = vadd.f32 %v99, %v496
  %v498 = vpop.f32.mrf.mxu0
  %v499 = vadd.f32 %v99, %v498
  %500 = vmatmul.bf16.gmra.mxu0 %v131
  %v501 = vpop.f32.mrf.mxu0
  %v502 = vadd.f32 %v99, %v501
  %v503 = vpop.f32.mrf.mxu0
  %v504 = vadd.f32 %v99, %v503
  %505 = vmatmul.bf16.gmra.mxu0 %v132
  %v506 = vpop.f32.mrf.mxu0
  %v507 = vadd.f32 %v99, %v506
  %v508 = vpop.f32.mrf.mxu0
  %v509 = vadd.f32 %v99, %v508
  %510 = vmatmul.bf16.gmra.mxu0 %v133
  %v511 = vpop.f32.mrf.mxu0
  %v512 = vadd.f32 %v99, %v511
  %v513 = vpop.f32.mrf.mxu0
  %v514 = vadd.f32 %v99, %v513
  %515 = vdwg.mxu0
  %516 = vmatpush.bf16.msra.mxu0 %v388
  %517 = vmatpush.bf16.msra.mxu0 %v380
  %518 = vmatpush.bf16.msra.mxu0 %v372
  %519 = vmatpush.bf16.msra.mxu0 %v364
  %520 = vmatpush.bf16.msra.mxu0 %v356
  %521 = vmatpush.bf16.msra.mxu0 %v348
  %522 = vmatpush.bf16.msra.mxu0 %v340
  %523 = vmatpush.bf16.msra.mxu0 %v332
  %524 = vmatmul.bf16.gmra.mxu0 %v130
  %v525 = vpop.f32.mrf.mxu0
  %v526 = vadd.f32 %v100, %v525
  %v527 = vpop.f32.mrf.mxu0
  %v528 = vadd.f32 %v100, %v527
  %529 = vmatmul.bf16.gmra.mxu0 %v131
  %v530 = vpop.f32.mrf.mxu0
  %v531 = vadd.f32 %v100, %v530
  %v532 = vpop.f32.mrf.mxu0
  %v533 = vadd.f32 %v100, %v532
  %534 = vmatmul.bf16.gmra.mxu0 %v132
  %v535 = vpop.f32.mrf.mxu0
  %v536 = vadd.f32 %v100, %v535
  %v537 = vpop.f32.mrf.mxu0
  %v538 = vadd.f32 %v100, %v537
  %539 = vmatmul.bf16.gmra.mxu0 %v133
  %v540 = vpop.f32.mrf.mxu0
  %v541 = vadd.f32 %v100, %v540
  %v542 = vpop.f32.mrf.mxu0
  %v543 = vadd.f32 %v100, %v542
  %544 = vdwg.mxu0
  %545 = vmatpush.bf16.msra.mxu0 %v389
  %546 = vmatpush.bf16.msra.mxu0 %v381
  %547 = vmatpush.bf16.msra.mxu0 %v373
  %548 = vmatpush.bf16.msra.mxu0 %v365
  %549 = vmatpush.bf16.msra.mxu0 %v357
  %550 = vmatpush.bf16.msra.mxu0 %v349
  %551 = vmatpush.bf16.msra.mxu0 %v341
  %552 = vmatpush.bf16.msra.mxu0 %v333
  %553 = vmatmul.bf16.gmra.mxu0 %v130
  %v554 = vpop.f32.mrf.mxu0
  %v555 = vadd.f32 %v101, %v554
  %v556 = vpop.f32.mrf.mxu0
  %v557 = vadd.f32 %v101, %v556
  %558 = vmatmul.bf16.gmra.mxu0 %v131
  %v559 = vpop.f32.mrf.mxu0
  %v560 = vadd.f32 %v101, %v559
  %v561 = vpop.f32.mrf.mxu0
  %v562 = vadd.f32 %v101, %v561
  %563 = vmatmul.bf16.gmra.mxu0 %v132
  %v564 = vpop.f32.mrf.mxu0
  %v565 = vadd.f32 %v101, %v564
  %v566 = vpop.f32.mrf.mxu0
  %v567 = vadd.f32 %v101, %v566
  %568 = vmatmul.bf16.gmra.mxu0 %v133
  %v569 = vpop.f32.mrf.mxu0
  %v570 = vadd.f32 %v101, %v569
  %v571 = vpop.f32.mrf.mxu0
  %v572 = vadd.f32 %v101, %v571
  %573 = vdwg.mxu0
  %574 = vmatpush.bf16.msra.mxu0 %v390
  %575 = vmatpush.bf16.msra.mxu0 %v382
  %576 = vmatpush.bf16.msra.mxu0 %v374
  %577 = vmatpush.bf16.msra.mxu0 %v366
  %578 = vmatpush.bf16.msra.mxu0 %v358
  %579 = vmatpush.bf16.msra.mxu0 %v350
  %580 = vmatpush.bf16.msra.mxu0 %v342
  %581 = vmatpush.bf16.msra.mxu0 %v334
  %582 = vmatmul.bf16.gmra.mxu0 %v130
  %v583 = vpop.f32.mrf.mxu0
  %v584 = vadd.f32 %v102, %v583
  %v585 = vpop.f32.mrf.mxu0
  %v586 = vadd.f32 %v102, %v585
  %587 = vmatmul.bf16.gmra.mxu0 %v131
  %v588 = vpop.f32.mrf.mxu0
  %v589 = vadd.f32 %v102, %v588
  %v590 = vpop.f32.mrf.mxu0
  %v591 = vadd.f32 %v102, %v590
  %592 = vmatmul.bf16.gmra.mxu0 %v132
  %v593 = vpop.f32.mrf.mxu0
  %v594 = vadd.f32 %v102, %v593
  %v595 = vpop.f32.mrf.mxu0
  %v596 = vadd.f32 %v102, %v595
  %597 = vmatmul.bf16.gmra.mxu0 %v133
  %v598 = vpop.f32.mrf.mxu0
  %v599 = vadd.f32 %v102, %v598
  %v600 = vpop.f32.mrf.mxu0
  %v601 = vadd.f32 %v102, %v600
  %602 = vdwg.mxu0
  %603 = vmatpush.bf16.msra.mxu0 %v391
  %604 = vmatpush.bf16.msra.mxu0 %v383
  %605 = vmatpush.bf16.msra.mxu0 %v375
  %606 = vmatpush.bf16.msra.mxu0 %v367
  %607 = vmatpush.bf16.msra.mxu0 %v359
  %608 = vmatpush.bf16.msra.mxu0 %v351
  %609 = vmatpush.bf16.msra.mxu0 %v343
  %610 = vmatpush.bf16.msra.mxu0 %v335
  %611 = vmatmul.bf16.gmra.mxu0 %v130
  %v612 = vpop.f32.mrf.mxu0
  %v613 = vadd.f32 %v103, %v612
  %v614 = vpop.f32.mrf.mxu0
  %v615 = vadd.f32 %v103, %v614
  %616 = vmatmul.bf16.gmra.mxu0 %v131
  %v617 = vpop.f32.mrf.mxu0
  %v618 = vadd.f32 %v103, %v617
  %v619 = vpop.f32.mrf.mxu0
  %v620 = vadd.f32 %v103, %v619
  %621 = vmatmul.bf16.gmra.mxu0 %v132
  %v622 = vpop.f32.mrf.mxu0
  %v623 = vadd.f32 %v103, %v622
  %v624 = vpop.f32.mrf.mxu0
  %v625 = vadd.f32 %v103, %v624
  %626 = vmatmul.bf16.gmra.mxu0 %v133
  %v627 = vpop.f32.mrf.mxu0
  %v628 = vadd.f32 %v103, %v627
  %v629 = vpop.f32.mrf.mxu0
  %v630 = vadd.f32 %v103, %v629
  %631 = vdwg.mxu0
  %632 = vmatpush.bf16.msra.mxu0 %v392
  %633 = vmatpush.bf16.msra.mxu0 %v384
  %634 = vmatpush.bf16.msra.mxu0 %v376
  %635 = vmatpush.bf16.msra.mxu0 %v368
  %636 = vmatpush.bf16.msra.mxu0 %v360
  %637 = vmatpush.bf16.msra.mxu0 %v352
  %638 = vmatpush.bf16.msra.mxu0 %v344
  %639 = vmatpush.bf16.msra.mxu0 %v336
  %640 = vmatmul.bf16.gmra.mxu0 %v130
  %v641 = vpop.f32.mrf.mxu0
  %v642 = vadd.f32 %v104, %v641
  %v643 = vpop.f32.mrf.mxu0
  %v644 = vadd.f32 %v104, %v643
  %645 = vmatmul.bf16.gmra.mxu0 %v131
  %v646 = vpop.f32.mrf.mxu0
  %v647 = vadd.f32 %v104, %v646
  %v648 = vpop.f32.mrf.mxu0
  %v649 = vadd.f32 %v104, %v648
  %650 = vmatmul.bf16.gmra.mxu0 %v132
  %v651 = vpop.f32.mrf.mxu0
  %v652 = vadd.f32 %v104, %v651
  %v653 = vpop.f32.mrf.mxu0
  %v654 = vadd.f32 %v104, %v653
  %655 = vmatmul.bf16.gmra.mxu0 %v133
  %v656 = vpop.f32.mrf.mxu0
  %v657 = vadd.f32 %v104, %v656
  %v658 = vpop.f32.mrf.mxu0
  %v659 = vadd.f32 %v104, %v658
  %660 = vdwg.mxu0
  %661 = vmatpush.bf16.msra.mxu0 %v393
  %662 = vmatpush.bf16.msra.mxu0 %v385
  %663 = vmatpush.bf16.msra.mxu0 %v377
  %664 = vmatpush.bf16.msra.mxu0 %v369
  %665 = vmatpush.bf16.msra.mxu0 %v361
  %666 = vmatpush.bf16.msra.mxu0 %v353
  %667 = vmatpush.bf16.msra.mxu0 %v345
  %668 = vmatpush.bf16.msra.mxu0 %v337
  %669 = vmatmul.bf16.gmra.mxu0 %v130
  %v670 = vpop.f32.mrf.mxu0
  %v671 = vadd.f32 %v105, %v670
  %v672 = vpop.f32.mrf.mxu0
  %v673 = vadd.f32 %v105, %v672
  %674 = vmatmul.bf16.gmra.mxu0 %v131
  %v675 = vpop.f32.mrf.mxu0
  %v676 = vadd.f32 %v105, %v675
  %v677 = vpop.f32.mrf.mxu0
  %v678 = vadd.f32 %v105, %v677
  %679 = vmatmul.bf16.gmra.mxu0 %v132
  %v680 = vpop.f32.mrf.mxu0
  %v681 = vadd.f32 %v105, %v680
  %v682 = vpop.f32.mrf.mxu0
  %v683 = vadd.f32 %v105, %v682
  %684 = vmatmul.bf16.gmra.mxu0 %v133
  %v685 = vpop.f32.mrf.mxu0
  %v686 = vadd.f32 %v105, %v685
  %v687 = vpop.f32.mrf.mxu0
  %v688 = vadd.f32 %v105, %v687
  %689 = vdwg.mxu0
  %690 = vst [vmem:[#allocation2] sm:$0xff] %v468
  %691 = vst [vmem:[#allocation2 + $0x8] sm:$0xff] %v497
  %692 = vst [vmem:[#allocation2 + $0x10] sm:$0xff] %v526
  %693 = vst [vmem:[#allocation2 + $0x18] sm:$0xff] %v555
  %694 = vst [vmem:[#allocation2 + $0x20] sm:$0xff] %v584
  %695 = vst [vmem:[#allocation2 + $0x28] sm:$0xff] %v613
  %696 = vst [vmem:[#allocation2 + $0x30] sm:$0xff] %v642
  %697 = vst [vmem:[#allocation2 + $0x38] sm:$0xff] %v671
  %698 = vst [vmem:[#allocation2 + $0x40] sm:$0xff] %v470
  %699 = vst [vmem:[#allocation2 + $0x48] sm:$0xff] %v499
  %700 = vst [vmem:[#allocation2 + $0x50] sm:$0xff] %v528
  %701 = vst [vmem:[#allocation2 + $0x58] sm:$0xff] %v557
  %702 = vst [vmem:[#allocation2 + $0x60] sm:$0xff] %v586
  %703 = vst [vmem:[#allocation2 + $0x68] sm:$0xff] %v615
  %704 = vst [vmem:[#allocation2 + $0x70] sm:$0xff] %v644
  %705 = vst [vmem:[#allocation2 + $0x78] sm:$0xff] %v673
  %706 = vst [vmem:[#allocation2 + $0x80] sm:$0xff] %v473
  %707 = vst [vmem:[#allocation2 + $0x88] sm:$0xff] %v502
  %708 = vst [vmem:[#allocation2 + $0x90] sm:$0xff] %v531
  %709 = vst [vmem:[#allocation2 + $0x98] sm:$0xff] %v560
  %710 = vst [vmem:[#allocation2 + $0xa0] sm:$0xff] %v589
  %711 = vst [vmem:[#allocation2 + $0xa8] sm:$0xff] %v618
  %712 = vst [vmem:[#allocation2 + $0xb0] sm:$0xff] %v647
  %713 = vst [vmem:[#allocation2 + $0xb8] sm:$0xff] %v676
  %714 = vst [vmem:[#allocation2 + $0xc0] sm:$0xff] %v475
  %715 = vst [vmem:[#allocation2 + $0xc8] sm:$0xff] %v504
  %716 = vst [vmem:[#allocation2 + $0xd0] sm:$0xff] %v533
  %717 = vst [vmem:[#allocation2 + $0xd8] sm:$0xff] %v562
  %718 = vst [vmem:[#allocation2 + $0xe0] sm:$0xff] %v591
  %719 = vst [vmem:[#allocation2 + $0xe8] sm:$0xff] %v620
  %720 = vst [vmem:[#allocation2 + $0xf0] sm:$0xff] %v649
  %721 = vst [vmem:[#allocation2 + $0xf8] sm:$0xff] %v678
  %722 = vst [vmem:[#allocation2 + $0x100] sm:$0xff] %v478
  %723 = vst [vmem:[#allocation2 + $0x108] sm:$0xff] %v507
  %724 = vst [vmem:[#allocation2 + $0x110] sm:$0xff] %v536
  %725 = vst [vmem:[#allocation2 + $0x118] sm:$0xff] %v565
  %726 = vst [vmem:[#allocation2 + $0x120] sm:$0xff] %v594
  %727 = vst [vmem:[#allocation2 + $0x128] sm:$0xff] %v623
  %728 = vst [vmem:[#allocation2 + $0x130] sm:$0xff] %v652
  %729 = vst [vmem:[#allocation2 + $0x138] sm:$0xff] %v681
  %730 = vst [vmem:[#allocation2 + $0x140] sm:$0xff] %v480
  %731 = vst [vmem:[#allocation2 + $0x148] sm:$0xff] %v509
  %732 = vst [vmem:[#allocation2 + $0x150] sm:$0xff] %v538
  %733 = vst [vmem:[#allocation2 + $0x158] sm:$0xff] %v567
  %734 = vst [vmem:[#allocation2 + $0x160] sm:$0xff] %v596
  %735 = vst [vmem:[#allocation2 + $0x168] sm:$0xff] %v625
  %736 = vst [vmem:[#allocation2 + $0x170] sm:$0xff] %v654
  %737 = vst [vmem:[#allocation2 + $0x178] sm:$0xff] %v683
  %738 = vst [vmem:[#allocation2 + $0x180] sm:$0xff] %v483
  %739 = vst [vmem:[#allocation2 + $0x188] sm:$0xff] %v512
  %740 = vst [vmem:[#allocation2 + $0x190] sm:$0xff] %v541
  %741 = vst [vmem:[#allocation2 + $0x198] sm:$0xff] %v570
  %742 = vst [vmem:[#allocation2 + $0x1a0] sm:$0xff] %v599
  %743 = vst [vmem:[#allocation2 + $0x1a8] sm:$0xff] %v628
  %744 = vst [vmem:[#allocation2 + $0x1b0] sm:$0xff] %v657
  %745 = vst [vmem:[#allocation2 + $0x1b8] sm:$0xff] %v686
  %746 = vst [vmem:[#allocation2 + $0x1c0] sm:$0xff] %v485
  %747 = vst [vmem:[#allocation2 + $0x1c8] sm:$0xff] %v514
  %748 = vst [vmem:[#allocation2 + $0x1d0] sm:$0xff] %v543
  %749 = vst [vmem:[#allocation2 + $0x1d8] sm:$0xff] %v572
  %750 = vst [vmem:[#allocation2 + $0x1e0] sm:$0xff] %v601
  %751 = vst [vmem:[#allocation2 + $0x1e8] sm:$0xff] %v630
  %752 = vst [vmem:[#allocation2 + $0x1f0] sm:$0xff] %v659
  %753 = vst [vmem:[#allocation2 + $0x1f8] sm:$0xff] %v688
  %s754 = smul.u32 0, 8
  %s755 = smul.addr %s754, 8
  %s756 = scalar_lea.vmem [#allocation2], %s755
  %v757 = vld [vmem:[%s756] sm:$0xff]
  %v758 = vld [vmem:[%s756 + $0x8] sm:$0xff]
  %v759 = vld [vmem:[%s756 + $0x10] sm:$0xff]
  %v760 = vld [vmem:[%s756 + $0x18] sm:$0xff]
  %v761 = vld [vmem:[%s3] sm:$0xff]
  %v762 = vld [vmem:[%s3 + $0x8] sm:$0xff]
  %v763 = vld [vmem:[%s3 + $0x10] sm:$0xff]
  %v764 = vld [vmem:[%s3 + $0x18] sm:$0xff]
  %v765 = vld [vmem:[%s3 + $0x20] sm:$0xff]
  %v766 = vld [vmem:[%s3 + $0x28] sm:$0xff]
  %v767 = vld [vmem:[%s3 + $0x30] sm:$0xff]
  %v768 = vld [vmem:[%s3 + $0x38] sm:$0xff]
  %v769 = vld [vmem:[%s3 + $0x40] sm:$0xff]
  %v770 = vld [vmem:[%s3 + $0x48] sm:$0xff]
  %v771 = vld [vmem:[%s3 + $0x50] sm:$0xff]
  %v772 = vld [vmem:[%s3 + $0x58] sm:$0xff]
  %v773 = vld [vmem:[%s3 + $0x60] sm:$0xff]
  %v774 = vld [vmem:[%s3 + $0x68] sm:$0xff]
  %v775 = vld [vmem:[%s3 + $0x70] sm:$0xff]
  %v776 = vld [vmem:[%s3 + $0x78] sm:$0xff]
  %v777 = vld [vmem:[%s3 + $0x80] sm:$0xff]
  %v778 = vld [vmem:[%s3 + $0x88] sm:$0xff]
  %v779 = vld [vmem:[%s3 + $0x90] sm:$0xff]
  %v780 = vld [vmem:[%s3 + $0x98] sm:$0xff]
  %v781 = vld [vmem:[%s3 + $0xa0] sm:$0xff]
  %v782 = vld [vmem:[%s3 + $0xa8] sm:$0xff]
  %v783 = vld [vmem:[%s3 + $0xb0] sm:$0xff]
  %v784 = vld [vmem:[%s3 + $0xb8] sm:$0xff]
  %v785 = vld [vmem:[%s3 + $0xc0] sm:$0xff]
  %v786 = vld [vmem:[%s3 + $0xc8] sm:$0xff]
  %v787 = vld [vmem:[%s3 + $0xd0] sm:$0xff]
  %v788 = vld [vmem:[%s3 + $0xd8] sm:$0xff]
  %v789 = vld [vmem:[%s3 + $0xe0] sm:$0xff]
  %v790 = vld [vmem:[%s3 + $0xe8] sm:$0xff]
  %v791 = vld [vmem:[%s3 + $0xf0] sm:$0xff]
  %v792 = vld [vmem:[%s3 + $0xf8] sm:$0xff]
  %v825 = vunpack.c.l.b16 %v761
  %v826 = vunpack.c.h.b16 %v761
  %v827 = vunpack.c.l.b16 %v762
  %v828 = vunpack.c.h.b16 %v762
  %v829 = vunpack.c.l.b16 %v763
  %v830 = vunpack.c.h.b16 %v763
  %v831 = vunpack.c.l.b16 %v764
  %v832 = vunpack.c.h.b16 %v764
  %v833 = vunpack.c.l.b16 %v765
  %v834 = vunpack.c.h.b16 %v765
  %v835 = vunpack.c.l.b16 %v766
  %v836 = vunpack.c.h.b16 %v766
  %v837 = vunpack.c.l.b16 %v767
  %v838 = vunpack.c.h.b16 %v767
  %v839 = vunpack.c.l.b16 %v768
  %v840 = vunpack.c.h.b16 %v768
  %v841 = vunpack.c.l.b16 %v769
  %v842 = vunpack.c.h.b16 %v769
  %v843 = vunpack.c.l.b16 %v770
  %v844 = vunpack.c.h.b16 %v770
  %v845 = vunpack.c.l.b16 %v771
  %v846 = vunpack.c.h.b16 %v771
  %v847 = vunpack.c.l.b16 %v772
  %v848 = vunpack.c.h.b16 %v772
  %v849 = vunpack.c.l.b16 %v773
  %v850 = vunpack.c.h.b16 %v773
  %v851 = vunpack.c.l.b16 %v774
  %v852 = vunpack.c.h.b16 %v774
  %v853 = vunpack.c.l.b16 %v775
  %v854 = vunpack.c.h.b16 %v775
  %v855 = vunpack.c.l.b16 %v776
  %v856 = vunpack.c.h.b16 %v776
  %v857 = vunpack.c.l.b16 %v777
  %v858 = vunpack.c.h.b16 %v777
  %v859 = vunpack.c.l.b16 %v778
  %v860 = vunpack.c.h.b16 %v778
  %v861 = vunpack.c.l.b16 %v779
  %v862 = vunpack.c.h.b16 %v779
  %v863 = vunpack.c.l.b16 %v780
  %v864 = vunpack.c.h.b16 %v780
  %v865 = vunpack.c.l.b16 %v781
  %v866 = vunpack.c.h.b16 %v781
  %v867 = vunpack.c.l.b16 %v782
  %v868 = vunpack.c.h.b16 %v782
  %v869 = vunpack.c.l.b16 %v783
  %v870 = vunpack.c.h.b16 %v783
  %v871 = vunpack.c.l.b16 %v784
  %v872 = vunpack.c.h.b16 %v784
  %v873 = vunpack.c.l.b16 %v785
  %v874 = vunpack.c.h.b16 %v785
  %v875 = vunpack.c.l.b16 %v786
  %v876 = vunpack.c.h.b16 %v786
  %v877 = vunpack.c.l.b16 %v787
  %v878 = vunpack.c.h.b16 %v787
  %v879 = vunpack.c.l.b16 %v788
  %v880 = vunpack.c.h.b16 %v788
  %v881 = vunpack.c.l.b16 %v789
  %v882 = vunpack.c.h.b16 %v789
  %v883 = vunpack.c.l.b16 %v790
  %v884 = vunpack.c.h.b16 %v790
  %v885 = vunpack.c.l.b16 %v791
  %v886 = vunpack.c.h.b16 %v791
  %v887 = vunpack.c.l.b16 %v792
  %v888 = vunpack.c.h.b16 %v792
  %v889 = vpack.c.b16 %v829, %v825
  %v890 = vpack.c.b16 %v830, %v826
  %v891 = vpack.c.b16 %v831, %v827
  %v892 = vpack.c.b16 %v832, %v828
  %v893 = vpack.c.b16 %v837, %v833
  %v894 = vpack.c.b16 %v838, %v834
  %v895 = vpack.c.b16 %v839, %v835
  %v896 = vpack.c.b16 %v840, %v836
  %v897 = vpack.c.b16 %v845, %v841
  %v898 = vpack.c.b16 %v846, %v842
  %v899 = vpack.c.b16 %v847, %v843
  %v900 = vpack.c.b16 %v848, %v844
  %v901 = vpack.c.b16 %v853, %v849
  %v902 = vpack.c.b16 %v854, %v850
  %v903 = vpack.c.b16 %v855, %v851
  %v904 = vpack.c.b16 %v856, %v852
  %v905 = vpack.c.b16 %v861, %v857
  %v906 = vpack.c.b16 %v862, %v858
  %v907 = vpack.c.b16 %v863, %v859
  %v908 = vpack.c.b16 %v864, %v860
  %v909 = vpack.c.b16 %v869, %v865
  %v910 = vpack.c.b16 %v870, %v866
  %v911 = vpack.c.b16 %v871, %v867
  %v912 = vpack.c.b16 %v872, %v868
  %v913 = vpack.c.b16 %v877, %v873
  %v914 = vpack.c.b16 %v878, %v874
  %v915 = vpack.c.b16 %v879, %v875
  %v916 = vpack.c.b16 %v880, %v876
  %v917 = vpack.c.b16 %v885, %v881
  %v918 = vpack.c.b16 %v886, %v882
  %v919 = vpack.c.b16 %v887, %v883
  %v920 = vpack.c.b16 %v888, %v884
  %953 = vmatpush.bf16.msra.mxu0 %v917
  %954 = vmatpush.bf16.msra.mxu0 %v913
  %955 = vmatpush.bf16.msra.mxu0 %v909
  %956 = vmatpush.bf16.msra.mxu0 %v905
  %957 = vmatpush.bf16.msra.mxu0 %v901
  %958 = vmatpush.bf16.msra.mxu0 %v897
  %959 = vmatpush.bf16.msra.mxu0 %v893
  %960 = vmatpush.bf16.msra.mxu0 %v889
  %961 = vmatmul.bf16.gmra.mxu0 0
  %v962 = vpop.f32.mrf.mxu0
  %v963 = vadd.f32 0.0, %v962
  %v964 = vpop.f32.mrf.mxu0
  %965 = vdwg.mxu0
  %966 = vmatpush.bf16.msra.mxu0 %v918
  %967 = vmatpush.bf16.msra.mxu0 %v914
  %968 = vmatpush.bf16.msra.mxu0 %v910
  %969 = vmatpush.bf16.msra.mxu0 %v906
  %970 = vmatpush.bf16.msra.mxu0 %v902
  %971 = vmatpush.bf16.msra.mxu0 %v898
  %972 = vmatpush.bf16.msra.mxu0 %v894
  %973 = vmatpush.bf16.msra.mxu0 %v890
  %974 = vmatmul.bf16.gmra.mxu0 0
  %v975 = vpop.f32.mrf.mxu0
  %v976 = vadd.f32 0.0, %v975
  %v977 = vpop.f32.mrf.mxu0
  %978 = vdwg.mxu0
  %979 = vmatpush.bf16.msra.mxu0 %v919
  %980 = vmatpush.bf16.msra.mxu0 %v915
  %981 = vmatpush.bf16.msra.mxu0 %v911
  %982 = vmatpush.bf16.msra.mxu0 %v907
  %983 = vmatpush.bf16.msra.mxu0 %v903
  %984 = vmatpush.bf16.msra.mxu0 %v899
  %985 = vmatpush.bf16.msra.mxu0 %v895
  %986 = vmatpush.bf16.msra.mxu0 %v891
  %987 = vmatmul.bf16.gmra.mxu0 0
  %v988 = vpop.f32.mrf.mxu0
  %v989 = vadd.f32 0.0, %v988
  %v990 = vpop.f32.mrf.mxu0
  %991 = vdwg.mxu0
  %992 = vmatpush.bf16.msra.mxu0 %v920
  %993 = vmatpush.bf16.msra.mxu0 %v916
  %994 = vmatpush.bf16.msra.mxu0 %v912
  %995 = vmatpush.bf16.msra.mxu0 %v908
  %996 = vmatpush.bf16.msra.mxu0 %v904
  %997 = vmatpush.bf16.msra.mxu0 %v900
  %998 = vmatpush.bf16.msra.mxu0 %v896
  %999 = vmatpush.bf16.msra.mxu0 %v892
  %1000 = vmatmul.bf16.gmra.mxu0 0
  %v1001 = vpop.f32.mrf.mxu0
  %v1002 = vadd.f32 0.0, %v1001
  %v1003 = vpop.f32.mrf.mxu0
  %1004 = vdwg.mxu0
  %v1005 = vadd.f32 %v757, %v963
  %v1006 = vadd.f32 %v758, %v976
  %v1007 = vadd.f32 %v759, %v989
  %v1008 = vadd.f32 %v760, %v1002
  %s1009 = smul.u32 7, 8
  %s1010 = smul.addr %s1009, 8
  %s1011 = scalar_lea.vmem [#allocation2], %s1010
  %v1012 = vld [vmem:[%s1011 + $0x20] sm:$0xff]
  %v1013 = vld [vmem:[%s1011 + $0x28] sm:$0xff]
  %v1014 = vld [vmem:[%s1011 + $0x30] sm:$0xff]
  %v1015 = vld [vmem:[%s1011 + $0x38] sm:$0xff]
  %v1016 = vld [vmem:[%s4] sm:$0xff]
  %v1017 = vld [vmem:[%s4 + $0x8] sm:$0xff]
  %v1018 = vld [vmem:[%s4 + $0x10] sm:$0xff]
  %v1019 = vld [vmem:[%s4 + $0x18] sm:$0xff]
  %v1020 = vld [vmem:[%s4 + $0x20] sm:$0xff]
  %v1021 = vld [vmem:[%s4 + $0x28] sm:$0xff]
  %v1022 = vld [vmem:[%s4 + $0x30] sm:$0xff]
  %v1023 = vld [vmem:[%s4 + $0x38] sm:$0xff]
  %v1024 = vld [vmem:[%s4 + $0x40] sm:$0xff]
  %v1025 = vld [vmem:[%s4 + $0x48] sm:$0xff]
  %v1026 = vld [vmem:[%s4 + $0x50] sm:$0xff]
  %v1027 = vld [vmem:[%s4 + $0x58] sm:$0xff]
  %v1028 = vld [vmem:[%s4 + $0x60] sm:$0xff]
  %v1029 = vld [vmem:[%s4 + $0x68] sm:$0xff]
  %v1030 = vld [vmem:[%s4 + $0x70] sm:$0xff]
  %v1031 = vld [vmem:[%s4 + $0x78] sm:$0xff]
  %v1032 = vld [vmem:[%s4 + $0x80] sm:$0xff]
  %v1033 = vld [vmem:[%s4 + $0x88] sm:$0xff]
  %v1034 = vld [vmem:[%s4 + $0x90] sm:$0xff]
  %v1035 = vld [vmem:[%s4 + $0x98] sm:$0xff]
  %v1036 = vld [vmem:[%s4 + $0xa0] sm:$0xff]
  %v1037 = vld [vmem:[%s4 + $0xa8] sm:$0xff]
  %v1038 = vld [vmem:[%s4 + $0xb0] sm:$0xff]
  %v1039 = vld [vmem:[%s4 + $0xb8] sm:$0xff]
  %v1040 = vld [vmem:[%s4 + $0xc0] sm:$0xff]
  %v1041 = vld [vmem:[%s4 + $0xc8] sm:$0xff]
  %v1042 = vld [vmem:[%s4 + $0xd0] sm:$0xff]
  %v1043 = vld [vmem:[%s4 + $0xd8] sm:$0xff]
  %v1044 = vld [vmem:[%s4 + $0xe0] sm:$0xff]
  %v1045 = vld [vmem:[%s4 + $0xe8] sm:$0xff]
  %v1046 = vld [vmem:[%s4 + $0xf0] sm:$0xff]
  %v1047 = vld [vmem:[%s4 + $0xf8] sm:$0xff]
  %v1080 = vunpack.c.l.b16 %v1016
  %v1081 = vunpack.c.h.b16 %v1016
  %v1082 = vunpack.c.l.b16 %v1017
  %v1083 = vunpack.c.h.b16 %v1017
  %v1084 = vunpack.c.l.b16 %v1018
  %v1085 = vunpack.c.h.b16 %v1018
  %v1086 = vunpack.c.l.b16 %v1019
  %v1087 = vunpack.c.h.b16 %v1019
  %v1088 = vunpack.c.l.b16 %v1020
  %v1089 = vunpack.c.h.b16 %v1020
  %v1090 = vunpack.c.l.b16 %v1021
  %v1091 = vunpack.c.h.b16 %v1021
  %v1092 = vunpack.c.l.b16 %v1022
  %v1093 = vunpack.c.h.b16 %v1022
  %v1094 = vunpack.c.l.b16 %v1023
  %v1095 = vunpack.c.h.b16 %v1023
  %v1096 = vunpack.c.l.b16 %v1024
  %v1097 = vunpack.c.h.b16 %v1024
  %v1098 = vunpack.c.l.b16 %v1025
  %v1099 = vunpack.c.h.b16 %v1025
  %v1100 = vunpack.c.l.b16 %v1026
  %v1101 = vunpack.c.h.b16 %v1026
  %v1102 = vunpack.c.l.b16 %v1027
  %v1103 = vunpack.c.h.b16 %v1027
  %v1104 = vunpack.c.l.b16 %v1028
  %v1105 = vunpack.c.h.b16 %v1028
  %v1106 = vunpack.c.l.b16 %v1029
  %v1107 = vunpack.c.h.b16 %v1029
  %v1108 = vunpack.c.l.b16 %v1030
  %v1109 = vunpack.c.h.b16 %v1030
  %v1110 = vunpack.c.l.b16 %v1031
  %v1111 = vunpack.c.h.b16 %v1031
  %v1112 = vunpack.c.l.b16 %v1032
  %v1113 = vunpack.c.h.b16 %v1032
  %v1114 = vunpack.c.l.b16 %v1033
  %v1115 = vunpack.c.h.b16 %v1033
  %v1116 = vunpack.c.l.b16 %v1034
  %v1117 = vunpack.c.h.b16 %v1034
  %v1118 = vunpack.c.l.b16 %v1035
  %v1119 = vunpack.c.h.b16 %v1035
  %v1120 = vunpack.c.l.b16 %v1036
  %v1121 = vunpack.c.h.b16 %v1036
  %v1122 = vunpack.c.l.b16 %v1037
  %v1123 = vunpack.c.h.b16 %v1037
  %v1124 = vunpack.c.l.b16 %v1038
  %v1125 = vunpack.c.h.b16 %v1038
  %v1126 = vunpack.c.l.b16 %v1039
  %v1127 = vunpack.c.h.b16 %v1039
  %v1128 = vunpack.c.l.b16 %v1040
  %v1129 = vunpack.c.h.b16 %v1040
  %v1130 = vunpack.c.l.b16 %v1041
  %v1131 = vunpack.c.h.b16 %v1041
  %v1132 = vunpack.c.l.b16 %v1042
  %v1133 = vunpack.c.h.b16 %v1042
  %v1134 = vunpack.c.l.b16 %v1043
  %v1135 = vunpack.c.h.b16 %v1043
  %v1136 = vunpack.c.l.b16 %v1044
  %v1137 = vunpack.c.h.b16 %v1044
  %v1138 = vunpack.c.l.b16 %v1045
  %v1139 = vunpack.c.h.b16 %v1045
  %v1140 = vunpack.c.l.b16 %v1046
  %v1141 = vunpack.c.h.b16 %v1046
  %v1142 = vunpack.c.l.b16 %v1047
  %v1143 = vunpack.c.h.b16 %v1047
  %v1144 = vpack.c.b16 %v1084, %v1080
  %v1145 = vpack.c.b16 %v1085, %v1081
  %v1146 = vpack.c.b16 %v1086, %v1082
  %v1147 = vpack.c.b16 %v1087, %v1083
  %v1148 = vpack.c.b16 %v1092, %v1088
  %v1149 = vpack.c.b16 %v1093, %v1089
  %v1150 = vpack.c.b16 %v1094, %v1090
  %v1151 = vpack.c.b16 %v1095, %v1091
  %v1152 = vpack.c.b16 %v1100, %v1096
  %v1153 = vpack.c.b16 %v1101, %v1097
  %v1154 = vpack.c.b16 %v1102, %v1098
  %v1155 = vpack.c.b16 %v1103, %v1099
  %v1156 = vpack.c.b16 %v1108, %v1104
  %v1157 = vpack.c.b16 %v1109, %v1105
  %v1158 = vpack.c.b16 %v1110, %v1106
  %v1159 = vpack.c.b16 %v1111, %v1107
  %v1160 = vpack.c.b16 %v1116, %v1112
  %v1161 = vpack.c.b16 %v1117, %v1113
  %v1162 = vpack.c.b16 %v1118, %v1114
  %v1163 = vpack.c.b16 %v1119, %v1115
  %v1164 = vpack.c.b16 %v1124, %v1120
  %v1165 = vpack.c.b16 %v1125, %v1121
  %v1166 = vpack.c.b16 %v1126, %v1122
  %v1167 = vpack.c.b16 %v1127, %v1123
  %v1168 = vpack.c.b16 %v1132, %v1128
  %v1169 = vpack.c.b16 %v1133, %v1129
  %v1170 = vpack.c.b16 %v1134, %v1130
  %v1171 = vpack.c.b16 %v1135, %v1131
  %v1172 = vpack.c.b16 %v1140, %v1136
  %v1173 = vpack.c.b16 %v1141, %v1137
  %v1174 = vpack.c.b16 %v1142, %v1138
  %v1175 = vpack.c.b16 %v1143, %v1139
  %1208 = vmatpush.bf16.msra.mxu0 %v1172
  %1209 = vmatpush.bf16.msra.mxu0 %v1168
  %1210 = vmatpush.bf16.msra.mxu0 %v1164
  %1211 = vmatpush.bf16.msra.mxu0 %v1160
  %1212 = vmatpush.bf16.msra.mxu0 %v1156
  %1213 = vmatpush.bf16.msra.mxu0 %v1152
  %1214 = vmatpush.bf16.msra.mxu0 %v1148
  %1215 = vmatpush.bf16.msra.mxu0 %v1144
  %1216 = vmatmul.bf16.gmra.mxu0 0
  %v1217 = vpop.f32.mrf.mxu0
  %v1218 = vadd.f32 0.0, %v1217
  %v1219 = vpop.f32.mrf.mxu0
  %1220 = vdwg.mxu0
  %1221 = vmatpush.bf16.msra.mxu0 %v1173
  %1222 = vmatpush.bf16.msra.mxu0 %v1169
  %1223 = vmatpush.bf16.msra.mxu0 %v1165
  %1224 = vmatpush.bf16.msra.mxu0 %v1161
  %1225 = vmatpush.bf16.msra.mxu0 %v1157
  %1226 = vmatpush.bf16.msra.mxu0 %v1153
  %1227 = vmatpush.bf16.msra.mxu0 %v1149
  %1228 = vmatpush.bf16.msra.mxu0 %v1145
  %1229 = vmatmul.bf16.gmra.mxu0 0
  %v1230 = vpop.f32.mrf.mxu0
  %v1231 = vadd.f32 0.0, %v1230
  %v1232 = vpop.f32.mrf.mxu0
  %1233 = vdwg.mxu0
  %1234 = vmatpush.bf16.msra.mxu0 %v1174
  %1235 = vmatpush.bf16.msra.mxu0 %v1170
  %1236 = vmatpush.bf16.msra.mxu0 %v1166
  %1237 = vmatpush.bf16.msra.mxu0 %v1162
  %1238 = vmatpush.bf16.msra.mxu0 %v1158
  %1239 = vmatpush.bf16.msra.mxu0 %v1154
  %1240 = vmatpush.bf16.msra.mxu0 %v1150
  %1241 = vmatpush.bf16.msra.mxu0 %v1146
  %1242 = vmatmul.bf16.gmra.mxu0 0
  %v1243 = vpop.f32.mrf.mxu0
  %v1244 = vadd.f32 0.0, %v1243
  %v1245 = vpop.f32.mrf.mxu0
  %1246 = vdwg.mxu0
  %1247 = vmatpush.bf16.msra.mxu0 %v1175
  %1248 = vmatpush.bf16.msra.mxu0 %v1171
  %1249 = vmatpush.bf16.msra.mxu0 %v1167
  %1250 = vmatpush.bf16.msra.mxu0 %v1163
  %1251 = vmatpush.bf16.msra.mxu0 %v1159
  %1252 = vmatpush.bf16.msra.mxu0 %v1155
  %1253 = vmatpush.bf16.msra.mxu0 %v1151
  %1254 = vmatpush.bf16.msra.mxu0 %v1147
  %1255 = vmatmul.bf16.gmra.mxu0 0
  %v1256 = vpop.f32.mrf.mxu0
  %v1257 = vadd.f32 0.0, %v1256
  %v1258 = vpop.f32.mrf.mxu0
  %1259 = vdwg.mxu0
  %v1260 = vadd.f32 %v1012, %v1218
  %v1261 = vadd.f32 %v1013, %v1231
  %v1262 = vadd.f32 %v1014, %v1244
  %v1263 = vadd.f32 %v1015, %v1257
  %v1264 = vxor.u32 %v1005, 2147483648
  %v1265 = vxor.u32 %v1006, 2147483648
  %v1266 = vxor.u32 %v1007, 2147483648
  %v1267 = vmul.f32 %v1264, 1.442695
  %v1268 = vpow.pop %v1267
  %v1269 = vmul.f32 %v1265, 1.442695
  %v1270 = vpow.pop %v1269
  %v1271 = vmul.f32 %v1266, 1.442695
  %v1272 = vpow.pop %v1271
  %v1273 = vadd.f32 %v1268, 1.0
  %v1274 = vadd.f32 %v1270, 1.0
  %v1275 = vadd.f32 %v1272, 1.0
  %v1276 = vrcp.pop %v1273
  %v1277 = vmul.f32 %v1273, %v1276
  %v1278 = vsub.f32 1.0, %v1277
  %v1279 = vmul.f32 %v1276, %v1278
  %v1280 = vadd.f32 %v1276, %v1279
  %vm1281 = vweird.f32 %v1273
  %vm1282 = vweird.f32 %v1276
  %vm1283 = vmor %vm1281, %vm1282
  %v1284 = vsel %vm1283, %v1276, %v1280
  %v1285 = vand.u32 2147483647, %v1273
  %vm1286 = vcmp.eq.f32.partialorder %v1285, 8.507059e+37
  %v1287 = vand.u32 %v1273, 2147483648
  %v1288 = vor.u32 1.1754944e-38, %v1287
  %v1289 = vsel %vm1286, %v1288, %v1284
  %v1290 = vmul.f32 1.0, %v1289
  %v1291 = vrcp.pop %v1274
  %v1292 = vmul.f32 %v1274, %v1291
  %v1293 = vsub.f32 1.0, %v1292
  %v1294 = vmul.f32 %v1291, %v1293
  %v1295 = vadd.f32 %v1291, %v1294
  %vm1296 = vweird.f32 %v1274
  %vm1297 = vweird.f32 %v1291
  %vm1298 = vmor %vm1296, %vm1297
  %v1299 = vsel %vm1298, %v1291, %v1295
  %v1300 = vand.u32 2147483647, %v1274
  %vm1301 = vcmp.eq.f32.partialorder %v1300, 8.507059e+37
  %v1302 = vand.u32 %v1274, 2147483648
  %v1303 = vor.u32 1.1754944e-38, %v1302
  %v1304 = vsel %vm1301, %v1303, %v1299
  %v1305 = vmul.f32 1.0, %v1304
  %v1306 = vrcp.pop %v1275
  %v1307 = vmul.f32 %v1275, %v1306
  %v1308 = vsub.f32 1.0, %v1307
  %v1309 = vmul.f32 %v1306, %v1308
  %v1310 = vadd.f32 %v1306, %v1309
  %vm1311 = vweird.f32 %v1275
  %vm1312 = vweird.f32 %v1306
  %vm1313 = vmor %vm1311, %vm1312
  %v1314 = vsel %vm1313, %v1306, %v1310
  %v1315 = vand.u32 2147483647, %v1275
  %vm1316 = vcmp.eq.f32.partialorder %v1315, 8.507059e+37
  %v1317 = vand.u32 %v1275, 2147483648
  %v1318 = vor.u32 1.1754944e-38, %v1317
  %v1319 = vsel %vm1316, %v1318, %v1314
  %v1320 = vmul.f32 1.0, %v1319
  %v1321 = vtanh.pop %v1008
  %v1322 = vmul.f32 %v1305, 0.0
  %v1323 = vmul.f32 %v1290, %v1321
  %v1324 = vadd.f32 %v1322, %v1323
  %v1325 = vtanh.pop %v1324
  %v1326 = vmul.f32 %v1320, %v1325
  %v1327 = vxor.u32 %v1260, 2147483648
  %v1328 = vxor.u32 %v1261, 2147483648
  %v1329 = vxor.u32 %v1262, 2147483648
  %v1330 = vmul.f32 %v1327, 1.442695
  %v1331 = vpow.pop %v1330
  %v1332 = vmul.f32 %v1328, 1.442695
  %v1333 = vpow.pop %v1332
  %v1334 = vmul.f32 %v1329, 1.442695
  %v1335 = vpow.pop %v1334
  %v1336 = vadd.f32 %v1331, 1.0
  %v1337 = vadd.f32 %v1333, 1.0
  %v1338 = vadd.f32 %v1335, 1.0
  %v1339 = vrcp.pop %v1336
  %v1340 = vmul.f32 %v1336, %v1339
  %v1341 = vsub.f32 1.0, %v1340
  %v1342 = vmul.f32 %v1339, %v1341
  %v1343 = vadd.f32 %v1339, %v1342
  %vm1344 = vweird.f32 %v1336
  %vm1345 = vweird.f32 %v1339
  %vm1346 = vmor %vm1344, %vm1345
  %v1347 = vsel %vm1346, %v1339, %v1343
  %v1348 = vand.u32 2147483647, %v1336
  %vm1349 = vcmp.eq.f32.partialorder %v1348, 8.507059e+37
  %v1350 = vand.u32 %v1336, 2147483648
  %v1351 = vor.u32 1.1754944e-38, %v1350
  %v1352 = vsel %vm1349, %v1351, %v1347
  %v1353 = vmul.f32 1.0, %v1352
  %v1354 = vrcp.pop %v1337
  %v1355 = vmul.f32 %v1337, %v1354
  %v1356 = vsub.f32 1.0, %v1355
  %v1357 = vmul.f32 %v1354, %v1356
  %v1358 = vadd.f32 %v1354, %v1357
  %vm1359 = vweird.f32 %v1337
  %vm1360 = vweird.f32 %v1354
  %vm1361 = vmor %vm1359, %vm1360
  %v1362 = vsel %vm1361, %v1354, %v1358
  %v1363 = vand.u32 2147483647, %v1337
  %vm1364 = vcmp.eq.f32.partialorder %v1363, 8.507059e+37
  %v1365 = vand.u32 %v1337, 2147483648
  %v1366 = vor.u32 1.1754944e-38, %v1365
  %v1367 = vsel %vm1364, %v1366, %v1362
  %v1368 = vmul.f32 1.0, %v1367
  %v1369 = vrcp.pop %v1338
  %v1370 = vmul.f32 %v1338, %v1369
  %v1371 = vsub.f32 1.0, %v1370
  %v1372 = vmul.f32 %v1369, %v1371
  %v1373 = vadd.f32 %v1369, %v1372
  %vm1374 = vweird.f32 %v1338
  %vm1375 = vweird.f32 %v1369
  %vm1376 = vmor %vm1374, %vm1375
  %v1377 = vsel %vm1376, %v1369, %v1373
  %v1378 = vand.u32 2147483647, %v1338
  %vm1379 = vcmp.eq.f32.partialorder %v1378, 8.507059e+37
  %v1380 = vand.u32 %v1338, 2147483648
  %v1381 = vor.u32 1.1754944e-38, %v1380
  %v1382 = vsel %vm1379, %v1381, %v1377
  %v1383 = vmul.f32 1.0, %v1382
  %v1384 = vtanh.pop %v1263
  %v1385 = vmul.f32 %v1368, 0.0
  %v1386 = vmul.f32 %v1353, %v1384
  %v1387 = vadd.f32 %v1385, %v1386
  %v1388 = vtanh.pop %v1387
  %v1389 = vmul.f32 %v1383, %v1388
  %1390 = vst [vmem:[%s5] sm:$0xff] %v1326
  %s1391 = scalar_lea.vmem %s5, 112
  %1392 = vst [vmem:[%s1391 + $0x8] sm:$0xff] %v1389
  %s1393 = smul.u32 1, 8
  %s1394 = smul.addr %s1393, 8
  %s1395 = scalar_lea.vmem [#allocation2], %s1394
  %v1396 = vld [vmem:[%s1395] sm:$0xff]
  %v1397 = vld [vmem:[%s1395 + $0x8] sm:$0xff]
  %v1398 = vld [vmem:[%s1395 + $0x10] sm:$0xff]
  %v1399 = vld [vmem:[%s1395 + $0x18] sm:$0xff]
  %v1400 = vpack.c.bf16 %v1326, %v1326
  %v1401 = vld [vmem:[%s3] sm:$0xff]
  %v1402 = vld [vmem:[%s3 + $0x8] sm:$0xff]
  %v1403 = vld [vmem:[%s3 + $0x10] sm:$0xff]
  %v1404 = vld [vmem:[%s3 + $0x18] sm:$0xff]
  %v1405 = vld [vmem:[%s3 + $0x20] sm:$0xff]
  %v1406 = vld [vmem:[%s3 + $0x28] sm:$0xff]
  %v1407 = vld [vmem:[%s3 + $0x30] sm:$0xff]
  %v1408 = vld [vmem:[%s3 + $0x38] sm:$0xff]
  %v1409 = vld [vmem:[%s3 + $0x40] sm:$0xff]
  %v1410 = vld [vmem:[%s3 + $0x48] sm:$0xff]
  %v1411 = vld [vmem:[%s3 + $0x50] sm:$0xff]
  %v1412 = vld [vmem:[%s3 + $0x58] sm:$0xff]
  %v1413 = vld [vmem:[%s3 + $0x60] sm:$0xff]
  %v1414 = vld [vmem:[%s3 + $0x68] sm:$0xff]
  %v1415 = vld [vmem:[%s3 + $0x70] sm:$0xff]
  %v1416 = vld [vmem:[%s3 + $0x78] sm:$0xff]
  %v1417 = vld [vmem:[%s3 + $0x80] sm:$0xff]
  %v1418 = vld [vmem:[%s3 + $0x88] sm:$0xff]
  %v1419 = vld [vmem:[%s3 + $0x90] sm:$0xff]
  %v1420 = vld [vmem:[%s3 + $0x98] sm:$0xff]
  %v1421 = vld [vmem:[%s3 + $0xa0] sm:$0xff]
  %v1422 = vld [vmem:[%s3 + $0xa8] sm:$0xff]
  %v1423 = vld [vmem:[%s3 + $0xb0] sm:$0xff]
  %v1424 = vld [vmem:[%s3 + $0xb8] sm:$0xff]
  %v1425 = vld [vmem:[%s3 + $0xc0] sm:$0xff]
  %v1426 = vld [vmem:[%s3 + $0xc8] sm:$0xff]
  %v1427 = vld [vmem:[%s3 + $0xd0] sm:$0xff]
  %v1428 = vld [vmem:[%s3 + $0xd8] sm:$0xff]
  %v1429 = vld [vmem:[%s3 + $0xe0] sm:$0xff]
  %v1430 = vld [vmem:[%s3 + $0xe8] sm:$0xff]
  %v1431 = vld [vmem:[%s3 + $0xf0] sm:$0xff]
  %v1432 = vld [vmem:[%s3 + $0xf8] sm:$0xff]
  %v1465 = vunpack.c.l.b16 %v1401
  %v1466 = vunpack.c.h.b16 %v1401
  %v1467 = vunpack.c.l.b16 %v1402
  %v1468 = vunpack.c.h.b16 %v1402
  %v1469 = vunpack.c.l.b16 %v1403
  %v1470 = vunpack.c.h.b16 %v1403
  %v1471 = vunpack.c.l.b16 %v1404
  %v1472 = vunpack.c.h.b16 %v1404
  %v1473 = vunpack.c.l.b16 %v1405
  %v1474 = vunpack.c.h.b16 %v1405
  %v1475 = vunpack.c.l.b16 %v1406
  %v1476 = vunpack.c.h.b16 %v1406
  %v1477 = vunpack.c.l.b16 %v1407
  %v1478 = vunpack.c.h.b16 %v1407
  %v1479 = vunpack.c.l.b16 %v1408
  %v1480 = vunpack.c.h.b16 %v1408
  %v1481 = vunpack.c.l.b16 %v1409
  %v1482 = vunpack.c.h.b16 %v1409
  %v1483 = vunpack.c.l.b16 %v1410
  %v1484 = vunpack.c.h.b16 %v1410
  %v1485 = vunpack.c.l.b16 %v1411
  %v1486 = vunpack.c.h.b16 %v1411
  %v1487 = vunpack.c.l.b16 %v1412
  %v1488 = vunpack.c.h.b16 %v1412
  %v1489 = vunpack.c.l.b16 %v1413
  %v1490 = vunpack.c.h.b16 %v1413
  %v1491 = vunpack.c.l.b16 %v1414
  %v1492 = vunpack.c.h.b16 %v1414
  %v1493 = vunpack.c.l.b16 %v1415
  %v1494 = vunpack.c.h.b16 %v1415
  %v1495 = vunpack.c.l.b16 %v1416
  %v1496 = vunpack.c.h.b16 %v1416
  %v1497 = vunpack.c.l.b16 %v1417
  %v1498 = vunpack.c.h.b16 %v1417
  %v1499 = vunpack.c.l.b16 %v1418
  %v1500 = vunpack.c.h.b16 %v1418
  %v1501 = vunpack.c.l.b16 %v1419
  %v1502 = vunpack.c.h.b16 %v1419
  %v1503 = vunpack.c.l.b16 %v1420
  %v1504 = vunpack.c.h.b16 %v1420
  %v1505 = vunpack.c.l.b16 %v1421
  %v1506 = vunpack.c.h.b16 %v1421
  %v1507 = vunpack.c.l.b16 %v1422
  %v1508 = vunpack.c.h.b16 %v1422
  %v1509 = vunpack.c.l.b16 %v1423
  %v1510 = vunpack.c.h.b16 %v1423
  %v1511 = vunpack.c.l.b16 %v1424
  %v1512 = vunpack.c.h.b16 %v1424
  %v1513 = vunpack.c.l.b16 %v1425
  %v1514 = vunpack.c.h.b16 %v1425
  %v1515 = vunpack.c.l.b16 %v1426
  %v1516 = vunpack.c.h.b16 %v1426
  %v1517 = vunpack.c.l.b16 %v1427
  %v1518 = vunpack.c.h.b16 %v1427
  %v1519 = vunpack.c.l.b16 %v1428
  %v1520 = vunpack.c.h.b16 %v1428
  %v1521 = vunpack.c.l.b16 %v1429
  %v1522 = vunpack.c.h.b16 %v1429
  %v1523 = vunpack.c.l.b16 %v1430
  %v1524 = vunpack.c.h.b16 %v1430
  %v1525 = vunpack.c.l.b16 %v1431
  %v1526 = vunpack.c.h.b16 %v1431
  %v1527 = vunpack.c.l.b16 %v1432
  %v1528 = vunpack.c.h.b16 %v1432
  %v1529 = vpack.c.b16 %v1469, %v1465
  %v1530 = vpack.c.b16 %v1470, %v1466
  %v1531 = vpack.c.b16 %v1471, %v1467
  %v1532 = vpack.c.b16 %v1472, %v1468
  %v1533 = vpack.c.b16 %v1477, %v1473
  %v1534 = vpack.c.b16 %v1478, %v1474
  %v1535 = vpack.c.b16 %v1479, %v1475
  %v1536 = vpack.c.b16 %v1480, %v1476
  %v1537 = vpack.c.b16 %v1485, %v1481
  %v1538 = vpack.c.b16 %v1486, %v1482
  %v1539 = vpack.c.b16 %v1487, %v1483
  %v1540 = vpack.c.b16 %v1488, %v1484
  %v1541 = vpack.c.b16 %v1493, %v1489
  %v1542 = vpack.c.b16 %v1494, %v1490
  %v1543 = vpack.c.b16 %v1495, %v1491
  %v1544 = vpack.c.b16 %v1496, %v1492
  %v1545 = vpack.c.b16 %v1501, %v1497
  %v1546 = vpack.c.b16 %v1502, %v1498
  %v1547 = vpack.c.b16 %v1503, %v1499
  %v1548 = vpack.c.b16 %v1504, %v1500
  %v1549 = vpack.c.b16 %v1509, %v1505
  %v1550 = vpack.c.b16 %v1510, %v1506
  %v1551 = vpack.c.b16 %v1511, %v1507
  %v1552 = vpack.c.b16 %v1512, %v1508
  %v1553 = vpack.c.b16 %v1517, %v1513
  %v1554 = vpack.c.b16 %v1518, %v1514
  %v1555 = vpack.c.b16 %v1519, %v1515
  %v1556 = vpack.c.b16 %v1520, %v1516
  %v1557 = vpack.c.b16 %v1525, %v1521
  %v1558 = vpack.c.b16 %v1526, %v1522
  %v1559 = vpack.c.b16 %v1527, %v1523
  %v1560 = vpack.c.b16 %v1528, %v1524
  %1593 = vmatpush.bf16.msra.mxu0 %v1557
  %1594 = vmatpush.bf16.msra.mxu0 %v1553
  %1595 = vmatpush.bf16.msra.mxu0 %v1549
  %1596 = vmatpush.bf16.msra.mxu0 %v1545
  %1597 = vmatpush.bf16.msra.mxu0 %v1541
  %1598 = vmatpush.bf16.msra.mxu0 %v1537
  %1599 = vmatpush.bf16.msra.mxu0 %v1533
  %1600 = vmatpush.bf16.msra.mxu0 %v1529
  %1601 = vmatmul.bf16.gmra.mxu0 %v1400
  %v1602 = vpop.f32.mrf.mxu0
  %v1603 = vadd.f32 0.0, %v1602
  %v1604 = vpop.f32.mrf.mxu0
  %1605 = vdwg.mxu0
  %1606 = vmatpush.bf16.msra.mxu0 %v1558
  %1607 = vmatpush.bf16.msra.mxu0 %v1554
  %1608 = vmatpush.bf16.msra.mxu0 %v1550
  %1609 = vmatpush.bf16.msra.mxu0 %v1546
  %1610 = vmatpush.bf16.msra.mxu0 %v1542
  %1611 = vmatpush.bf16.msra.mxu0 %v1538
  %1612 = vmatpush.bf16.msra.mxu0 %v1534
  %1613 = vmatpush.bf16.msra.mxu0 %v1530
  %1614 = vmatmul.bf16.gmra.mxu0 %v1400
  %v1615 = vpop.f32.mrf.mxu0
  %v1616 = vadd.f32 0.0, %v1615
  %v1617 = vpop.f32.mrf.mxu0
  %1618 = vdwg.mxu0
  %1619 = vmatpush.bf16.msra.mxu0 %v1559
  %1620 = vmatpush.bf16.msra.mxu0 %v1555
  %1621 = vmatpush.bf16.msra.mxu0 %v1551
  %1622 = vmatpush.bf16.msra.mxu0 %v1547
  %1623 = vmatpush.bf16.msra.mxu0 %v1543
  %1624 = vmatpush.bf16.msra.mxu0 %v1539
  %1625 = vmatpush.bf16.msra.mxu0 %v1535
  %1626 = vmatpush.bf16.msra.mxu0 %v1531
  %1627 = vmatmul.bf16.gmra.mxu0 %v1400
  %v1628 = vpop.f32.mrf.mxu0
  %v1629 = vadd.f32 0.0, %v1628
  %v1630 = vpop.f32.mrf.mxu0
  %1631 = vdwg.mxu0
  %1632 = vmatpush.bf16.msra.mxu0 %v1560
  %1633 = vmatpush.bf16.msra.mxu0 %v1556
  %1634 = vmatpush.bf16.msra.mxu0 %v1552
  %1635 = vmatpush.bf16.msra.mxu0 %v1548
  %1636 = vmatpush.bf16.msra.mxu0 %v1544
  %1637 = vmatpush.bf16.msra.mxu0 %v1540
  %1638 = vmatpush.bf16.msra.mxu0 %v1536
  %1639 = vmatpush.bf16.msra.mxu0 %v1532
  %1640 = vmatmul.bf16.gmra.mxu0 %v1400
  %v1641 = vpop.f32.mrf.mxu0
  %v1642 = vadd.f32 0.0, %v1641
  %v1643 = vpop.f32.mrf.mxu0
  %1644 = vdwg.mxu0
  %v1645 = vadd.f32 %v1396, %v1603
  %v1646 = vadd.f32 %v1397, %v1616
  %v1647 = vadd.f32 %v1398, %v1629
  %v1648 = vadd.f32 %v1399, %v1642
  %s1649 = smul.u32 6, 8
  %s1650 = smul.addr %s1649, 8
  %s1651 = scalar_lea.vmem [#allocation2], %s1650
  %v1652 = vld [vmem:[%s1651 + $0x20] sm:$0xff]
  %v1653 = vld [vmem:[%s1651 + $0x28] sm:$0xff]
  %v1654 = vld [vmem:[%s1651 + $0x30] sm:$0xff]
  %v1655 = vld [vmem:[%s1651 + $0x38] sm:$0xff]
  %v1656 = vpack.c.bf16 %v1389, %v1389
  %v1657 = vld [vmem:[%s4] sm:$0xff]
  %v1658 = vld [vmem:[%s4 + $0x8] sm:$0xff]
  %v1659 = vld [vmem:[%s4 + $0x10] sm:$0xff]
  %v1660 = vld [vmem:[%s4 + $0x18] sm:$0xff]
  %v1661 = vld [vmem:[%s4 + $0x20] sm:$0xff]
  %v1662 = vld [vmem:[%s4 + $0x28] sm:$0xff]
  %v1663 = vld [vmem:[%s4 + $0x30] sm:$0xff]
  %v1664 = vld [vmem:[%s4 + $0x38] sm:$0xff]
  %v1665 = vld [vmem:[%s4 + $0x40] sm:$0xff]
  %v1666 = vld [vmem:[%s4 + $0x48] sm:$0xff]
  %v1667 = vld [vmem:[%s4 + $0x50] sm:$0xff]
  %v1668 = vld [vmem:[%s4 + $0x58] sm:$0xff]
  %v1669 = vld [vmem:[%s4 + $0x60] sm:$0xff]
  %v1670 = vld [vmem:[%s4 + $0x68] sm:$0xff]
  %v1671 = vld [vmem:[%s4 + $0x70] sm:$0xff]
  %v1672 = vld [vmem:[%s4 + $0x78] sm:$0xff]
  %v1673 = vld [vmem:[%s4 + $0x80] sm:$0xff]
  %v1674 = vld [vmem:[%s4 + $0x88] sm:$0xff]
  %v1675 = vld [vmem:[%s4 + $0x90] sm:$0xff]
  %v1676 = vld [vmem:[%s4 + $0x98] sm:$0xff]
  %v1677 = vld [vmem:[%s4 + $0xa0] sm:$0xff]
  %v1678 = vld [vmem:[%s4 + $0xa8] sm:$0xff]
  %v1679 = vld [vmem:[%s4 + $0xb0] sm:$0xff]
  %v1680 = vld [vmem:[%s4 + $0xb8] sm:$0xff]
  %v1681 = vld [vmem:[%s4 + $0xc0] sm:$0xff]
  %v1682 = vld [vmem:[%s4 + $0xc8] sm:$0xff]
  %v1683 = vld [vmem:[%s4 + $0xd0] sm:$0xff]
  %v1684 = vld [vmem:[%s4 + $0xd8] sm:$0xff]
  %v1685 = vld [vmem:[%s4 + $0xe0] sm:$0xff]
  %v1686 = vld [vmem:[%s4 + $0xe8] sm:$0xff]
  %v1687 = vld [vmem:[%s4 + $0xf0] sm:$0xff]
  %v1688 = vld [vmem:[%s4 + $0xf8] sm:$0xff]
  %v1721 = vunpack.c.l.b16 %v1657
  %v1722 = vunpack.c.h.b16 %v1657
  %v1723 = vunpack.c.l.b16 %v1658
  %v1724 = vunpack.c.h.b16 %v1658
  %v1725 = vunpack.c.l.b16 %v1659
  %v1726 = vunpack.c.h.b16 %v1659
  %v1727 = vunpack.c.l.b16 %v1660
  %v1728 = vunpack.c.h.b16 %v1660
  %v1729 = vunpack.c.l.b16 %v1661
  %v1730 = vunpack.c.h.b16 %v1661
  %v1731 = vunpack.c.l.b16 %v1662
  %v1732 = vunpack.c.h.b16 %v1662
  %v1733 = vunpack.c.l.b16 %v1663
  %v1734 = vunpack.c.h.b16 %v1663
  %v1735 = vunpack.c.l.b16 %v1664
  %v1736 = vunpack.c.h.b16 %v1664
  %v1737 = vunpack.c.l.b16 %v1665
  %v1738 = vunpack.c.h.b16 %v1665
  %v1739 = vunpack.c.l.b16 %v1666
  %v1740 = vunpack.c.h.b16 %v1666
  %v1741 = vunpack.c.l.b16 %v1667
  %v1742 = vunpack.c.h.b16 %v1667
  %v1743 = vunpack.c.l.b16 %v1668
  %v1744 = vunpack.c.h.b16 %v1668
  %v1745 = vunpack.c.l.b16 %v1669
  %v1746 = vunpack.c.h.b16 %v1669
  %v1747 = vunpack.c.l.b16 %v1670
  %v1748 = vunpack.c.h.b16 %v1670
  %v1749 = vunpack.c.l.b16 %v1671
  %v1750 = vunpack.c.h.b16 %v1671
  %v1751 = vunpack.c.l.b16 %v1672
  %v1752 = vunpack.c.h.b16 %v1672
  %v1753 = vunpack.c.l.b16 %v1673
  %v1754 = vunpack.c.h.b16 %v1673
  %v1755 = vunpack.c.l.b16 %v1674
  %v1756 = vunpack.c.h.b16 %v1674
  %v1757 = vunpack.c.l.b16 %v1675
  %v1758 = vunpack.c.h.b16 %v1675
  %v1759 = vunpack.c.l.b16 %v1676
  %v1760 = vunpack.c.h.b16 %v1676
  %v1761 = vunpack.c.l.b16 %v1677
  %v1762 = vunpack.c.h.b16 %v1677
  %v1763 = vunpack.c.l.b16 %v1678
  %v1764 = vunpack.c.h.b16 %v1678
  %v1765 = vunpack.c.l.b16 %v1679
  %v1766 = vunpack.c.h.b16 %v1679
  %v1767 = vunpack.c.l.b16 %v1680
  %v1768 = vunpack.c.h.b16 %v1680
  %v1769 = vunpack.c.l.b16 %v1681
  %v1770 = vunpack.c.h.b16 %v1681
  %v1771 = vunpack.c.l.b16 %v1682
  %v1772 = vunpack.c.h.b16 %v1682
  %v1773 = vunpack.c.l.b16 %v1683
  %v1774 = vunpack.c.h.b16 %v1683
  %v1775 = vunpack.c.l.b16 %v1684
  %v1776 = vunpack.c.h.b16 %v1684
  %v1777 = vunpack.c.l.b16 %v1685
  %v1778 = vunpack.c.h.b16 %v1685
  %v1779 = vunpack.c.l.b16 %v1686
  %v1780 = vunpack.c.h.b16 %v1686
  %v1781 = vunpack.c.l.b16 %v1687
  %v1782 = vunpack.c.h.b16 %v1687
  %v1783 = vunpack.c.l.b16 %v1688
  %v1784 = vunpack.c.h.b16 %v1688
  %v1785 = vpack.c.b16 %v1725, %v1721
  %v1786 = vpack.c.b16 %v1726, %v1722
  %v1787 = vpack.c.b16 %v1727, %v1723
  %v1788 = vpack.c.b16 %v1728, %v1724
  %v1789 = vpack.c.b16 %v1733, %v1729
  %v1790 = vpack.c.b16 %v1734, %v1730
  %v1791 = vpack.c.b16 %v1735, %v1731
  %v1792 = vpack.c.b16 %v1736, %v1732
  %v1793 = vpack.c.b16 %v1741, %v1737
  %v1794 = vpack.c.b16 %v1742, %v1738
  %v1795 = vpack.c.b16 %v1743, %v1739
  %v1796 = vpack.c.b16 %v1744, %v1740
  %v1797 = vpack.c.b16 %v1749, %v1745
  %v1798 = vpack.c.b16 %v1750, %v1746
  %v1799 = vpack.c.b16 %v1751, %v1747
  %v1800 = vpack.c.b16 %v1752, %v1748
  %v1801 = vpack.c.b16 %v1757, %v1753
  %v1802 = vpack.c.b16 %v1758, %v1754
  %v1803 = vpack.c.b16 %v1759, %v1755
  %v1804 = vpack.c.b16 %v1760, %v1756
  %v1805 = vpack.c.b16 %v1765, %v1761
  %v1806 = vpack.c.b16 %v1766, %v1762
  %v1807 = vpack.c.b16 %v1767, %v1763
  %v1808 = vpack.c.b16 %v1768, %v1764
  %v1809 = vpack.c.b16 %v1773, %v1769
  %v1810 = vpack.c.b16 %v1774, %v1770
  %v1811 = vpack.c.b16 %v1775, %v1771
  %v1812 = vpack.c.b16 %v1776, %v1772
  %v1813 = vpack.c.b16 %v1781, %v1777
  %v1814 = vpack.c.b16 %v1782, %v1778
  %v1815 = vpack.c.b16 %v1783, %v1779
  %v1816 = vpack.c.b16 %v1784, %v1780
  %1849 = vmatpush.bf16.msra.mxu0 %v1813
  %1850 = vmatpush.bf16.msra.mxu0 %v1809
  %1851 = vmatpush.bf16.msra.mxu0 %v1805
  %1852 = vmatpush.bf16.msra.mxu0 %v1801
  %1853 = vmatpush.bf16.msra.mxu0 %v1797
  %1854 = vmatpush.bf16.msra.mxu0 %v1793
  %1855 = vmatpush.bf16.msra.mxu0 %v1789
  %1856 = vmatpush.bf16.msra.mxu0 %v1785
  %1857 = vmatmul.bf16.gmra.mxu0 %v1656
  %v1858 = vpop.f32.mrf.mxu0
  %v1859 = vadd.f32 0.0, %v1858
  %v1860 = vpop.f32.mrf.mxu0
  %1861 = vdwg.mxu0
  %1862 = vmatpush.bf16.msra.mxu0 %v1814
  %1863 = vmatpush.bf16.msra.mxu0 %v1810
  %1864 = vmatpush.bf16.msra.mxu0 %v1806
  %1865 = vmatpush.bf16.msra.mxu0 %v1802
  %1866 = vmatpush.bf16.msra.mxu0 %v1798
  %1867 = vmatpush.bf16.msra.mxu0 %v1794
  %1868 = vmatpush.bf16.msra.mxu0 %v1790
  %1869 = vmatpush.bf16.msra.mxu0 %v1786
  %1870 = vmatmul.bf16.gmra.mxu0 %v1656
  %v1871 = vpop.f32.mrf.mxu0
  %v1872 = vadd.f32 0.0, %v1871
  %v1873 = vpop.f32.mrf.mxu0
  %1874 = vdwg.mxu0
  %1875 = vmatpush.bf16.msra.mxu0 %v1815
  %1876 = vmatpush.bf16.msra.mxu0 %v1811
  %1877 = vmatpush.bf16.msra.mxu0 %v1807
  %1878 = vmatpush.bf16.msra.mxu0 %v1803
  %1879 = vmatpush.bf16.msra.mxu0 %v1799
  %1880 = vmatpush.bf16.msra.mxu0 %v1795
  %1881 = vmatpush.bf16.msra.mxu0 %v1791
  %1882 = vmatpush.bf16.msra.mxu0 %v1787
  %1883 = vmatmul.bf16.gmra.mxu0 %v1656
  %v1884 = vpop.f32.mrf.mxu0
  %v1885 = vadd.f32 0.0, %v1884
  %v1886 = vpop.f32.mrf.mxu0
  %1887 = vdwg.mxu0
  %1888 = vmatpush.bf16.msra.mxu0 %v1816
  %1889 = vmatpush.bf16.msra.mxu0 %v1812
  %1890 = vmatpush.bf16.msra.mxu0 %v1808
  %1891 = vmatpush.bf16.msra.mxu0 %v1804
  %1892 = vmatpush.bf16.msra.mxu0 %v1800
  %1893 = vmatpush.bf16.msra.mxu0 %v1796
  %1894 = vmatpush.bf16.msra.mxu0 %v1792
  %1895 = vmatpush.bf16.msra.mxu0 %v1788
  %1896 = vmatmul.bf16.gmra.mxu0 %v1656
  %v1897 = vpop.f32.mrf.mxu0
  %v1898 = vadd.f32 0.0, %v1897
  %v1899 = vpop.f32.mrf.mxu0
  %1900 = vdwg.mxu0
  %v1901 = vadd.f32 %v1652, %v1859
  %v1902 = vadd.f32 %v1653, %v1872
  %v1903 = vadd.f32 %v1654, %v1885
  %v1904 = vadd.f32 %v1655, %v1898
  %v1905 = vxor.u32 %v1645, 2147483648
  %v1906 = vxor.u32 %v1646, 2147483648
  %v1907 = vxor.u32 %v1647, 2147483648
  %v1908 = vmul.f32 %v1905, 1.442695
  %v1909 = vpow.pop %v1908
  %v1910 = vmul.f32 %v1906, 1.442695
  %v1911 = vpow.pop %v1910
  %v1912 = vmul.f32 %v1907, 1.442695
  %v1913 = vpow.pop %v1912
  %v1914 = vadd.f32 %v1909, 1.0
  %v1915 = vadd.f32 %v1911, 1.0
  %v1916 = vadd.f32 %v1913, 1.0
  %v1917 = vrcp.pop %v1914
  %v1918 = vmul.f32 %v1914, %v1917
  %v1919 = vsub.f32 1.0, %v1918
  %v1920 = vmul.f32 %v1917, %v1919
  %v1921 = vadd.f32 %v1917, %v1920
  %vm1922 = vweird.f32 %v1914
  %vm1923 = vweird.f32 %v1917
  %vm1924 = vmor %vm1922, %vm1923
  %v1925 = vsel %vm1924, %v1917, %v1921
  %v1926 = vand.u32 2147483647, %v1914
  %vm1927 = vcmp.eq.f32.partialorder %v1926, 8.507059e+37
  %v1928 = vand.u32 %v1914, 2147483648
  %v1929 = vor.u32 1.1754944e-38, %v1928
  %v1930 = vsel %vm1927, %v1929, %v1925
  %v1931 = vmul.f32 1.0, %v1930
  %v1932 = vrcp.pop %v1915
  %v1933 = vmul.f32 %v1915, %v1932
  %v1934 = vsub.f32 1.0, %v1933
  %v1935 = vmul.f32 %v1932, %v1934
  %v1936 = vadd.f32 %v1932, %v1935
  %vm1937 = vweird.f32 %v1915
  %vm1938 = vweird.f32 %v1932
  %vm1939 = vmor %vm1937, %vm1938
  %v1940 = vsel %vm1939, %v1932, %v1936
  %v1941 = vand.u32 2147483647, %v1915
  %vm1942 = vcmp.eq.f32.partialorder %v1941, 8.507059e+37
  %v1943 = vand.u32 %v1915, 2147483648
  %v1944 = vor.u32 1.1754944e-38, %v1943
  %v1945 = vsel %vm1942, %v1944, %v1940
  %v1946 = vmul.f32 1.0, %v1945
  %v1947 = vrcp.pop %v1916
  %v1948 = vmul.f32 %v1916, %v1947
  %v1949 = vsub.f32 1.0, %v1948
  %v1950 = vmul.f32 %v1947, %v1949
  %v1951 = vadd.f32 %v1947, %v1950
  %vm1952 = vweird.f32 %v1916
  %vm1953 = vweird.f32 %v1947
  %vm1954 = vmor %vm1952, %vm1953
  %v1955 = vsel %vm1954, %v1947, %v1951
  %v1956 = vand.u32 2147483647, %v1916
  %vm1957 = vcmp.eq.f32.partialorder %v1956, 8.507059e+37
  %v1958 = vand.u32 %v1916, 2147483648
  %v1959 = vor.u32 1.1754944e-38, %v1958
  %v1960 = vsel %vm1957, %v1959, %v1955
  %v1961 = vmul.f32 1.0, %v1960
  %v1962 = vtanh.pop %v1648
  %v1963 = vmul.f32 %v1946, %v1324
  %v1964 = vmul.f32 %v1931, %v1962
  %v1965 = vadd.f32 %v1963, %v1964
  %v1966 = vtanh.pop %v1965
  %v1967 = vmul.f32 %v1961, %v1966
  %v1968 = vxor.u32 %v1901, 2147483648
  %v1969 = vxor.u32 %v1902, 2147483648
  %v1970 = vxor.u32 %v1903, 2147483648
  %v1971 = vmul.f32 %v1968, 1.442695
  %v1972 = vpow.pop %v1971
  %v1973 = vmul.f32 %v1969, 1.442695
  %v1974 = vpow.pop %v1973
  %v1975 = vmul.f32 %v1970, 1.442695
  %v1976 = vpow.pop %v1975
  %v1977 = vadd.f32 %v1972, 1.0
  %v1978 = vadd.f32 %v1974, 1.0
  %v1979 = vadd.f32 %v1976, 1.0
  %v1980 = vrcp.pop %v1977
  %v1981 = vmul.f32 %v1977, %v1980
  %v1982 = vsub.f32 1.0, %v1981
  %v1983 = vmul.f32 %v1980, %v1982
  %v1984 = vadd.f32 %v1980, %v1983
  %vm1985 = vweird.f32 %v1977
  %vm1986 = vweird.f32 %v1980
  %vm1987 = vmor %vm1985, %vm1986
  %v1988 = vsel %vm1987, %v1980, %v1984
  %v1989 = vand.u32 2147483647, %v1977
  %vm1990 = vcmp.eq.f32.partialorder %v1989, 8.507059e+37
  %v1991 = vand.u32 %v1977, 2147483648
  %v1992 = vor.u32 1.1754944e-38, %v1991
  %v1993 = vsel %vm1990, %v1992, %v1988
  %v1994 = vmul.f32 1.0, %v1993
  %v1995 = vrcp.pop %v1978
  %v1996 = vmul.f32 %v1978, %v1995
  %v1997 = vsub.f32 1.0, %v1996
  %v1998 = vmul.f32 %v1995, %v1997
  %v1999 = vadd.f32 %v1995, %v1998
  %vm2000 = vweird.f32 %v1978
  %vm2001 = vweird.f32 %v1995
  %vm2002 = vmor %vm2000, %vm2001
  %v2003 = vsel %vm2002, %v1995, %v1999
  %v2004 = vand.u32 2147483647, %v1978
  %vm2005 = vcmp.eq.f32.partialorder %v2004, 8.507059e+37
  %v2006 = vand.u32 %v1978, 2147483648
  %v2007 = vor.u32 1.1754944e-38, %v2006
  %v2008 = vsel %vm2005, %v2007, %v2003
  %v2009 = vmul.f32 1.0, %v2008
  %v2010 = vrcp.pop %v1979
  %v2011 = vmul.f32 %v1979, %v2010
  %v2012 = vsub.f32 1.0, %v2011
  %v2013 = vmul.f32 %v2010, %v2012
  %v2014 = vadd.f32 %v2010, %v2013
  %vm2015 = vweird.f32 %v1979
  %vm2016 = vweird.f32 %v2010
  %vm2017 = vmor %vm2015, %vm2016
  %v2018 = vsel %vm2017, %v2010, %v2014
  %v2019 = vand.u32 2147483647, %v1979
  %vm2020 = vcmp.eq.f32.partialorder %v2019, 8.507059e+37
  %v2021 = vand.u32 %v1979, 2147483648
  %v2022 = vor.u32 1.1754944e-38, %v2021
  %v2023 = vsel %vm2020, %v2022, %v2018
  %v2024 = vmul.f32 1.0, %v2023
  %v2025 = vtanh.pop %v1904
  %v2026 = vmul.f32 %v2009, %v1387
  %v2027 = vmul.f32 %v1994, %v2025
  %v2028 = vadd.f32 %v2026, %v2027
  %v2029 = vtanh.pop %v2028
  %v2030 = vmul.f32 %v2024, %v2029
  %s2031 = scalar_lea.vmem %s5, 16
  %2032 = vst [vmem:[%s2031] sm:$0xff] %v1967
  %s2033 = scalar_lea.vmem %s5, 96
  %2034 = vst [vmem:[%s2033 + $0x8] sm:$0xff] %v2030
  %s2035 = smul.u32 2, 8
  %s2036 = smul.addr %s2035, 8
  %s2037 = scalar_lea.vmem [#allocation2], %s2036
  %v2038 = vld [vmem:[%s2037] sm:$0xff]
  %v2039 = vld [vmem:[%s2037 + $0x8] sm:$0xff]
  %v2040 = vld [vmem:[%s2037 + $0x10] sm:$0xff]
  %v2041 = vld [vmem:[%s2037 + $0x18] sm:$0xff]
  %v2042 = vpack.c.bf16 %v1967, %v1967
  %v2043 = vld [vmem:[%s3] sm:$0xff]
  %v2044 = vld [vmem:[%s3 + $0x8] sm:$0xff]
  %v2045 = vld [vmem:[%s3 + $0x10] sm:$0xff]
  %v2046 = vld [vmem:[%s3 + $0x18] sm:$0xff]
  %v2047 = vld [vmem:[%s3 + $0x20] sm:$0xff]
  %v2048 = vld [vmem:[%s3 + $0x28] sm:$0xff]
  %v2049 = vld [vmem:[%s3 + $0x30] sm:$0xff]
  %v2050 = vld [vmem:[%s3 + $0x38] sm:$0xff]
  %v2051 = vld [vmem:[%s3 + $0x40] sm:$0xff]
  %v2052 = vld [vmem:[%s3 + $0x48] sm:$0xff]
  %v2053 = vld [vmem:[%s3 + $0x50] sm:$0xff]
  %v2054 = vld [vmem:[%s3 + $0x58] sm:$0xff]
  %v2055 = vld [vmem:[%s3 + $0x60] sm:$0xff]
  %v2056 = vld [vmem:[%s3 + $0x68] sm:$0xff]
  %v2057 = vld [vmem:[%s3 + $0x70] sm:$0xff]
  %v2058 = vld [vmem:[%s3 + $0x78] sm:$0xff]
  %v2059 = vld [vmem:[%s3 + $0x80] sm:$0xff]
  %v2060 = vld [vmem:[%s3 + $0x88] sm:$0xff]
  %v2061 = vld [vmem:[%s3 + $0x90] sm:$0xff]
  %v2062 = vld [vmem:[%s3 + $0x98] sm:$0xff]
  %v2063 = vld [vmem:[%s3 + $0xa0] sm:$0xff]
  %v2064 = vld [vmem:[%s3 + $0xa8] sm:$0xff]
  %v2065 = vld [vmem:[%s3 + $0xb0] sm:$0xff]
  %v2066 = vld [vmem:[%s3 + $0xb8] sm:$0xff]
  %v2067 = vld [vmem:[%s3 + $0xc0] sm:$0xff]
  %v2068 = vld [vmem:[%s3 + $0xc8] sm:$0xff]
  %v2069 = vld [vmem:[%s3 + $0xd0] sm:$0xff]
  %v2070 = vld [vmem:[%s3 + $0xd8] sm:$0xff]
  %v2071 = vld [vmem:[%s3 + $0xe0] sm:$0xff]
  %v2072 = vld [vmem:[%s3 + $0xe8] sm:$0xff]
  %v2073 = vld [vmem:[%s3 + $0xf0] sm:$0xff]
  %v2074 = vld [vmem:[%s3 + $0xf8] sm:$0xff]
  %v2107 = vunpack.c.l.b16 %v2043
  %v2108 = vunpack.c.h.b16 %v2043
  %v2109 = vunpack.c.l.b16 %v2044
  %v2110 = vunpack.c.h.b16 %v2044
  %v2111 = vunpack.c.l.b16 %v2045
  %v2112 = vunpack.c.h.b16 %v2045
  %v2113 = vunpack.c.l.b16 %v2046
  %v2114 = vunpack.c.h.b16 %v2046
  %v2115 = vunpack.c.l.b16 %v2047
  %v2116 = vunpack.c.h.b16 %v2047
  %v2117 = vunpack.c.l.b16 %v2048
  %v2118 = vunpack.c.h.b16 %v2048
  %v2119 = vunpack.c.l.b16 %v2049
  %v2120 = vunpack.c.h.b16 %v2049
  %v2121 = vunpack.c.l.b16 %v2050
  %v2122 = vunpack.c.h.b16 %v2050
  %v2123 = vunpack.c.l.b16 %v2051
  %v2124 = vunpack.c.h.b16 %v2051
  %v2125 = vunpack.c.l.b16 %v2052
  %v2126 = vunpack.c.h.b16 %v2052
  %v2127 = vunpack.c.l.b16 %v2053
  %v2128 = vunpack.c.h.b16 %v2053
  %v2129 = vunpack.c.l.b16 %v2054
  %v2130 = vunpack.c.h.b16 %v2054
  %v2131 = vunpack.c.l.b16 %v2055
  %v2132 = vunpack.c.h.b16 %v2055
  %v2133 = vunpack.c.l.b16 %v2056
  %v2134 = vunpack.c.h.b16 %v2056
  %v2135 = vunpack.c.l.b16 %v2057
  %v2136 = vunpack.c.h.b16 %v2057
  %v2137 = vunpack.c.l.b16 %v2058
  %v2138 = vunpack.c.h.b16 %v2058
  %v2139 = vunpack.c.l.b16 %v2059
  %v2140 = vunpack.c.h.b16 %v2059
  %v2141 = vunpack.c.l.b16 %v2060
  %v2142 = vunpack.c.h.b16 %v2060
  %v2143 = vunpack.c.l.b16 %v2061
  %v2144 = vunpack.c.h.b16 %v2061
  %v2145 = vunpack.c.l.b16 %v2062
  %v2146 = vunpack.c.h.b16 %v2062
  %v2147 = vunpack.c.l.b16 %v2063
  %v2148 = vunpack.c.h.b16 %v2063
  %v2149 = vunpack.c.l.b16 %v2064
  %v2150 = vunpack.c.h.b16 %v2064
  %v2151 = vunpack.c.l.b16 %v2065
  %v2152 = vunpack.c.h.b16 %v2065
  %v2153 = vunpack.c.l.b16 %v2066
  %v2154 = vunpack.c.h.b16 %v2066
  %v2155 = vunpack.c.l.b16 %v2067
  %v2156 = vunpack.c.h.b16 %v2067
  %v2157 = vunpack.c.l.b16 %v2068
  %v2158 = vunpack.c.h.b16 %v2068
  %v2159 = vunpack.c.l.b16 %v2069
  %v2160 = vunpack.c.h.b16 %v2069
  %v2161 = vunpack.c.l.b16 %v2070
  %v2162 = vunpack.c.h.b16 %v2070
  %v2163 = vunpack.c.l.b16 %v2071
  %v2164 = vunpack.c.h.b16 %v2071
  %v2165 = vunpack.c.l.b16 %v2072
  %v2166 = vunpack.c.h.b16 %v2072
  %v2167 = vunpack.c.l.b16 %v2073
  %v2168 = vunpack.c.h.b16 %v2073
  %v2169 = vunpack.c.l.b16 %v2074
  %v2170 = vunpack.c.h.b16 %v2074
  %v2171 = vpack.c.b16 %v2111, %v2107
  %v2172 = vpack.c.b16 %v2112, %v2108
  %v2173 = vpack.c.b16 %v2113, %v2109
  %v2174 = vpack.c.b16 %v2114, %v2110
  %v2175 = vpack.c.b16 %v2119, %v2115
  %v2176 = vpack.c.b16 %v2120, %v2116
  %v2177 = vpack.c.b16 %v2121, %v2117
  %v2178 = vpack.c.b16 %v2122, %v2118
  %v2179 = vpack.c.b16 %v2127, %v2123
  %v2180 = vpack.c.b16 %v2128, %v2124
  %v2181 = vpack.c.b16 %v2129, %v2125
  %v2182 = vpack.c.b16 %v2130, %v2126
  %v2183 = vpack.c.b16 %v2135, %v2131
  %v2184 = vpack.c.b16 %v2136, %v2132
  %v2185 = vpack.c.b16 %v2137, %v2133
  %v2186 = vpack.c.b16 %v2138, %v2134
  %v2187 = vpack.c.b16 %v2143, %v2139
  %v2188 = vpack.c.b16 %v2144, %v2140
  %v2189 = vpack.c.b16 %v2145, %v2141
  %v2190 = vpack.c.b16 %v2146, %v2142
  %v2191 = vpack.c.b16 %v2151, %v2147
  %v2192 = vpack.c.b16 %v2152, %v2148
  %v2193 = vpack.c.b16 %v2153, %v2149
  %v2194 = vpack.c.b16 %v2154, %v2150
  %v2195 = vpack.c.b16 %v2159, %v2155
  %v2196 = vpack.c.b16 %v2160, %v2156
  %v2197 = vpack.c.b16 %v2161, %v2157
  %v2198 = vpack.c.b16 %v2162, %v2158
  %v2199 = vpack.c.b16 %v2167, %v2163
  %v2200 = vpack.c.b16 %v2168, %v2164
  %v2201 = vpack.c.b16 %v2169, %v2165
  %v2202 = vpack.c.b16 %v2170, %v2166
  %2235 = vmatpush.bf16.msra.mxu0 %v2199
  %2236 = vmatpush.bf16.msra.mxu0 %v2195
  %2237 = vmatpush.bf16.msra.mxu0 %v2191
  %2238 = vmatpush.bf16.msra.mxu0 %v2187
  %2239 = vmatpush.bf16.msra.mxu0 %v2183
  %2240 = vmatpush.bf16.msra.mxu0 %v2179
  %2241 = vmatpush.bf16.msra.mxu0 %v2175
  %2242 = vmatpush.bf16.msra.mxu0 %v2171
  %2243 = vmatmul.bf16.gmra.mxu0 %v2042
  %v2244 = vpop.f32.mrf.mxu0
  %v2245 = vadd.f32 0.0, %v2244
  %v2246 = vpop.f32.mrf.mxu0
  %2247 = vdwg.mxu0
  %2248 = vmatpush.bf16.msra.mxu0 %v2200
  %2249 = vmatpush.bf16.msra.mxu0 %v2196
  %2250 = vmatpush.bf16.msra.mxu0 %v2192
  %2251 = vmatpush.bf16.msra.mxu0 %v2188
  %2252 = vmatpush.bf16.msra.mxu0 %v2184
  %2253 = vmatpush.bf16.msra.mxu0 %v2180
  %2254 = vmatpush.bf16.msra.mxu0 %v2176
  %2255 = vmatpush.bf16.msra.mxu0 %v2172
  %2256 = vmatmul.bf16.gmra.mxu0 %v2042
  %v2257 = vpop.f32.mrf.mxu0
  %v2258 = vadd.f32 0.0, %v2257
  %v2259 = vpop.f32.mrf.mxu0
  %2260 = vdwg.mxu0
  %2261 = vmatpush.bf16.msra.mxu0 %v2201
  %2262 = vmatpush.bf16.msra.mxu0 %v2197
  %2263 = vmatpush.bf16.msra.mxu0 %v2193
  %2264 = vmatpush.bf16.msra.mxu0 %v2189
  %2265 = vmatpush.bf16.msra.mxu0 %v2185
  %2266 = vmatpush.bf16.msra.mxu0 %v2181
  %2267 = vmatpush.bf16.msra.mxu0 %v2177
  %2268 = vmatpush.bf16.msra.mxu0 %v2173
  %2269 = vmatmul.bf16.gmra.mxu0 %v2042
  %v2270 = vpop.f32.mrf.mxu0
  %v2271 = vadd.f32 0.0, %v2270
  %v2272 = vpop.f32.mrf.mxu0
  %2273 = vdwg.mxu0
  %2274 = vmatpush.bf16.msra.mxu0 %v2202
  %2275 = vmatpush.bf16.msra.mxu0 %v2198
  %2276 = vmatpush.bf16.msra.mxu0 %v2194
  %2277 = vmatpush.bf16.msra.mxu0 %v2190
  %2278 = vmatpush.bf16.msra.mxu0 %v2186
  %2279 = vmatpush.bf16.msra.mxu0 %v2182
  %2280 = vmatpush.bf16.msra.mxu0 %v2178
  %2281 = vmatpush.bf16.msra.mxu0 %v2174
  %2282 = vmatmul.bf16.gmra.mxu0 %v2042
  %v2283 = vpop.f32.mrf.mxu0
  %v2284 = vadd.f32 0.0, %v2283
  %v2285 = vpop.f32.mrf.mxu0
  %2286 = vdwg.mxu0
  %v2287 = vadd.f32 %v2038, %v2245
  %v2288 = vadd.f32 %v2039, %v2258
  %v2289 = vadd.f32 %v2040, %v2271
  %v2290 = vadd.f32 %v2041, %v2284
  %s2291 = smul.u32 5, 8
  %s2292 = smul.addr %s2291, 8
  %s2293 = scalar_lea.vmem [#allocation2], %s2292
  %v2294 = vld [vmem:[%s2293 + $0x20] sm:$0xff]
  %v2295 = vld [vmem:[%s2293 + $0x28] sm:$0xff]
  %v2296 = vld [vmem:[%s2293 + $0x30] sm:$0xff]
  %v2297 = vld [vmem:[%s2293 + $0x38] sm:$0xff]
  %v2298 = vpack.c.bf16 %v2030, %v2030
  %v2299 = vld [vmem:[%s4] sm:$0xff]
  %v2300 = vld [vmem:[%s4 + $0x8] sm:$0xff]
  %v2301 = vld [vmem:[%s4 + $0x10] sm:$0xff]
  %v2302 = vld [vmem:[%s4 + $0x18] sm:$0xff]
  %v2303 = vld [vmem:[%s4 + $0x20] sm:$0xff]
  %v2304 = vld [vmem:[%s4 + $0x28] sm:$0xff]
  %v2305 = vld [vmem:[%s4 + $0x30] sm:$0xff]
  %v2306 = vld [vmem:[%s4 + $0x38] sm:$0xff]
  %v2307 = vld [vmem:[%s4 + $0x40] sm:$0xff]
  %v2308 = vld [vmem:[%s4 + $0x48] sm:$0xff]
  %v2309 = vld [vmem:[%s4 + $0x50] sm:$0xff]
  %v2310 = vld [vmem:[%s4 + $0x58] sm:$0xff]
  %v2311 = vld [vmem:[%s4 + $0x60] sm:$0xff]
  %v2312 = vld [vmem:[%s4 + $0x68] sm:$0xff]
  %v2313 = vld [vmem:[%s4 + $0x70] sm:$0xff]
  %v2314 = vld [vmem:[%s4 + $0x78] sm:$0xff]
  %v2315 = vld [vmem:[%s4 + $0x80] sm:$0xff]
  %v2316 = vld [vmem:[%s4 + $0x88] sm:$0xff]
  %v2317 = vld [vmem:[%s4 + $0x90] sm:$0xff]
  %v2318 = vld [vmem:[%s4 + $0x98] sm:$0xff]
  %v2319 = vld [vmem:[%s4 + $0xa0] sm:$0xff]
  %v2320 = vld [vmem:[%s4 + $0xa8] sm:$0xff]
  %v2321 = vld [vmem:[%s4 + $0xb0] sm:$0xff]
  %v2322 = vld [vmem:[%s4 + $0xb8] sm:$0xff]
  %v2323 = vld [vmem:[%s4 + $0xc0] sm:$0xff]
  %v2324 = vld [vmem:[%s4 + $0xc8] sm:$0xff]
  %v2325 = vld [vmem:[%s4 + $0xd0] sm:$0xff]
  %v2326 = vld [vmem:[%s4 + $0xd8] sm:$0xff]
  %v2327 = vld [vmem:[%s4 + $0xe0] sm:$0xff]
  %v2328 = vld [vmem:[%s4 + $0xe8] sm:$0xff]
  %v2329 = vld [vmem:[%s4 + $0xf0] sm:$0xff]
  %v2330 = vld [vmem:[%s4 + $0xf8] sm:$0xff]
  %v2363 = vunpack.c.l.b16 %v2299
  %v2364 = vunpack.c.h.b16 %v2299
  %v2365 = vunpack.c.l.b16 %v2300
  %v2366 = vunpack.c.h.b16 %v2300
  %v2367 = vunpack.c.l.b16 %v2301
  %v2368 = vunpack.c.h.b16 %v2301
  %v2369 = vunpack.c.l.b16 %v2302
  %v2370 = vunpack.c.h.b16 %v2302
  %v2371 = vunpack.c.l.b16 %v2303
  %v2372 = vunpack.c.h.b16 %v2303
  %v2373 = vunpack.c.l.b16 %v2304
  %v2374 = vunpack.c.h.b16 %v2304
  %v2375 = vunpack.c.l.b16 %v2305
  %v2376 = vunpack.c.h.b16 %v2305
  %v2377 = vunpack.c.l.b16 %v2306
  %v2378 = vunpack.c.h.b16 %v2306
  %v2379 = vunpack.c.l.b16 %v2307
  %v2380 = vunpack.c.h.b16 %v2307
  %v2381 = vunpack.c.l.b16 %v2308
  %v2382 = vunpack.c.h.b16 %v2308
  %v2383 = vunpack.c.l.b16 %v2309
  %v2384 = vunpack.c.h.b16 %v2309
  %v2385 = vunpack.c.l.b16 %v2310
  %v2386 = vunpack.c.h.b16 %v2310
  %v2387 = vunpack.c.l.b16 %v2311
  %v2388 = vunpack.c.h.b16 %v2311
  %v2389 = vunpack.c.l.b16 %v2312
  %v2390 = vunpack.c.h.b16 %v2312
  %v2391 = vunpack.c.l.b16 %v2313
  %v2392 = vunpack.c.h.b16 %v2313
  %v2393 = vunpack.c.l.b16 %v2314
  %v2394 = vunpack.c.h.b16 %v2314
  %v2395 = vunpack.c.l.b16 %v2315
  %v2396 = vunpack.c.h.b16 %v2315
  %v2397 = vunpack.c.l.b16 %v2316
  %v2398 = vunpack.c.h.b16 %v2316
  %v2399 = vunpack.c.l.b16 %v2317
  %v2400 = vunpack.c.h.b16 %v2317
  %v2401 = vunpack.c.l.b16 %v2318
  %v2402 = vunpack.c.h.b16 %v2318
  %v2403 = vunpack.c.l.b16 %v2319
  %v2404 = vunpack.c.h.b16 %v2319
  %v2405 = vunpack.c.l.b16 %v2320
  %v2406 = vunpack.c.h.b16 %v2320
  %v2407 = vunpack.c.l.b16 %v2321
  %v2408 = vunpack.c.h.b16 %v2321
  %v2409 = vunpack.c.l.b16 %v2322
  %v2410 = vunpack.c.h.b16 %v2322
  %v2411 = vunpack.c.l.b16 %v2323
  %v2412 = vunpack.c.h.b16 %v2323
  %v2413 = vunpack.c.l.b16 %v2324
  %v2414 = vunpack.c.h.b16 %v2324
  %v2415 = vunpack.c.l.b16 %v2325
  %v2416 = vunpack.c.h.b16 %v2325
  %v2417 = vunpack.c.l.b16 %v2326
  %v2418 = vunpack.c.h.b16 %v2326
  %v2419 = vunpack.c.l.b16 %v2327
  %v2420 = vunpack.c.h.b16 %v2327
  %v2421 = vunpack.c.l.b16 %v2328
  %v2422 = vunpack.c.h.b16 %v2328
  %v2423 = vunpack.c.l.b16 %v2329
  %v2424 = vunpack.c.h.b16 %v2329
  %v2425 = vunpack.c.l.b16 %v2330
  %v2426 = vunpack.c.h.b16 %v2330
  %v2427 = vpack.c.b16 %v2367, %v2363
  %v2428 = vpack.c.b16 %v2368, %v2364
  %v2429 = vpack.c.b16 %v2369, %v2365
  %v2430 = vpack.c.b16 %v2370, %v2366
  %v2431 = vpack.c.b16 %v2375, %v2371
  %v2432 = vpack.c.b16 %v2376, %v2372
  %v2433 = vpack.c.b16 %v2377, %v2373
  %v2434 = vpack.c.b16 %v2378, %v2374
  %v2435 = vpack.c.b16 %v2383, %v2379
  %v2436 = vpack.c.b16 %v2384, %v2380
  %v2437 = vpack.c.b16 %v2385, %v2381
  %v2438 = vpack.c.b16 %v2386, %v2382
  %v2439 = vpack.c.b16 %v2391, %v2387
  %v2440 = vpack.c.b16 %v2392, %v2388
  %v2441 = vpack.c.b16 %v2393, %v2389
  %v2442 = vpack.c.b16 %v2394, %v2390
  %v2443 = vpack.c.b16 %v2399, %v2395
  %v2444 = vpack.c.b16 %v2400, %v2396
  %v2445 = vpack.c.b16 %v2401, %v2397
  %v2446 = vpack.c.b16 %v2402, %v2398
  %v2447 = vpack.c.b16 %v2407, %v2403
  %v2448 = vpack.c.b16 %v2408, %v2404
  %v2449 = vpack.c.b16 %v2409, %v2405
  %v2450 = vpack.c.b16 %v2410, %v2406
  %v2451 = vpack.c.b16 %v2415, %v2411
  %v2452 = vpack.c.b16 %v2416, %v2412
  %v2453 = vpack.c.b16 %v2417, %v2413
  %v2454 = vpack.c.b16 %v2418, %v2414
  %v2455 = vpack.c.b16 %v2423, %v2419
  %v2456 = vpack.c.b16 %v2424, %v2420
  %v2457 = vpack.c.b16 %v2425, %v2421
  %v2458 = vpack.c.b16 %v2426, %v2422
  %2491 = vmatpush.bf16.msra.mxu0 %v2455
  %2492 = vmatpush.bf16.msra.mxu0 %v2451
  %2493 = vmatpush.bf16.msra.mxu0 %v2447
  %2494 = vmatpush.bf16.msra.mxu0 %v2443
  %2495 = vmatpush.bf16.msra.mxu0 %v2439
  %2496 = vmatpush.bf16.msra.mxu0 %v2435
  %2497 = vmatpush.bf16.msra.mxu0 %v2431
  %2498 = vmatpush.bf16.msra.mxu0 %v2427
  %2499 = vmatmul.bf16.gmra.mxu0 %v2298
  %v2500 = vpop.f32.mrf.mxu0
  %v2501 = vadd.f32 0.0, %v2500
  %v2502 = vpop.f32.mrf.mxu0
  %2503 = vdwg.mxu0
  %2504 = vmatpush.bf16.msra.mxu0 %v2456
  %2505 = vmatpush.bf16.msra.mxu0 %v2452
  %2506 = vmatpush.bf16.msra.mxu0 %v2448
  %2507 = vmatpush.bf16.msra.mxu0 %v2444
  %2508 = vmatpush.bf16.msra.mxu0 %v2440
  %2509 = vmatpush.bf16.msra.mxu0 %v2436
  %2510 = vmatpush.bf16.msra.mxu0 %v2432
  %2511 = vmatpush.bf16.msra.mxu0 %v2428
  %2512 = vmatmul.bf16.gmra.mxu0 %v2298
  %v2513 = vpop.f32.mrf.mxu0
  %v2514 = vadd.f32 0.0, %v2513
  %v2515 = vpop.f32.mrf.mxu0
  %2516 = vdwg.mxu0
  %2517 = vmatpush.bf16.msra.mxu0 %v2457
  %2518 = vmatpush.bf16.msra.mxu0 %v2453
  %2519 = vmatpush.bf16.msra.mxu0 %v2449
  %2520 = vmatpush.bf16.msra.mxu0 %v2445
  %2521 = vmatpush.bf16.msra.mxu0 %v2441
  %2522 = vmatpush.bf16.msra.mxu0 %v2437
  %2523 = vmatpush.bf16.msra.mxu0 %v2433
  %2524 = vmatpush.bf16.msra.mxu0 %v2429
  %2525 = vmatmul.bf16.gmra.mxu0 %v2298
  %v2526 = vpop.f32.mrf.mxu0
  %v2527 = vadd.f32 0.0, %v2526
  %v2528 = vpop.f32.mrf.mxu0
  %2529 = vdwg.mxu0
  %2530 = vmatpush.bf16.msra.mxu0 %v2458
  %2531 = vmatpush.bf16.msra.mxu0 %v2454
  %2532 = vmatpush.bf16.msra.mxu0 %v2450
  %2533 = vmatpush.bf16.msra.mxu0 %v2446
  %2534 = vmatpush.bf16.msra.mxu0 %v2442
  %2535 = vmatpush.bf16.msra.mxu0 %v2438
  %2536 = vmatpush.bf16.msra.mxu0 %v2434
  %2537 = vmatpush.bf16.msra.mxu0 %v2430
  %2538 = vmatmul.bf16.gmra.mxu0 %v2298
  %v2539 = vpop.f32.mrf.mxu0
  %v2540 = vadd.f32 0.0, %v2539
  %v2541 = vpop.f32.mrf.mxu0
  %2542 = vdwg.mxu0
  %v2543 = vadd.f32 %v2294, %v2501
  %v2544 = vadd.f32 %v2295, %v2514
  %v2545 = vadd.f32 %v2296, %v2527
  %v2546 = vadd.f32 %v2297, %v2540
  %v2547 = vxor.u32 %v2287, 2147483648
  %v2548 = vxor.u32 %v2288, 2147483648
  %v2549 = vxor.u32 %v2289, 2147483648
  %v2550 = vmul.f32 %v2547, 1.442695
  %v2551 = vpow.pop %v2550
  %v2552 = vmul.f32 %v2548, 1.442695
  %v2553 = vpow.pop %v2552
  %v2554 = vmul.f32 %v2549, 1.442695
  %v2555 = vpow.pop %v2554
  %v2556 = vadd.f32 %v2551, 1.0
  %v2557 = vadd.f32 %v2553, 1.0
  %v2558 = vadd.f32 %v2555, 1.0
  %v2559 = vrcp.pop %v2556
  %v2560 = vmul.f32 %v2556, %v2559
  %v2561 = vsub.f32 1.0, %v2560
  %v2562 = vmul.f32 %v2559, %v2561
  %v2563 = vadd.f32 %v2559, %v2562
  %vm2564 = vweird.f32 %v2556
  %vm2565 = vweird.f32 %v2559
  %vm2566 = vmor %vm2564, %vm2565
  %v2567 = vsel %vm2566, %v2559, %v2563
  %v2568 = vand.u32 2147483647, %v2556
  %vm2569 = vcmp.eq.f32.partialorder %v2568, 8.507059e+37
  %v2570 = vand.u32 %v2556, 2147483648
  %v2571 = vor.u32 1.1754944e-38, %v2570
  %v2572 = vsel %vm2569, %v2571, %v2567
  %v2573 = vmul.f32 1.0, %v2572
  %v2574 = vrcp.pop %v2557
  %v2575 = vmul.f32 %v2557, %v2574
  %v2576 = vsub.f32 1.0, %v2575
  %v2577 = vmul.f32 %v2574, %v2576
  %v2578 = vadd.f32 %v2574, %v2577
  %vm2579 = vweird.f32 %v2557
  %vm2580 = vweird.f32 %v2574
  %vm2581 = vmor %vm2579, %vm2580
  %v2582 = vsel %vm2581, %v2574, %v2578
  %v2583 = vand.u32 2147483647, %v2557
  %vm2584 = vcmp.eq.f32.partialorder %v2583, 8.507059e+37
  %v2585 = vand.u32 %v2557, 2147483648
  %v2586 = vor.u32 1.1754944e-38, %v2585
  %v2587 = vsel %vm2584, %v2586, %v2582
  %v2588 = vmul.f32 1.0, %v2587
  %v2589 = vrcp.pop %v2558
  %v2590 = vmul.f32 %v2558, %v2589
  %v2591 = vsub.f32 1.0, %v2590
  %v2592 = vmul.f32 %v2589, %v2591
  %v2593 = vadd.f32 %v2589, %v2592
  %vm2594 = vweird.f32 %v2558
  %vm2595 = vweird.f32 %v2589
  %vm2596 = vmor %vm2594, %vm2595
  %v2597 = vsel %vm2596, %v2589, %v2593
  %v2598 = vand.u32 2147483647, %v2558
  %vm2599 = vcmp.eq.f32.partialorder %v2598, 8.507059e+37
  %v2600 = vand.u32 %v2558, 2147483648
  %v2601 = vor.u32 1.1754944e-38, %v2600
  %v2602 = vsel %vm2599, %v2601, %v2597
  %v2603 = vmul.f32 1.0, %v2602
  %v2604 = vtanh.pop %v2290
  %v2605 = vmul.f32 %v2588, %v1965
  %v2606 = vmul.f32 %v2573, %v2604
  %v2607 = vadd.f32 %v2605, %v2606
  %v2608 = vtanh.pop %v2607
  %v2609 = vmul.f32 %v2603, %v2608
  %v2610 = vxor.u32 %v2543, 2147483648
  %v2611 = vxor.u32 %v2544, 2147483648
  %v2612 = vxor.u32 %v2545, 2147483648
  %v2613 = vmul.f32 %v2610, 1.442695
  %v2614 = vpow.pop %v2613
  %v2615 = vmul.f32 %v2611, 1.442695
  %v2616 = vpow.pop %v2615
  %v2617 = vmul.f32 %v2612, 1.442695
  %v2618 = vpow.pop %v2617
  %v2619 = vadd.f32 %v2614, 1.0
  %v2620 = vadd.f32 %v2616, 1.0
  %v2621 = vadd.f32 %v2618, 1.0
  %v2622 = vrcp.pop %v2619
  %v2623 = vmul.f32 %v2619, %v2622
  %v2624 = vsub.f32 1.0, %v2623
  %v2625 = vmul.f32 %v2622, %v2624
  %v2626 = vadd.f32 %v2622, %v2625
  %vm2627 = vweird.f32 %v2619
  %vm2628 = vweird.f32 %v2622
  %vm2629 = vmor %vm2627, %vm2628
  %v2630 = vsel %vm2629, %v2622, %v2626
  %v2631 = vand.u32 2147483647, %v2619
  %vm2632 = vcmp.eq.f32.partialorder %v2631, 8.507059e+37
  %v2633 = vand.u32 %v2619, 2147483648
  %v2634 = vor.u32 1.1754944e-38, %v2633
  %v2635 = vsel %vm2632, %v2634, %v2630
  %v2636 = vmul.f32 1.0, %v2635
  %v2637 = vrcp.pop %v2620
  %v2638 = vmul.f32 %v2620, %v2637
  %v2639 = vsub.f32 1.0, %v2638
  %v2640 = vmul.f32 %v2637, %v2639
  %v2641 = vadd.f32 %v2637, %v2640
  %vm2642 = vweird.f32 %v2620
  %vm2643 = vweird.f32 %v2637
  %vm2644 = vmor %vm2642, %vm2643
  %v2645 = vsel %vm2644, %v2637, %v2641
  %v2646 = vand.u32 2147483647, %v2620
  %vm2647 = vcmp.eq.f32.partialorder %v2646, 8.507059e+37
  %v2648 = vand.u32 %v2620, 2147483648
  %v2649 = vor.u32 1.1754944e-38, %v2648
  %v2650 = vsel %vm2647, %v2649, %v2645
  %v2651 = vmul.f32 1.0, %v2650
  %v2652 = vrcp.pop %v2621
  %v2653 = vmul.f32 %v2621, %v2652
  %v2654 = vsub.f32 1.0, %v2653
  %v2655 = vmul.f32 %v2652, %v2654
  %v2656 = vadd.f32 %v2652, %v2655
  %vm2657 = vweird.f32 %v2621
  %vm2658 = vweird.f32 %v2652
  %vm2659 = vmor %vm2657, %vm2658
  %v2660 = vsel %vm2659, %v2652, %v2656
  %v2661 = vand.u32 2147483647, %v2621
  %vm2662 = vcmp.eq.f32.partialorder %v2661, 8.507059e+37
  %v2663 = vand.u32 %v2621, 2147483648
  %v2664 = vor.u32 1.1754944e-38, %v2663
  %v2665 = vsel %vm2662, %v2664, %v2660
  %v2666 = vmul.f32 1.0, %v2665
  %v2667 = vtanh.pop %v2546
  %v2668 = vmul.f32 %v2651, %v2028
  %v2669 = vmul.f32 %v2636, %v2667
  %v2670 = vadd.f32 %v2668, %v2669
  %v2671 = vtanh.pop %v2670
  %v2672 = vmul.f32 %v2666, %v2671
  %s2673 = scalar_lea.vmem %s5, 32
  %2674 = vst [vmem:[%s2673] sm:$0xff] %v2609
  %s2675 = scalar_lea.vmem %s5, 80
  %2676 = vst [vmem:[%s2675 + $0x8] sm:$0xff] %v2672
  %s2677 = smul.u32 3, 8
  %s2678 = smul.addr %s2677, 8
  %s2679 = scalar_lea.vmem [#allocation2], %s2678
  %v2680 = vld [vmem:[%s2679] sm:$0xff]
  %v2681 = vld [vmem:[%s2679 + $0x8] sm:$0xff]
  %v2682 = vld [vmem:[%s2679 + $0x10] sm:$0xff]
  %v2683 = vld [vmem:[%s2679 + $0x18] sm:$0xff]
  %v2684 = vpack.c.bf16 %v2609, %v2609
  %v2685 = vld [vmem:[%s3] sm:$0xff]
  %v2686 = vld [vmem:[%s3 + $0x8] sm:$0xff]
  %v2687 = vld [vmem:[%s3 + $0x10] sm:$0xff]
  %v2688 = vld [vmem:[%s3 + $0x18] sm:$0xff]
  %v2689 = vld [vmem:[%s3 + $0x20] sm:$0xff]
  %v2690 = vld [vmem:[%s3 + $0x28] sm:$0xff]
  %v2691 = vld [vmem:[%s3 + $0x30] sm:$0xff]
  %v2692 = vld [vmem:[%s3 + $0x38] sm:$0xff]
  %v2693 = vld [vmem:[%s3 + $0x40] sm:$0xff]
  %v2694 = vld [vmem:[%s3 + $0x48] sm:$0xff]
  %v2695 = vld [vmem:[%s3 + $0x50] sm:$0xff]
  %v2696 = vld [vmem:[%s3 + $0x58] sm:$0xff]
  %v2697 = vld [vmem:[%s3 + $0x60] sm:$0xff]
  %v2698 = vld [vmem:[%s3 + $0x68] sm:$0xff]
  %v2699 = vld [vmem:[%s3 + $0x70] sm:$0xff]
  %v2700 = vld [vmem:[%s3 + $0x78] sm:$0xff]
  %v2701 = vld [vmem:[%s3 + $0x80] sm:$0xff]
  %v2702 = vld [vmem:[%s3 + $0x88] sm:$0xff]
  %v2703 = vld [vmem:[%s3 + $0x90] sm:$0xff]
  %v2704 = vld [vmem:[%s3 + $0x98] sm:$0xff]
  %v2705 = vld [vmem:[%s3 + $0xa0] sm:$0xff]
  %v2706 = vld [vmem:[%s3 + $0xa8] sm:$0xff]
  %v2707 = vld [vmem:[%s3 + $0xb0] sm:$0xff]
  %v2708 = vld [vmem:[%s3 + $0xb8] sm:$0xff]
  %v2709 = vld [vmem:[%s3 + $0xc0] sm:$0xff]
  %v2710 = vld [vmem:[%s3 + $0xc8] sm:$0xff]
  %v2711 = vld [vmem:[%s3 + $0xd0] sm:$0xff]
  %v2712 = vld [vmem:[%s3 + $0xd8] sm:$0xff]
  %v2713 = vld [vmem:[%s3 + $0xe0] sm:$0xff]
  %v2714 = vld [vmem:[%s3 + $0xe8] sm:$0xff]
  %v2715 = vld [vmem:[%s3 + $0xf0] sm:$0xff]
  %v2716 = vld [vmem:[%s3 + $0xf8] sm:$0xff]
  %v2749 = vunpack.c.l.b16 %v2685
  %v2750 = vunpack.c.h.b16 %v2685
  %v2751 = vunpack.c.l.b16 %v2686
  %v2752 = vunpack.c.h.b16 %v2686
  %v2753 = vunpack.c.l.b16 %v2687
  %v2754 = vunpack.c.h.b16 %v2687
  %v2755 = vunpack.c.l.b16 %v2688
  %v2756 = vunpack.c.h.b16 %v2688
  %v2757 = vunpack.c.l.b16 %v2689
  %v2758 = vunpack.c.h.b16 %v2689
  %v2759 = vunpack.c.l.b16 %v2690
  %v2760 = vunpack.c.h.b16 %v2690
  %v2761 = vunpack.c.l.b16 %v2691
  %v2762 = vunpack.c.h.b16 %v2691
  %v2763 = vunpack.c.l.b16 %v2692
  %v2764 = vunpack.c.h.b16 %v2692
  %v2765 = vunpack.c.l.b16 %v2693
  %v2766 = vunpack.c.h.b16 %v2693
  %v2767 = vunpack.c.l.b16 %v2694
  %v2768 = vunpack.c.h.b16 %v2694
  %v2769 = vunpack.c.l.b16 %v2695
  %v2770 = vunpack.c.h.b16 %v2695
  %v2771 = vunpack.c.l.b16 %v2696
  %v2772 = vunpack.c.h.b16 %v2696
  %v2773 = vunpack.c.l.b16 %v2697
  %v2774 = vunpack.c.h.b16 %v2697
  %v2775 = vunpack.c.l.b16 %v2698
  %v2776 = vunpack.c.h.b16 %v2698
  %v2777 = vunpack.c.l.b16 %v2699
  %v2778 = vunpack.c.h.b16 %v2699
  %v2779 = vunpack.c.l.b16 %v2700
  %v2780 = vunpack.c.h.b16 %v2700
  %v2781 = vunpack.c.l.b16 %v2701
  %v2782 = vunpack.c.h.b16 %v2701
  %v2783 = vunpack.c.l.b16 %v2702
  %v2784 = vunpack.c.h.b16 %v2702
  %v2785 = vunpack.c.l.b16 %v2703
  %v2786 = vunpack.c.h.b16 %v2703
  %v2787 = vunpack.c.l.b16 %v2704
  %v2788 = vunpack.c.h.b16 %v2704
  %v2789 = vunpack.c.l.b16 %v2705
  %v2790 = vunpack.c.h.b16 %v2705
  %v2791 = vunpack.c.l.b16 %v2706
  %v2792 = vunpack.c.h.b16 %v2706
  %v2793 = vunpack.c.l.b16 %v2707
  %v2794 = vunpack.c.h.b16 %v2707
  %v2795 = vunpack.c.l.b16 %v2708
  %v2796 = vunpack.c.h.b16 %v2708
  %v2797 = vunpack.c.l.b16 %v2709
  %v2798 = vunpack.c.h.b16 %v2709
  %v2799 = vunpack.c.l.b16 %v2710
  %v2800 = vunpack.c.h.b16 %v2710
  %v2801 = vunpack.c.l.b16 %v2711
  %v2802 = vunpack.c.h.b16 %v2711
  %v2803 = vunpack.c.l.b16 %v2712
  %v2804 = vunpack.c.h.b16 %v2712
  %v2805 = vunpack.c.l.b16 %v2713
  %v2806 = vunpack.c.h.b16 %v2713
  %v2807 = vunpack.c.l.b16 %v2714
  %v2808 = vunpack.c.h.b16 %v2714
  %v2809 = vunpack.c.l.b16 %v2715
  %v2810 = vunpack.c.h.b16 %v2715
  %v2811 = vunpack.c.l.b16 %v2716
  %v2812 = vunpack.c.h.b16 %v2716
  %v2813 = vpack.c.b16 %v2753, %v2749
  %v2814 = vpack.c.b16 %v2754, %v2750
  %v2815 = vpack.c.b16 %v2755, %v2751
  %v2816 = vpack.c.b16 %v2756, %v2752
  %v2817 = vpack.c.b16 %v2761, %v2757
  %v2818 = vpack.c.b16 %v2762, %v2758
  %v2819 = vpack.c.b16 %v2763, %v2759
  %v2820 = vpack.c.b16 %v2764, %v2760
  %v2821 = vpack.c.b16 %v2769, %v2765
  %v2822 = vpack.c.b16 %v2770, %v2766
  %v2823 = vpack.c.b16 %v2771, %v2767
  %v2824 = vpack.c.b16 %v2772, %v2768
  %v2825 = vpack.c.b16 %v2777, %v2773
  %v2826 = vpack.c.b16 %v2778, %v2774
  %v2827 = vpack.c.b16 %v2779, %v2775
  %v2828 = vpack.c.b16 %v2780, %v2776
  %v2829 = vpack.c.b16 %v2785, %v2781
  %v2830 = vpack.c.b16 %v2786, %v2782
  %v2831 = vpack.c.b16 %v2787, %v2783
  %v2832 = vpack.c.b16 %v2788, %v2784
  %v2833 = vpack.c.b16 %v2793, %v2789
  %v2834 = vpack.c.b16 %v2794, %v2790
  %v2835 = vpack.c.b16 %v2795, %v2791
  %v2836 = vpack.c.b16 %v2796, %v2792
  %v2837 = vpack.c.b16 %v2801, %v2797
  %v2838 = vpack.c.b16 %v2802, %v2798
  %v2839 = vpack.c.b16 %v2803, %v2799
  %v2840 = vpack.c.b16 %v2804, %v2800
  %v2841 = vpack.c.b16 %v2809, %v2805
  %v2842 = vpack.c.b16 %v2810, %v2806
  %v2843 = vpack.c.b16 %v2811, %v2807
  %v2844 = vpack.c.b16 %v2812, %v2808
  %2877 = vmatpush.bf16.msra.mxu0 %v2841
  %2878 = vmatpush.bf16.msra.mxu0 %v2837
  %2879 = vmatpush.bf16.msra.mxu0 %v2833
  %2880 = vmatpush.bf16.msra.mxu0 %v2829
  %2881 = vmatpush.bf16.msra.mxu0 %v2825
  %2882 = vmatpush.bf16.msra.mxu0 %v2821
  %2883 = vmatpush.bf16.msra.mxu0 %v2817
  %2884 = vmatpush.bf16.msra.mxu0 %v2813
  %2885 = vmatmul.bf16.gmra.mxu0 %v2684
  %v2886 = vpop.f32.mrf.mxu0
  %v2887 = vadd.f32 0.0, %v2886
  %v2888 = vpop.f32.mrf.mxu0
  %2889 = vdwg.mxu0
  %2890 = vmatpush.bf16.msra.mxu0 %v2842
  %2891 = vmatpush.bf16.msra.mxu0 %v2838
  %2892 = vmatpush.bf16.msra.mxu0 %v2834
  %2893 = vmatpush.bf16.msra.mxu0 %v2830
  %2894 = vmatpush.bf16.msra.mxu0 %v2826
  %2895 = vmatpush.bf16.msra.mxu0 %v2822
  %2896 = vmatpush.bf16.msra.mxu0 %v2818
  %2897 = vmatpush.bf16.msra.mxu0 %v2814
  %2898 = vmatmul.bf16.gmra.mxu0 %v2684
  %v2899 = vpop.f32.mrf.mxu0
  %v2900 = vadd.f32 0.0, %v2899
  %v2901 = vpop.f32.mrf.mxu0
  %2902 = vdwg.mxu0
  %2903 = vmatpush.bf16.msra.mxu0 %v2843
  %2904 = vmatpush.bf16.msra.mxu0 %v2839
  %2905 = vmatpush.bf16.msra.mxu0 %v2835
  %2906 = vmatpush.bf16.msra.mxu0 %v2831
  %2907 = vmatpush.bf16.msra.mxu0 %v2827
  %2908 = vmatpush.bf16.msra.mxu0 %v2823
  %2909 = vmatpush.bf16.msra.mxu0 %v2819
  %2910 = vmatpush.bf16.msra.mxu0 %v2815
  %2911 = vmatmul.bf16.gmra.mxu0 %v2684
  %v2912 = vpop.f32.mrf.mxu0
  %v2913 = vadd.f32 0.0, %v2912
  %v2914 = vpop.f32.mrf.mxu0
  %2915 = vdwg.mxu0
  %2916 = vmatpush.bf16.msra.mxu0 %v2844
  %2917 = vmatpush.bf16.msra.mxu0 %v2840
  %2918 = vmatpush.bf16.msra.mxu0 %v2836
  %2919 = vmatpush.bf16.msra.mxu0 %v2832
  %2920 = vmatpush.bf16.msra.mxu0 %v2828
  %2921 = vmatpush.bf16.msra.mxu0 %v2824
  %2922 = vmatpush.bf16.msra.mxu0 %v2820
  %2923 = vmatpush.bf16.msra.mxu0 %v2816
  %2924 = vmatmul.bf16.gmra.mxu0 %v2684
  %v2925 = vpop.f32.mrf.mxu0
  %v2926 = vadd.f32 0.0, %v2925
  %v2927 = vpop.f32.mrf.mxu0
  %2928 = vdwg.mxu0
  %v2929 = vadd.f32 %v2680, %v2887
  %v2930 = vadd.f32 %v2681, %v2900
  %v2931 = vadd.f32 %v2682, %v2913
  %v2932 = vadd.f32 %v2683, %v2926
  %s2933 = smul.u32 4, 8
  %s2934 = smul.addr %s2933, 8
  %s2935 = scalar_lea.vmem [#allocation2], %s2934
  %v2936 = vld [vmem:[%s2935 + $0x20] sm:$0xff]
  %v2937 = vld [vmem:[%s2935 + $0x28] sm:$0xff]
  %v2938 = vld [vmem:[%s2935 + $0x30] sm:$0xff]
  %v2939 = vld [vmem:[%s2935 + $0x38] sm:$0xff]
  %v2940 = vpack.c.bf16 %v2672, %v2672
  %v2941 = vld [vmem:[%s4] sm:$0xff]
  %v2942 = vld [vmem:[%s4 + $0x8] sm:$0xff]
  %v2943 = vld [vmem:[%s4 + $0x10] sm:$0xff]
  %v2944 = vld [vmem:[%s4 + $0x18] sm:$0xff]
  %v2945 = vld [vmem:[%s4 + $0x20] sm:$0xff]
  %v2946 = vld [vmem:[%s4 + $0x28] sm:$0xff]
  %v2947 = vld [vmem:[%s4 + $0x30] sm:$0xff]
  %v2948 = vld [vmem:[%s4 + $0x38] sm:$0xff]
  %v2949 = vld [vmem:[%s4 + $0x40] sm:$0xff]
  %v2950 = vld [vmem:[%s4 + $0x48] sm:$0xff]
  %v2951 = vld [vmem:[%s4 + $0x50] sm:$0xff]
  %v2952 = vld [vmem:[%s4 + $0x58] sm:$0xff]
  %v2953 = vld [vmem:[%s4 + $0x60] sm:$0xff]
  %v2954 = vld [vmem:[%s4 + $0x68] sm:$0xff]
  %v2955 = vld [vmem:[%s4 + $0x70] sm:$0xff]
  %v2956 = vld [vmem:[%s4 + $0x78] sm:$0xff]
  %v2957 = vld [vmem:[%s4 + $0x80] sm:$0xff]
  %v2958 = vld [vmem:[%s4 + $0x88] sm:$0xff]
  %v2959 = vld [vmem:[%s4 + $0x90] sm:$0xff]
  %v2960 = vld [vmem:[%s4 + $0x98] sm:$0xff]
  %v2961 = vld [vmem:[%s4 + $0xa0] sm:$0xff]
  %v2962 = vld [vmem:[%s4 + $0xa8] sm:$0xff]
  %v2963 = vld [vmem:[%s4 + $0xb0] sm:$0xff]
  %v2964 = vld [vmem:[%s4 + $0xb8] sm:$0xff]
  %v2965 = vld [vmem:[%s4 + $0xc0] sm:$0xff]
  %v2966 = vld [vmem:[%s4 + $0xc8] sm:$0xff]
  %v2967 = vld [vmem:[%s4 + $0xd0] sm:$0xff]
  %v2968 = vld [vmem:[%s4 + $0xd8] sm:$0xff]
  %v2969 = vld [vmem:[%s4 + $0xe0] sm:$0xff]
  %v2970 = vld [vmem:[%s4 + $0xe8] sm:$0xff]
  %v2971 = vld [vmem:[%s4 + $0xf0] sm:$0xff]
  %v2972 = vld [vmem:[%s4 + $0xf8] sm:$0xff]
  %v3005 = vunpack.c.l.b16 %v2941
  %v3006 = vunpack.c.h.b16 %v2941
  %v3007 = vunpack.c.l.b16 %v2942
  %v3008 = vunpack.c.h.b16 %v2942
  %v3009 = vunpack.c.l.b16 %v2943
  %v3010 = vunpack.c.h.b16 %v2943
  %v3011 = vunpack.c.l.b16 %v2944
  %v3012 = vunpack.c.h.b16 %v2944
  %v3013 = vunpack.c.l.b16 %v2945
  %v3014 = vunpack.c.h.b16 %v2945
  %v3015 = vunpack.c.l.b16 %v2946
  %v3016 = vunpack.c.h.b16 %v2946
  %v3017 = vunpack.c.l.b16 %v2947
  %v3018 = vunpack.c.h.b16 %v2947
  %v3019 = vunpack.c.l.b16 %v2948
  %v3020 = vunpack.c.h.b16 %v2948
  %v3021 = vunpack.c.l.b16 %v2949
  %v3022 = vunpack.c.h.b16 %v2949
  %v3023 = vunpack.c.l.b16 %v2950
  %v3024 = vunpack.c.h.b16 %v2950
  %v3025 = vunpack.c.l.b16 %v2951
  %v3026 = vunpack.c.h.b16 %v2951
  %v3027 = vunpack.c.l.b16 %v2952
  %v3028 = vunpack.c.h.b16 %v2952
  %v3029 = vunpack.c.l.b16 %v2953
  %v3030 = vunpack.c.h.b16 %v2953
  %v3031 = vunpack.c.l.b16 %v2954
  %v3032 = vunpack.c.h.b16 %v2954
  %v3033 = vunpack.c.l.b16 %v2955
  %v3034 = vunpack.c.h.b16 %v2955
  %v3035 = vunpack.c.l.b16 %v2956
  %v3036 = vunpack.c.h.b16 %v2956
  %v3037 = vunpack.c.l.b16 %v2957
  %v3038 = vunpack.c.h.b16 %v2957
  %v3039 = vunpack.c.l.b16 %v2958
  %v3040 = vunpack.c.h.b16 %v2958
  %v3041 = vunpack.c.l.b16 %v2959
  %v3042 = vunpack.c.h.b16 %v2959
  %v3043 = vunpack.c.l.b16 %v2960
  %v3044 = vunpack.c.h.b16 %v2960
  %v3045 = vunpack.c.l.b16 %v2961
  %v3046 = vunpack.c.h.b16 %v2961
  %v3047 = vunpack.c.l.b16 %v2962
  %v3048 = vunpack.c.h.b16 %v2962
  %v3049 = vunpack.c.l.b16 %v2963
  %v3050 = vunpack.c.h.b16 %v2963
  %v3051 = vunpack.c.l.b16 %v2964
  %v3052 = vunpack.c.h.b16 %v2964
  %v3053 = vunpack.c.l.b16 %v2965
  %v3054 = vunpack.c.h.b16 %v2965
  %v3055 = vunpack.c.l.b16 %v2966
  %v3056 = vunpack.c.h.b16 %v2966
  %v3057 = vunpack.c.l.b16 %v2967
  %v3058 = vunpack.c.h.b16 %v2967
  %v3059 = vunpack.c.l.b16 %v2968
  %v3060 = vunpack.c.h.b16 %v2968
  %v3061 = vunpack.c.l.b16 %v2969
  %v3062 = vunpack.c.h.b16 %v2969
  %v3063 = vunpack.c.l.b16 %v2970
  %v3064 = vunpack.c.h.b16 %v2970
  %v3065 = vunpack.c.l.b16 %v2971
  %v3066 = vunpack.c.h.b16 %v2971
  %v3067 = vunpack.c.l.b16 %v2972
  %v3068 = vunpack.c.h.b16 %v2972
  %v3069 = vpack.c.b16 %v3009, %v3005
  %v3070 = vpack.c.b16 %v3010, %v3006
  %v3071 = vpack.c.b16 %v3011, %v3007
  %v3072 = vpack.c.b16 %v3012, %v3008
  %v3073 = vpack.c.b16 %v3017, %v3013
  %v3074 = vpack.c.b16 %v3018, %v3014
  %v3075 = vpack.c.b16 %v3019, %v3015
  %v3076 = vpack.c.b16 %v3020, %v3016
  %v3077 = vpack.c.b16 %v3025, %v3021
  %v3078 = vpack.c.b16 %v3026, %v3022
  %v3079 = vpack.c.b16 %v3027, %v3023
  %v3080 = vpack.c.b16 %v3028, %v3024
  %v3081 = vpack.c.b16 %v3033, %v3029
  %v3082 = vpack.c.b16 %v3034, %v3030
  %v3083 = vpack.c.b16 %v3035, %v3031
  %v3084 = vpack.c.b16 %v3036, %v3032
  %v3085 = vpack.c.b16 %v3041, %v3037
  %v3086 = vpack.c.b16 %v3042, %v3038
  %v3087 = vpack.c.b16 %v3043, %v3039
  %v3088 = vpack.c.b16 %v3044, %v3040
  %v3089 = vpack.c.b16 %v3049, %v3045
  %v3090 = vpack.c.b16 %v3050, %v3046
  %v3091 = vpack.c.b16 %v3051, %v3047
  %v3092 = vpack.c.b16 %v3052, %v3048
  %v3093 = vpack.c.b16 %v3057, %v3053
  %v3094 = vpack.c.b16 %v3058, %v3054
  %v3095 = vpack.c.b16 %v3059, %v3055
  %v3096 = vpack.c.b16 %v3060, %v3056
  %v3097 = vpack.c.b16 %v3065, %v3061
  %v3098 = vpack.c.b16 %v3066, %v3062
  %v3099 = vpack.c.b16 %v3067, %v3063
  %v3100 = vpack.c.b16 %v3068, %v3064
  %3133 = vmatpush.bf16.msra.mxu0 %v3097
  %3134 = vmatpush.bf16.msra.mxu0 %v3093
  %3135 = vmatpush.bf16.msra.mxu0 %v3089
  %3136 = vmatpush.bf16.msra.mxu0 %v3085
  %3137 = vmatpush.bf16.msra.mxu0 %v3081
  %3138 = vmatpush.bf16.msra.mxu0 %v3077
  %3139 = vmatpush.bf16.msra.mxu0 %v3073
  %3140 = vmatpush.bf16.msra.mxu0 %v3069
  %3141 = vmatmul.bf16.gmra.mxu0 %v2940
  %v3142 = vpop.f32.mrf.mxu0
  %v3143 = vadd.f32 0.0, %v3142
  %v3144 = vpop.f32.mrf.mxu0
  %3145 = vdwg.mxu0
  %3146 = vmatpush.bf16.msra.mxu0 %v3098
  %3147 = vmatpush.bf16.msra.mxu0 %v3094
  %3148 = vmatpush.bf16.msra.mxu0 %v3090
  %3149 = vmatpush.bf16.msra.mxu0 %v3086
  %3150 = vmatpush.bf16.msra.mxu0 %v3082
  %3151 = vmatpush.bf16.msra.mxu0 %v3078
  %3152 = vmatpush.bf16.msra.mxu0 %v3074
  %3153 = vmatpush.bf16.msra.mxu0 %v3070
  %3154 = vmatmul.bf16.gmra.mxu0 %v2940
  %v3155 = vpop.f32.mrf.mxu0
  %v3156 = vadd.f32 0.0, %v3155
  %v3157 = vpop.f32.mrf.mxu0
  %3158 = vdwg.mxu0
  %3159 = vmatpush.bf16.msra.mxu0 %v3099
  %3160 = vmatpush.bf16.msra.mxu0 %v3095
  %3161 = vmatpush.bf16.msra.mxu0 %v3091
  %3162 = vmatpush.bf16.msra.mxu0 %v3087
  %3163 = vmatpush.bf16.msra.mxu0 %v3083
  %3164 = vmatpush.bf16.msra.mxu0 %v3079
  %3165 = vmatpush.bf16.msra.mxu0 %v3075
  %3166 = vmatpush.bf16.msra.mxu0 %v3071
  %3167 = vmatmul.bf16.gmra.mxu0 %v2940
  %v3168 = vpop.f32.mrf.mxu0
  %v3169 = vadd.f32 0.0, %v3168
  %v3170 = vpop.f32.mrf.mxu0
  %3171 = vdwg.mxu0
  %3172 = vmatpush.bf16.msra.mxu0 %v3100
  %3173 = vmatpush.bf16.msra.mxu0 %v3096
  %3174 = vmatpush.bf16.msra.mxu0 %v3092
  %3175 = vmatpush.bf16.msra.mxu0 %v3088
  %3176 = vmatpush.bf16.msra.mxu0 %v3084
  %3177 = vmatpush.bf16.msra.mxu0 %v3080
  %3178 = vmatpush.bf16.msra.mxu0 %v3076
  %3179 = vmatpush.bf16.msra.mxu0 %v3072
  %3180 = vmatmul.bf16.gmra.mxu0 %v2940
  %v3181 = vpop.f32.mrf.mxu0
  %v3182 = vadd.f32 0.0, %v3181
  %v3183 = vpop.f32.mrf.mxu0
  %3184 = vdwg.mxu0
  %v3185 = vadd.f32 %v2936, %v3143
  %v3186 = vadd.f32 %v2937, %v3156
  %v3187 = vadd.f32 %v2938, %v3169
  %v3188 = vadd.f32 %v2939, %v3182
  %v3189 = vxor.u32 %v2929, 2147483648
  %v3190 = vxor.u32 %v2930, 2147483648
  %v3191 = vxor.u32 %v2931, 2147483648
  %v3192 = vmul.f32 %v3189, 1.442695
  %v3193 = vpow.pop %v3192
  %v3194 = vmul.f32 %v3190, 1.442695
  %v3195 = vpow.pop %v3194
  %v3196 = vmul.f32 %v3191, 1.442695
  %v3197 = vpow.pop %v3196
  %v3198 = vadd.f32 %v3193, 1.0
  %v3199 = vadd.f32 %v3195, 1.0
  %v3200 = vadd.f32 %v3197, 1.0
  %v3201 = vrcp.pop %v3198
  %v3202 = vmul.f32 %v3198, %v3201
  %v3203 = vsub.f32 1.0, %v3202
  %v3204 = vmul.f32 %v3201, %v3203
  %v3205 = vadd.f32 %v3201, %v3204
  %vm3206 = vweird.f32 %v3198
  %vm3207 = vweird.f32 %v3201
  %vm3208 = vmor %vm3206, %vm3207
  %v3209 = vsel %vm3208, %v3201, %v3205
  %v3210 = vand.u32 2147483647, %v3198
  %vm3211 = vcmp.eq.f32.partialorder %v3210, 8.507059e+37
  %v3212 = vand.u32 %v3198, 2147483648
  %v3213 = vor.u32 1.1754944e-38, %v3212
  %v3214 = vsel %vm3211, %v3213, %v3209
  %v3215 = vmul.f32 1.0, %v3214
  %v3216 = vrcp.pop %v3199
  %v3217 = vmul.f32 %v3199, %v3216
  %v3218 = vsub.f32 1.0, %v3217
  %v3219 = vmul.f32 %v3216, %v3218
  %v3220 = vadd.f32 %v3216, %v3219
  %vm3221 = vweird.f32 %v3199
  %vm3222 = vweird.f32 %v3216
  %vm3223 = vmor %vm3221, %vm3222
  %v3224 = vsel %vm3223, %v3216, %v3220
  %v3225 = vand.u32 2147483647, %v3199
  %vm3226 = vcmp.eq.f32.partialorder %v3225, 8.507059e+37
  %v3227 = vand.u32 %v3199, 2147483648
  %v3228 = vor.u32 1.1754944e-38, %v3227
  %v3229 = vsel %vm3226, %v3228, %v3224
  %v3230 = vmul.f32 1.0, %v3229
  %v3231 = vrcp.pop %v3200
  %v3232 = vmul.f32 %v3200, %v3231
  %v3233 = vsub.f32 1.0, %v3232
  %v3234 = vmul.f32 %v3231, %v3233
  %v3235 = vadd.f32 %v3231, %v3234
  %vm3236 = vweird.f32 %v3200
  %vm3237 = vweird.f32 %v3231
  %vm3238 = vmor %vm3236, %vm3237
  %v3239 = vsel %vm3238, %v3231, %v3235
  %v3240 = vand.u32 2147483647, %v3200
  %vm3241 = vcmp.eq.f32.partialorder %v3240, 8.507059e+37
  %v3242 = vand.u32 %v3200, 2147483648
  %v3243 = vor.u32 1.1754944e-38, %v3242
  %v3244 = vsel %vm3241, %v3243, %v3239
  %v3245 = vmul.f32 1.0, %v3244
  %v3246 = vtanh.pop %v2932
  %v3247 = vmul.f32 %v3230, %v2607
  %v3248 = vmul.f32 %v3215, %v3246
  %v3249 = vadd.f32 %v3247, %v3248
  %v3250 = vtanh.pop %v3249
  %v3251 = vmul.f32 %v3245, %v3250
  %v3252 = vxor.u32 %v3185, 2147483648
  %v3253 = vxor.u32 %v3186, 2147483648
  %v3254 = vxor.u32 %v3187, 2147483648
  %v3255 = vmul.f32 %v3252, 1.442695
  %v3256 = vpow.pop %v3255
  %v3257 = vmul.f32 %v3253, 1.442695
  %v3258 = vpow.pop %v3257
  %v3259 = vmul.f32 %v3254, 1.442695
  %v3260 = vpow.pop %v3259
  %v3261 = vadd.f32 %v3256, 1.0
  %v3262 = vadd.f32 %v3258, 1.0
  %v3263 = vadd.f32 %v3260, 1.0
  %v3264 = vrcp.pop %v3261
  %v3265 = vmul.f32 %v3261, %v3264
  %v3266 = vsub.f32 1.0, %v3265
  %v3267 = vmul.f32 %v3264, %v3266
  %v3268 = vadd.f32 %v3264, %v3267
  %vm3269 = vweird.f32 %v3261
  %vm3270 = vweird.f32 %v3264
  %vm3271 = vmor %vm3269, %vm3270
  %v3272 = vsel %vm3271, %v3264, %v3268
  %v3273 = vand.u32 2147483647, %v3261
  %vm3274 = vcmp.eq.f32.partialorder %v3273, 8.507059e+37
  %v3275 = vand.u32 %v3261, 2147483648
  %v3276 = vor.u32 1.1754944e-38, %v3275
  %v3277 = vsel %vm3274, %v3276, %v3272
  %v3278 = vmul.f32 1.0, %v3277
  %v3279 = vrcp.pop %v3262
  %v3280 = vmul.f32 %v3262, %v3279
  %v3281 = vsub.f32 1.0, %v3280
  %v3282 = vmul.f32 %v3279, %v3281
  %v3283 = vadd.f32 %v3279, %v3282
  %vm3284 = vweird.f32 %v3262
  %vm3285 = vweird.f32 %v3279
  %vm3286 = vmor %vm3284, %vm3285
  %v3287 = vsel %vm3286, %v3279, %v3283
  %v3288 = vand.u32 2147483647, %v3262
  %vm3289 = vcmp.eq.f32.partialorder %v3288, 8.507059e+37
  %v3290 = vand.u32 %v3262, 2147483648
  %v3291 = vor.u32 1.1754944e-38, %v3290
  %v3292 = vsel %vm3289, %v3291, %v3287
  %v3293 = vmul.f32 1.0, %v3292
  %v3294 = vrcp.pop %v3263
  %v3295 = vmul.f32 %v3263, %v3294
  %v3296 = vsub.f32 1.0, %v3295
  %v3297 = vmul.f32 %v3294, %v3296
  %v3298 = vadd.f32 %v3294, %v3297
  %vm3299 = vweird.f32 %v3263
  %vm3300 = vweird.f32 %v3294
  %vm3301 = vmor %vm3299, %vm3300
  %v3302 = vsel %vm3301, %v3294, %v3298
  %v3303 = vand.u32 2147483647, %v3263
  %vm3304 = vcmp.eq.f32.partialorder %v3303, 8.507059e+37
  %v3305 = vand.u32 %v3263, 2147483648
  %v3306 = vor.u32 1.1754944e-38, %v3305
  %v3307 = vsel %vm3304, %v3306, %v3302
  %v3308 = vmul.f32 1.0, %v3307
  %v3309 = vtanh.pop %v3188
  %v3310 = vmul.f32 %v3293, %v2670
  %v3311 = vmul.f32 %v3278, %v3309
  %v3312 = vadd.f32 %v3310, %v3311
  %v3313 = vtanh.pop %v3312
  %v3314 = vmul.f32 %v3308, %v3313
  %s3315 = scalar_lea.vmem %s5, 48
  %3316 = vst [vmem:[%s3315] sm:$0xff] %v3251
  %s3317 = scalar_lea.vmem %s5, 64
  %3318 = vst [vmem:[%s3317 + $0x8] sm:$0xff] %v3314
  %v3319 = vld [vmem:[%s2935] sm:$0xff]
  %v3320 = vld [vmem:[%s2935 + $0x8] sm:$0xff]
  %v3321 = vld [vmem:[%s2935 + $0x10] sm:$0xff]
  %v3322 = vld [vmem:[%s2935 + $0x18] sm:$0xff]
  %v3323 = vpack.c.bf16 %v3251, %v3251
  %v3324 = vld [vmem:[%s3] sm:$0xff]
  %v3325 = vld [vmem:[%s3 + $0x8] sm:$0xff]
  %v3326 = vld [vmem:[%s3 + $0x10] sm:$0xff]
  %v3327 = vld [vmem:[%s3 + $0x18] sm:$0xff]
  %v3328 = vld [vmem:[%s3 + $0x20] sm:$0xff]
  %v3329 = vld [vmem:[%s3 + $0x28] sm:$0xff]
  %v3330 = vld [vmem:[%s3 + $0x30] sm:$0xff]
  %v3331 = vld [vmem:[%s3 + $0x38] sm:$0xff]
  %v3332 = vld [vmem:[%s3 + $0x40] sm:$0xff]
  %v3333 = vld [vmem:[%s3 + $0x48] sm:$0xff]
  %v3334 = vld [vmem:[%s3 + $0x50] sm:$0xff]
  %v3335 = vld [vmem:[%s3 + $0x58] sm:$0xff]
  %v3336 = vld [vmem:[%s3 + $0x60] sm:$0xff]
  %v3337 = vld [vmem:[%s3 + $0x68] sm:$0xff]
  %v3338 = vld [vmem:[%s3 + $0x70] sm:$0xff]
  %v3339 = vld [vmem:[%s3 + $0x78] sm:$0xff]
  %v3340 = vld [vmem:[%s3 + $0x80] sm:$0xff]
  %v3341 = vld [vmem:[%s3 + $0x88] sm:$0xff]
  %v3342 = vld [vmem:[%s3 + $0x90] sm:$0xff]
  %v3343 = vld [vmem:[%s3 + $0x98] sm:$0xff]
  %v3344 = vld [vmem:[%s3 + $0xa0] sm:$0xff]
  %v3345 = vld [vmem:[%s3 + $0xa8] sm:$0xff]
  %v3346 = vld [vmem:[%s3 + $0xb0] sm:$0xff]
  %v3347 = vld [vmem:[%s3 + $0xb8] sm:$0xff]
  %v3348 = vld [vmem:[%s3 + $0xc0] sm:$0xff]
  %v3349 = vld [vmem:[%s3 + $0xc8] sm:$0xff]
  %v3350 = vld [vmem:[%s3 + $0xd0] sm:$0xff]
  %v3351 = vld [vmem:[%s3 + $0xd8] sm:$0xff]
  %v3352 = vld [vmem:[%s3 + $0xe0] sm:$0xff]
  %v3353 = vld [vmem:[%s3 + $0xe8] sm:$0xff]
  %v3354 = vld [vmem:[%s3 + $0xf0] sm:$0xff]
  %v3355 = vld [vmem:[%s3 + $0xf8] sm:$0xff]
  %v3388 = vunpack.c.l.b16 %v3324
  %v3389 = vunpack.c.h.b16 %v3324
  %v3390 = vunpack.c.l.b16 %v3325
  %v3391 = vunpack.c.h.b16 %v3325
  %v3392 = vunpack.c.l.b16 %v3326
  %v3393 = vunpack.c.h.b16 %v3326
  %v3394 = vunpack.c.l.b16 %v3327
  %v3395 = vunpack.c.h.b16 %v3327
  %v3396 = vunpack.c.l.b16 %v3328
  %v3397 = vunpack.c.h.b16 %v3328
  %v3398 = vunpack.c.l.b16 %v3329
  %v3399 = vunpack.c.h.b16 %v3329
  %v3400 = vunpack.c.l.b16 %v3330
  %v3401 = vunpack.c.h.b16 %v3330
  %v3402 = vunpack.c.l.b16 %v3331
  %v3403 = vunpack.c.h.b16 %v3331
  %v3404 = vunpack.c.l.b16 %v3332
  %v3405 = vunpack.c.h.b16 %v3332
  %v3406 = vunpack.c.l.b16 %v3333
  %v3407 = vunpack.c.h.b16 %v3333
  %v3408 = vunpack.c.l.b16 %v3334
  %v3409 = vunpack.c.h.b16 %v3334
  %v3410 = vunpack.c.l.b16 %v3335
  %v3411 = vunpack.c.h.b16 %v3335
  %v3412 = vunpack.c.l.b16 %v3336
  %v3413 = vunpack.c.h.b16 %v3336
  %v3414 = vunpack.c.l.b16 %v3337
  %v3415 = vunpack.c.h.b16 %v3337
  %v3416 = vunpack.c.l.b16 %v3338
  %v3417 = vunpack.c.h.b16 %v3338
  %v3418 = vunpack.c.l.b16 %v3339
  %v3419 = vunpack.c.h.b16 %v3339
  %v3420 = vunpack.c.l.b16 %v3340
  %v3421 = vunpack.c.h.b16 %v3340
  %v3422 = vunpack.c.l.b16 %v3341
  %v3423 = vunpack.c.h.b16 %v3341
  %v3424 = vunpack.c.l.b16 %v3342
  %v3425 = vunpack.c.h.b16 %v3342
  %v3426 = vunpack.c.l.b16 %v3343
  %v3427 = vunpack.c.h.b16 %v3343
  %v3428 = vunpack.c.l.b16 %v3344
  %v3429 = vunpack.c.h.b16 %v3344
  %v3430 = vunpack.c.l.b16 %v3345
  %v3431 = vunpack.c.h.b16 %v3345
  %v3432 = vunpack.c.l.b16 %v3346
  %v3433 = vunpack.c.h.b16 %v3346
  %v3434 = vunpack.c.l.b16 %v3347
  %v3435 = vunpack.c.h.b16 %v3347
  %v3436 = vunpack.c.l.b16 %v3348
  %v3437 = vunpack.c.h.b16 %v3348
  %v3438 = vunpack.c.l.b16 %v3349
  %v3439 = vunpack.c.h.b16 %v3349
  %v3440 = vunpack.c.l.b16 %v3350
  %v3441 = vunpack.c.h.b16 %v3350
  %v3442 = vunpack.c.l.b16 %v3351
  %v3443 = vunpack.c.h.b16 %v3351
  %v3444 = vunpack.c.l.b16 %v3352
  %v3445 = vunpack.c.h.b16 %v3352
  %v3446 = vunpack.c.l.b16 %v3353
  %v3447 = vunpack.c.h.b16 %v3353
  %v3448 = vunpack.c.l.b16 %v3354
  %v3449 = vunpack.c.h.b16 %v3354
  %v3450 = vunpack.c.l.b16 %v3355
  %v3451 = vunpack.c.h.b16 %v3355
  %v3452 = vpack.c.b16 %v3392, %v3388
  %v3453 = vpack.c.b16 %v3393, %v3389
  %v3454 = vpack.c.b16 %v3394, %v3390
  %v3455 = vpack.c.b16 %v3395, %v3391
  %v3456 = vpack.c.b16 %v3400, %v3396
  %v3457 = vpack.c.b16 %v3401, %v3397
  %v3458 = vpack.c.b16 %v3402, %v3398
  %v3459 = vpack.c.b16 %v3403, %v3399
  %v3460 = vpack.c.b16 %v3408, %v3404
  %v3461 = vpack.c.b16 %v3409, %v3405
  %v3462 = vpack.c.b16 %v3410, %v3406
  %v3463 = vpack.c.b16 %v3411, %v3407
  %v3464 = vpack.c.b16 %v3416, %v3412
  %v3465 = vpack.c.b16 %v3417, %v3413
  %v3466 = vpack.c.b16 %v3418, %v3414
  %v3467 = vpack.c.b16 %v3419, %v3415
  %v3468 = vpack.c.b16 %v3424, %v3420
  %v3469 = vpack.c.b16 %v3425, %v3421
  %v3470 = vpack.c.b16 %v3426, %v3422
  %v3471 = vpack.c.b16 %v3427, %v3423
  %v3472 = vpack.c.b16 %v3432, %v3428
  %v3473 = vpack.c.b16 %v3433, %v3429
  %v3474 = vpack.c.b16 %v3434, %v3430
  %v3475 = vpack.c.b16 %v3435, %v3431
  %v3476 = vpack.c.b16 %v3440, %v3436
  %v3477 = vpack.c.b16 %v3441, %v3437
  %v3478 = vpack.c.b16 %v3442, %v3438
  %v3479 = vpack.c.b16 %v3443, %v3439
  %v3480 = vpack.c.b16 %v3448, %v3444
  %v3481 = vpack.c.b16 %v3449, %v3445
  %v3482 = vpack.c.b16 %v3450, %v3446
  %v3483 = vpack.c.b16 %v3451, %v3447
  %3516 = vmatpush.bf16.msra.mxu0 %v3480
  %3517 = vmatpush.bf16.msra.mxu0 %v3476
  %3518 = vmatpush.bf16.msra.mxu0 %v3472
  %3519 = vmatpush.bf16.msra.mxu0 %v3468
  %3520 = vmatpush.bf16.msra.mxu0 %v3464
  %3521 = vmatpush.bf16.msra.mxu0 %v3460
  %3522 = vmatpush.bf16.msra.mxu0 %v3456
  %3523 = vmatpush.bf16.msra.mxu0 %v3452
  %3524 = vmatmul.bf16.gmra.mxu0 %v3323
  %v3525 = vpop.f32.mrf.mxu0
  %v3526 = vadd.f32 0.0, %v3525
  %v3527 = vpop.f32.mrf.mxu0
  %3528 = vdwg.mxu0
  %3529 = vmatpush.bf16.msra.mxu0 %v3481
  %3530 = vmatpush.bf16.msra.mxu0 %v3477
  %3531 = vmatpush.bf16.msra.mxu0 %v3473
  %3532 = vmatpush.bf16.msra.mxu0 %v3469
  %3533 = vmatpush.bf16.msra.mxu0 %v3465
  %3534 = vmatpush.bf16.msra.mxu0 %v3461
  %3535 = vmatpush.bf16.msra.mxu0 %v3457
  %3536 = vmatpush.bf16.msra.mxu0 %v3453
  %3537 = vmatmul.bf16.gmra.mxu0 %v3323
  %v3538 = vpop.f32.mrf.mxu0
  %v3539 = vadd.f32 0.0, %v3538
  %v3540 = vpop.f32.mrf.mxu0
  %3541 = vdwg.mxu0
  %3542 = vmatpush.bf16.msra.mxu0 %v3482
  %3543 = vmatpush.bf16.msra.mxu0 %v3478
  %3544 = vmatpush.bf16.msra.mxu0 %v3474
  %3545 = vmatpush.bf16.msra.mxu0 %v3470
  %3546 = vmatpush.bf16.msra.mxu0 %v3466
  %3547 = vmatpush.bf16.msra.mxu0 %v3462
  %3548 = vmatpush.bf16.msra.mxu0 %v3458
  %3549 = vmatpush.bf16.msra.mxu0 %v3454
  %3550 = vmatmul.bf16.gmra.mxu0 %v3323
  %v3551 = vpop.f32.mrf.mxu0
  %v3552 = vadd.f32 0.0, %v3551
  %v3553 = vpop.f32.mrf.mxu0
  %3554 = vdwg.mxu0
  %3555 = vmatpush.bf16.msra.mxu0 %v3483
  %3556 = vmatpush.bf16.msra.mxu0 %v3479
  %3557 = vmatpush.bf16.msra.mxu0 %v3475
  %3558 = vmatpush.bf16.msra.mxu0 %v3471
  %3559 = vmatpush.bf16.msra.mxu0 %v3467
  %3560 = vmatpush.bf16.msra.mxu0 %v3463
  %3561 = vmatpush.bf16.msra.mxu0 %v3459
  %3562 = vmatpush.bf16.msra.mxu0 %v3455
  %3563 = vmatmul.bf16.gmra.mxu0 %v3323
  %v3564 = vpop.f32.mrf.mxu0
  %v3565 = vadd.f32 0.0, %v3564
  %v3566 = vpop.f32.mrf.mxu0
  %3567 = vdwg.mxu0
  %v3568 = vadd.f32 %v3319, %v3526
  %v3569 = vadd.f32 %v3320, %v3539
  %v3570 = vadd.f32 %v3321, %v3552
  %v3571 = vadd.f32 %v3322, %v3565
  %v3572 = vld [vmem:[%s2679 + $0x20] sm:$0xff]
  %v3573 = vld [vmem:[%s2679 + $0x28] sm:$0xff]
  %v3574 = vld [vmem:[%s2679 + $0x30] sm:$0xff]
  %v3575 = vld [vmem:[%s2679 + $0x38] sm:$0xff]
  %v3576 = vpack.c.bf16 %v3314, %v3314
  %v3577 = vld [vmem:[%s4] sm:$0xff]
  %v3578 = vld [vmem:[%s4 + $0x8] sm:$0xff]
  %v3579 = vld [vmem:[%s4 + $0x10] sm:$0xff]
  %v3580 = vld [vmem:[%s4 + $0x18] sm:$0xff]
  %v3581 = vld [vmem:[%s4 + $0x20] sm:$0xff]
  %v3582 = vld [vmem:[%s4 + $0x28] sm:$0xff]
  %v3583 = vld [vmem:[%s4 + $0x30] sm:$0xff]
  %v3584 = vld [vmem:[%s4 + $0x38] sm:$0xff]
  %v3585 = vld [vmem:[%s4 + $0x40] sm:$0xff]
  %v3586 = vld [vmem:[%s4 + $0x48] sm:$0xff]
  %v3587 = vld [vmem:[%s4 + $0x50] sm:$0xff]
  %v3588 = vld [vmem:[%s4 + $0x58] sm:$0xff]
  %v3589 = vld [vmem:[%s4 + $0x60] sm:$0xff]
  %v3590 = vld [vmem:[%s4 + $0x68] sm:$0xff]
  %v3591 = vld [vmem:[%s4 + $0x70] sm:$0xff]
  %v3592 = vld [vmem:[%s4 + $0x78] sm:$0xff]
  %v3593 = vld [vmem:[%s4 + $0x80] sm:$0xff]
  %v3594 = vld [vmem:[%s4 + $0x88] sm:$0xff]
  %v3595 = vld [vmem:[%s4 + $0x90] sm:$0xff]
  %v3596 = vld [vmem:[%s4 + $0x98] sm:$0xff]
  %v3597 = vld [vmem:[%s4 + $0xa0] sm:$0xff]
  %v3598 = vld [vmem:[%s4 + $0xa8] sm:$0xff]
  %v3599 = vld [vmem:[%s4 + $0xb0] sm:$0xff]
  %v3600 = vld [vmem:[%s4 + $0xb8] sm:$0xff]
  %v3601 = vld [vmem:[%s4 + $0xc0] sm:$0xff]
  %v3602 = vld [vmem:[%s4 + $0xc8] sm:$0xff]
  %v3603 = vld [vmem:[%s4 + $0xd0] sm:$0xff]
  %v3604 = vld [vmem:[%s4 + $0xd8] sm:$0xff]
  %v3605 = vld [vmem:[%s4 + $0xe0] sm:$0xff]
  %v3606 = vld [vmem:[%s4 + $0xe8] sm:$0xff]
  %v3607 = vld [vmem:[%s4 + $0xf0] sm:$0xff]
  %v3608 = vld [vmem:[%s4 + $0xf8] sm:$0xff]
  %v3641 = vunpack.c.l.b16 %v3577
  %v3642 = vunpack.c.h.b16 %v3577
  %v3643 = vunpack.c.l.b16 %v3578
  %v3644 = vunpack.c.h.b16 %v3578
  %v3645 = vunpack.c.l.b16 %v3579
  %v3646 = vunpack.c.h.b16 %v3579
  %v3647 = vunpack.c.l.b16 %v3580
  %v3648 = vunpack.c.h.b16 %v3580
  %v3649 = vunpack.c.l.b16 %v3581
  %v3650 = vunpack.c.h.b16 %v3581
  %v3651 = vunpack.c.l.b16 %v3582
  %v3652 = vunpack.c.h.b16 %v3582
  %v3653 = vunpack.c.l.b16 %v3583
  %v3654 = vunpack.c.h.b16 %v3583
  %v3655 = vunpack.c.l.b16 %v3584
  %v3656 = vunpack.c.h.b16 %v3584
  %v3657 = vunpack.c.l.b16 %v3585
  %v3658 = vunpack.c.h.b16 %v3585
  %v3659 = vunpack.c.l.b16 %v3586
  %v3660 = vunpack.c.h.b16 %v3586
  %v3661 = vunpack.c.l.b16 %v3587
  %v3662 = vunpack.c.h.b16 %v3587
  %v3663 = vunpack.c.l.b16 %v3588
  %v3664 = vunpack.c.h.b16 %v3588
  %v3665 = vunpack.c.l.b16 %v3589
  %v3666 = vunpack.c.h.b16 %v3589
  %v3667 = vunpack.c.l.b16 %v3590
  %v3668 = vunpack.c.h.b16 %v3590
  %v3669 = vunpack.c.l.b16 %v3591
  %v3670 = vunpack.c.h.b16 %v3591
  %v3671 = vunpack.c.l.b16 %v3592
  %v3672 = vunpack.c.h.b16 %v3592
  %v3673 = vunpack.c.l.b16 %v3593
  %v3674 = vunpack.c.h.b16 %v3593
  %v3675 = vunpack.c.l.b16 %v3594
  %v3676 = vunpack.c.h.b16 %v3594
  %v3677 = vunpack.c.l.b16 %v3595
  %v3678 = vunpack.c.h.b16 %v3595
  %v3679 = vunpack.c.l.b16 %v3596
  %v3680 = vunpack.c.h.b16 %v3596
  %v3681 = vunpack.c.l.b16 %v3597
  %v3682 = vunpack.c.h.b16 %v3597
  %v3683 = vunpack.c.l.b16 %v3598
  %v3684 = vunpack.c.h.b16 %v3598
  %v3685 = vunpack.c.l.b16 %v3599
  %v3686 = vunpack.c.h.b16 %v3599
  %v3687 = vunpack.c.l.b16 %v3600
  %v3688 = vunpack.c.h.b16 %v3600
  %v3689 = vunpack.c.l.b16 %v3601
  %v3690 = vunpack.c.h.b16 %v3601
  %v3691 = vunpack.c.l.b16 %v3602
  %v3692 = vunpack.c.h.b16 %v3602
  %v3693 = vunpack.c.l.b16 %v3603
  %v3694 = vunpack.c.h.b16 %v3603
  %v3695 = vunpack.c.l.b16 %v3604
  %v3696 = vunpack.c.h.b16 %v3604
  %v3697 = vunpack.c.l.b16 %v3605
  %v3698 = vunpack.c.h.b16 %v3605
  %v3699 = vunpack.c.l.b16 %v3606
  %v3700 = vunpack.c.h.b16 %v3606
  %v3701 = vunpack.c.l.b16 %v3607
  %v3702 = vunpack.c.h.b16 %v3607
  %v3703 = vunpack.c.l.b16 %v3608
  %v3704 = vunpack.c.h.b16 %v3608
  %v3705 = vpack.c.b16 %v3645, %v3641
  %v3706 = vpack.c.b16 %v3646, %v3642
  %v3707 = vpack.c.b16 %v3647, %v3643
  %v3708 = vpack.c.b16 %v3648, %v3644
  %v3709 = vpack.c.b16 %v3653, %v3649
  %v3710 = vpack.c.b16 %v3654, %v3650
  %v3711 = vpack.c.b16 %v3655, %v3651
  %v3712 = vpack.c.b16 %v3656, %v3652
  %v3713 = vpack.c.b16 %v3661, %v3657
  %v3714 = vpack.c.b16 %v3662, %v3658
  %v3715 = vpack.c.b16 %v3663, %v3659
  %v3716 = vpack.c.b16 %v3664, %v3660
  %v3717 = vpack.c.b16 %v3669, %v3665
  %v3718 = vpack.c.b16 %v3670, %v3666
  %v3719 = vpack.c.b16 %v3671, %v3667
  %v3720 = vpack.c.b16 %v3672, %v3668
  %v3721 = vpack.c.b16 %v3677, %v3673
  %v3722 = vpack.c.b16 %v3678, %v3674
  %v3723 = vpack.c.b16 %v3679, %v3675
  %v3724 = vpack.c.b16 %v3680, %v3676
  %v3725 = vpack.c.b16 %v3685, %v3681
  %v3726 = vpack.c.b16 %v3686, %v3682
  %v3727 = vpack.c.b16 %v3687, %v3683
  %v3728 = vpack.c.b16 %v3688, %v3684
  %v3729 = vpack.c.b16 %v3693, %v3689
  %v3730 = vpack.c.b16 %v3694, %v3690
  %v3731 = vpack.c.b16 %v3695, %v3691
  %v3732 = vpack.c.b16 %v3696, %v3692
  %v3733 = vpack.c.b16 %v3701, %v3697
  %v3734 = vpack.c.b16 %v3702, %v3698
  %v3735 = vpack.c.b16 %v3703, %v3699
  %v3736 = vpack.c.b16 %v3704, %v3700
  %3769 = vmatpush.bf16.msra.mxu0 %v3733
  %3770 = vmatpush.bf16.msra.mxu0 %v3729
  %3771 = vmatpush.bf16.msra.mxu0 %v3725
  %3772 = vmatpush.bf16.msra.mxu0 %v3721
  %3773 = vmatpush.bf16.msra.mxu0 %v3717
  %3774 = vmatpush.bf16.msra.mxu0 %v3713
  %3775 = vmatpush.bf16.msra.mxu0 %v3709
  %3776 = vmatpush.bf16.msra.mxu0 %v3705
  %3777 = vmatmul.bf16.gmra.mxu0 %v3576
  %v3778 = vpop.f32.mrf.mxu0
  %v3779 = vadd.f32 0.0, %v3778
  %v3780 = vpop.f32.mrf.mxu0
  %3781 = vdwg.mxu0
  %3782 = vmatpush.bf16.msra.mxu0 %v3734
  %3783 = vmatpush.bf16.msra.mxu0 %v3730
  %3784 = vmatpush.bf16.msra.mxu0 %v3726
  %3785 = vmatpush.bf16.msra.mxu0 %v3722
  %3786 = vmatpush.bf16.msra.mxu0 %v3718
  %3787 = vmatpush.bf16.msra.mxu0 %v3714
  %3788 = vmatpush.bf16.msra.mxu0 %v3710
  %3789 = vmatpush.bf16.msra.mxu0 %v3706
  %3790 = vmatmul.bf16.gmra.mxu0 %v3576
  %v3791 = vpop.f32.mrf.mxu0
  %v3792 = vadd.f32 0.0, %v3791
  %v3793 = vpop.f32.mrf.mxu0
  %3794 = vdwg.mxu0
  %3795 = vmatpush.bf16.msra.mxu0 %v3735
  %3796 = vmatpush.bf16.msra.mxu0 %v3731
  %3797 = vmatpush.bf16.msra.mxu0 %v3727
  %3798 = vmatpush.bf16.msra.mxu0 %v3723
  %3799 = vmatpush.bf16.msra.mxu0 %v3719
  %3800 = vmatpush.bf16.msra.mxu0 %v3715
  %3801 = vmatpush.bf16.msra.mxu0 %v3711
  %3802 = vmatpush.bf16.msra.mxu0 %v3707
  %3803 = vmatmul.bf16.gmra.mxu0 %v3576
  %v3804 = vpop.f32.mrf.mxu0
  %v3805 = vadd.f32 0.0, %v3804
  %v3806 = vpop.f32.mrf.mxu0
  %3807 = vdwg.mxu0
  %3808 = vmatpush.bf16.msra.mxu0 %v3736
  %3809 = vmatpush.bf16.msra.mxu0 %v3732
  %3810 = vmatpush.bf16.msra.mxu0 %v3728
  %3811 = vmatpush.bf16.msra.mxu0 %v3724
  %3812 = vmatpush.bf16.msra.mxu0 %v3720
  %3813 = vmatpush.bf16.msra.mxu0 %v3716
  %3814 = vmatpush.bf16.msra.mxu0 %v3712
  %3815 = vmatpush.bf16.msra.mxu0 %v3708
  %3816 = vmatmul.bf16.gmra.mxu0 %v3576
  %v3817 = vpop.f32.mrf.mxu0
  %v3818 = vadd.f32 0.0, %v3817
  %v3819 = vpop.f32.mrf.mxu0
  %3820 = vdwg.mxu0
  %v3821 = vadd.f32 %v3572, %v3779
  %v3822 = vadd.f32 %v3573, %v3792
  %v3823 = vadd.f32 %v3574, %v3805
  %v3824 = vadd.f32 %v3575, %v3818
  %v3825 = vxor.u32 %v3568, 2147483648
  %v3826 = vxor.u32 %v3569, 2147483648
  %v3827 = vxor.u32 %v3570, 2147483648
  %v3828 = vmul.f32 %v3825, 1.442695
  %v3829 = vpow.pop %v3828
  %v3830 = vmul.f32 %v3826, 1.442695
  %v3831 = vpow.pop %v3830
  %v3832 = vmul.f32 %v3827, 1.442695
  %v3833 = vpow.pop %v3832
  %v3834 = vadd.f32 %v3829, 1.0
  %v3835 = vadd.f32 %v3831, 1.0
  %v3836 = vadd.f32 %v3833, 1.0
  %v3837 = vrcp.pop %v3834
  %v3838 = vmul.f32 %v3834, %v3837
  %v3839 = vsub.f32 1.0, %v3838
  %v3840 = vmul.f32 %v3837, %v3839
  %v3841 = vadd.f32 %v3837, %v3840
  %vm3842 = vweird.f32 %v3834
  %vm3843 = vweird.f32 %v3837
  %vm3844 = vmor %vm3842, %vm3843
  %v3845 = vsel %vm3844, %v3837, %v3841
  %v3846 = vand.u32 2147483647, %v3834
  %vm3847 = vcmp.eq.f32.partialorder %v3846, 8.507059e+37
  %v3848 = vand.u32 %v3834, 2147483648
  %v3849 = vor.u32 1.1754944e-38, %v3848
  %v3850 = vsel %vm3847, %v3849, %v3845
  %v3851 = vmul.f32 1.0, %v3850
  %v3852 = vrcp.pop %v3835
  %v3853 = vmul.f32 %v3835, %v3852
  %v3854 = vsub.f32 1.0, %v3853
  %v3855 = vmul.f32 %v3852, %v3854
  %v3856 = vadd.f32 %v3852, %v3855
  %vm3857 = vweird.f32 %v3835
  %vm3858 = vweird.f32 %v3852
  %vm3859 = vmor %vm3857, %vm3858
  %v3860 = vsel %vm3859, %v3852, %v3856
  %v3861 = vand.u32 2147483647, %v3835
  %vm3862 = vcmp.eq.f32.partialorder %v3861, 8.507059e+37
  %v3863 = vand.u32 %v3835, 2147483648
  %v3864 = vor.u32 1.1754944e-38, %v3863
  %v3865 = vsel %vm3862, %v3864, %v3860
  %v3866 = vmul.f32 1.0, %v3865
  %v3867 = vrcp.pop %v3836
  %v3868 = vmul.f32 %v3836, %v3867
  %v3869 = vsub.f32 1.0, %v3868
  %v3870 = vmul.f32 %v3867, %v3869
  %v3871 = vadd.f32 %v3867, %v3870
  %vm3872 = vweird.f32 %v3836
  %vm3873 = vweird.f32 %v3867
  %vm3874 = vmor %vm3872, %vm3873
  %v3875 = vsel %vm3874, %v3867, %v3871
  %v3876 = vand.u32 2147483647, %v3836
  %vm3877 = vcmp.eq.f32.partialorder %v3876, 8.507059e+37
  %v3878 = vand.u32 %v3836, 2147483648
  %v3879 = vor.u32 1.1754944e-38, %v3878
  %v3880 = vsel %vm3877, %v3879, %v3875
  %v3881 = vmul.f32 1.0, %v3880
  %v3882 = vtanh.pop %v3571
  %v3883 = vmul.f32 %v3866, %v3249
  %v3884 = vmul.f32 %v3851, %v3882
  %v3885 = vadd.f32 %v3883, %v3884
  %v3886 = vtanh.pop %v3885
  %v3887 = vmul.f32 %v3881, %v3886
  %v3888 = vxor.u32 %v3821, 2147483648
  %v3889 = vxor.u32 %v3822, 2147483648
  %v3890 = vxor.u32 %v3823, 2147483648
  %v3891 = vmul.f32 %v3888, 1.442695
  %v3892 = vpow.pop %v3891
  %v3893 = vmul.f32 %v3889, 1.442695
  %v3894 = vpow.pop %v3893
  %v3895 = vmul.f32 %v3890, 1.442695
  %v3896 = vpow.pop %v3895
  %v3897 = vadd.f32 %v3892, 1.0
  %v3898 = vadd.f32 %v3894, 1.0
  %v3899 = vadd.f32 %v3896, 1.0
  %v3900 = vrcp.pop %v3897
  %v3901 = vmul.f32 %v3897, %v3900
  %v3902 = vsub.f32 1.0, %v3901
  %v3903 = vmul.f32 %v3900, %v3902
  %v3904 = vadd.f32 %v3900, %v3903
  %vm3905 = vweird.f32 %v3897
  %vm3906 = vweird.f32 %v3900
  %vm3907 = vmor %vm3905, %vm3906
  %v3908 = vsel %vm3907, %v3900, %v3904
  %v3909 = vand.u32 2147483647, %v3897
  %vm3910 = vcmp.eq.f32.partialorder %v3909, 8.507059e+37
  %v3911 = vand.u32 %v3897, 2147483648
  %v3912 = vor.u32 1.1754944e-38, %v3911
  %v3913 = vsel %vm3910, %v3912, %v3908
  %v3914 = vmul.f32 1.0, %v3913
  %v3915 = vrcp.pop %v3898
  %v3916 = vmul.f32 %v3898, %v3915
  %v3917 = vsub.f32 1.0, %v3916
  %v3918 = vmul.f32 %v3915, %v3917
  %v3919 = vadd.f32 %v3915, %v3918
  %vm3920 = vweird.f32 %v3898
  %vm3921 = vweird.f32 %v3915
  %vm3922 = vmor %vm3920, %vm3921
  %v3923 = vsel %vm3922, %v3915, %v3919
  %v3924 = vand.u32 2147483647, %v3898
  %vm3925 = vcmp.eq.f32.partialorder %v3924, 8.507059e+37
  %v3926 = vand.u32 %v3898, 2147483648
  %v3927 = vor.u32 1.1754944e-38, %v3926
  %v3928 = vsel %vm3925, %v3927, %v3923
  %v3929 = vmul.f32 1.0, %v3928
  %v3930 = vrcp.pop %v3899
  %v3931 = vmul.f32 %v3899, %v3930
  %v3932 = vsub.f32 1.0, %v3931
  %v3933 = vmul.f32 %v3930, %v3932
  %v3934 = vadd.f32 %v3930, %v3933
  %vm3935 = vweird.f32 %v3899
  %vm3936 = vweird.f32 %v3930
  %vm3937 = vmor %vm3935, %vm3936
  %v3938 = vsel %vm3937, %v3930, %v3934
  %v3939 = vand.u32 2147483647, %v3899
  %vm3940 = vcmp.eq.f32.partialorder %v3939, 8.507059e+37
  %v3941 = vand.u32 %v3899, 2147483648
  %v3942 = vor.u32 1.1754944e-38, %v3941
  %v3943 = vsel %vm3940, %v3942, %v3938
  %v3944 = vmul.f32 1.0, %v3943
  %v3945 = vtanh.pop %v3824
  %v3946 = vmul.f32 %v3929, %v3312
  %v3947 = vmul.f32 %v3914, %v3945
  %v3948 = vadd.f32 %v3946, %v3947
  %v3949 = vtanh.pop %v3948
  %v3950 = vmul.f32 %v3944, %v3949
  %3951 = vst [vmem:[%s3317] sm:$0xff] %v3887
  %3952 = vst [vmem:[%s3315 + $0x8] sm:$0xff] %v3950
  %v3953 = vld [vmem:[%s2293] sm:$0xff]
  %v3954 = vld [vmem:[%s2293 + $0x8] sm:$0xff]
  %v3955 = vld [vmem:[%s2293 + $0x10] sm:$0xff]
  %v3956 = vld [vmem:[%s2293 + $0x18] sm:$0xff]
  %v3957 = vpack.c.bf16 %v3887, %v3887
  %v3958 = vld [vmem:[%s3] sm:$0xff]
  %v3959 = vld [vmem:[%s3 + $0x8] sm:$0xff]
  %v3960 = vld [vmem:[%s3 + $0x10] sm:$0xff]
  %v3961 = vld [vmem:[%s3 + $0x18] sm:$0xff]
  %v3962 = vld [vmem:[%s3 + $0x20] sm:$0xff]
  %v3963 = vld [vmem:[%s3 + $0x28] sm:$0xff]
  %v3964 = vld [vmem:[%s3 + $0x30] sm:$0xff]
  %v3965 = vld [vmem:[%s3 + $0x38] sm:$0xff]
  %v3966 = vld [vmem:[%s3 + $0x40] sm:$0xff]
  %v3967 = vld [vmem:[%s3 + $0x48] sm:$0xff]
  %v3968 = vld [vmem:[%s3 + $0x50] sm:$0xff]
  %v3969 = vld [vmem:[%s3 + $0x58] sm:$0xff]
  %v3970 = vld [vmem:[%s3 + $0x60] sm:$0xff]
  %v3971 = vld [vmem:[%s3 + $0x68] sm:$0xff]
  %v3972 = vld [vmem:[%s3 + $0x70] sm:$0xff]
  %v3973 = vld [vmem:[%s3 + $0x78] sm:$0xff]
  %v3974 = vld [vmem:[%s3 + $0x80] sm:$0xff]
  %v3975 = vld [vmem:[%s3 + $0x88] sm:$0xff]
  %v3976 = vld [vmem:[%s3 + $0x90] sm:$0xff]
  %v3977 = vld [vmem:[%s3 + $0x98] sm:$0xff]
  %v3978 = vld [vmem:[%s3 + $0xa0] sm:$0xff]
  %v3979 = vld [vmem:[%s3 + $0xa8] sm:$0xff]
  %v3980 = vld [vmem:[%s3 + $0xb0] sm:$0xff]
  %v3981 = vld [vmem:[%s3 + $0xb8] sm:$0xff]
  %v3982 = vld [vmem:[%s3 + $0xc0] sm:$0xff]
  %v3983 = vld [vmem:[%s3 + $0xc8] sm:$0xff]
  %v3984 = vld [vmem:[%s3 + $0xd0] sm:$0xff]
  %v3985 = vld [vmem:[%s3 + $0xd8] sm:$0xff]
  %v3986 = vld [vmem:[%s3 + $0xe0] sm:$0xff]
  %v3987 = vld [vmem:[%s3 + $0xe8] sm:$0xff]
  %v3988 = vld [vmem:[%s3 + $0xf0] sm:$0xff]
  %v3989 = vld [vmem:[%s3 + $0xf8] sm:$0xff]
  %v4022 = vunpack.c.l.b16 %v3958
  %v4023 = vunpack.c.h.b16 %v3958
  %v4024 = vunpack.c.l.b16 %v3959
  %v4025 = vunpack.c.h.b16 %v3959
  %v4026 = vunpack.c.l.b16 %v3960
  %v4027 = vunpack.c.h.b16 %v3960
  %v4028 = vunpack.c.l.b16 %v3961
  %v4029 = vunpack.c.h.b16 %v3961
  %v4030 = vunpack.c.l.b16 %v3962
  %v4031 = vunpack.c.h.b16 %v3962
  %v4032 = vunpack.c.l.b16 %v3963
  %v4033 = vunpack.c.h.b16 %v3963
  %v4034 = vunpack.c.l.b16 %v3964
  %v4035 = vunpack.c.h.b16 %v3964
  %v4036 = vunpack.c.l.b16 %v3965
  %v4037 = vunpack.c.h.b16 %v3965
  %v4038 = vunpack.c.l.b16 %v3966
  %v4039 = vunpack.c.h.b16 %v3966
  %v4040 = vunpack.c.l.b16 %v3967
  %v4041 = vunpack.c.h.b16 %v3967
  %v4042 = vunpack.c.l.b16 %v3968
  %v4043 = vunpack.c.h.b16 %v3968
  %v4044 = vunpack.c.l.b16 %v3969
  %v4045 = vunpack.c.h.b16 %v3969
  %v4046 = vunpack.c.l.b16 %v3970
  %v4047 = vunpack.c.h.b16 %v3970
  %v4048 = vunpack.c.l.b16 %v3971
  %v4049 = vunpack.c.h.b16 %v3971
  %v4050 = vunpack.c.l.b16 %v3972
  %v4051 = vunpack.c.h.b16 %v3972
  %v4052 = vunpack.c.l.b16 %v3973
  %v4053 = vunpack.c.h.b16 %v3973
  %v4054 = vunpack.c.l.b16 %v3974
  %v4055 = vunpack.c.h.b16 %v3974
  %v4056 = vunpack.c.l.b16 %v3975
  %v4057 = vunpack.c.h.b16 %v3975
  %v4058 = vunpack.c.l.b16 %v3976
  %v4059 = vunpack.c.h.b16 %v3976
  %v4060 = vunpack.c.l.b16 %v3977
  %v4061 = vunpack.c.h.b16 %v3977
  %v4062 = vunpack.c.l.b16 %v3978
  %v4063 = vunpack.c.h.b16 %v3978
  %v4064 = vunpack.c.l.b16 %v3979
  %v4065 = vunpack.c.h.b16 %v3979
  %v4066 = vunpack.c.l.b16 %v3980
  %v4067 = vunpack.c.h.b16 %v3980
  %v4068 = vunpack.c.l.b16 %v3981
  %v4069 = vunpack.c.h.b16 %v3981
  %v4070 = vunpack.c.l.b16 %v3982
  %v4071 = vunpack.c.h.b16 %v3982
  %v4072 = vunpack.c.l.b16 %v3983
  %v4073 = vunpack.c.h.b16 %v3983
  %v4074 = vunpack.c.l.b16 %v3984
  %v4075 = vunpack.c.h.b16 %v3984
  %v4076 = vunpack.c.l.b16 %v3985
  %v4077 = vunpack.c.h.b16 %v3985
  %v4078 = vunpack.c.l.b16 %v3986
  %v4079 = vunpack.c.h.b16 %v3986
  %v4080 = vunpack.c.l.b16 %v3987
  %v4081 = vunpack.c.h.b16 %v3987
  %v4082 = vunpack.c.l.b16 %v3988
  %v4083 = vunpack.c.h.b16 %v3988
  %v4084 = vunpack.c.l.b16 %v3989
  %v4085 = vunpack.c.h.b16 %v3989
  %v4086 = vpack.c.b16 %v4026, %v4022
  %v4087 = vpack.c.b16 %v4027, %v4023
  %v4088 = vpack.c.b16 %v4028, %v4024
  %v4089 = vpack.c.b16 %v4029, %v4025
  %v4090 = vpack.c.b16 %v4034, %v4030
  %v4091 = vpack.c.b16 %v4035, %v4031
  %v4092 = vpack.c.b16 %v4036, %v4032
  %v4093 = vpack.c.b16 %v4037, %v4033
  %v4094 = vpack.c.b16 %v4042, %v4038
  %v4095 = vpack.c.b16 %v4043, %v4039
  %v4096 = vpack.c.b16 %v4044, %v4040
  %v4097 = vpack.c.b16 %v4045, %v4041
  %v4098 = vpack.c.b16 %v4050, %v4046
  %v4099 = vpack.c.b16 %v4051, %v4047
  %v4100 = vpack.c.b16 %v4052, %v4048
  %v4101 = vpack.c.b16 %v4053, %v4049
  %v4102 = vpack.c.b16 %v4058, %v4054
  %v4103 = vpack.c.b16 %v4059, %v4055
  %v4104 = vpack.c.b16 %v4060, %v4056
  %v4105 = vpack.c.b16 %v4061, %v4057
  %v4106 = vpack.c.b16 %v4066, %v4062
  %v4107 = vpack.c.b16 %v4067, %v4063
  %v4108 = vpack.c.b16 %v4068, %v4064
  %v4109 = vpack.c.b16 %v4069, %v4065
  %v4110 = vpack.c.b16 %v4074, %v4070
  %v4111 = vpack.c.b16 %v4075, %v4071
  %v4112 = vpack.c.b16 %v4076, %v4072
  %v4113 = vpack.c.b16 %v4077, %v4073
  %v4114 = vpack.c.b16 %v4082, %v4078
  %v4115 = vpack.c.b16 %v4083, %v4079
  %v4116 = vpack.c.b16 %v4084, %v4080
  %v4117 = vpack.c.b16 %v4085, %v4081
  %4150 = vmatpush.bf16.msra.mxu0 %v4114
  %4151 = vmatpush.bf16.msra.mxu0 %v4110
  %4152 = vmatpush.bf16.msra.mxu0 %v4106
  %4153 = vmatpush.bf16.msra.mxu0 %v4102
  %4154 = vmatpush.bf16.msra.mxu0 %v4098
  %4155 = vmatpush.bf16.msra.mxu0 %v4094
  %4156 = vmatpush.bf16.msra.mxu0 %v4090
  %4157 = vmatpush.bf16.msra.mxu0 %v4086
  %4158 = vmatmul.bf16.gmra.mxu0 %v3957
  %v4159 = vpop.f32.mrf.mxu0
  %v4160 = vadd.f32 0.0, %v4159
  %v4161 = vpop.f32.mrf.mxu0
  %4162 = vdwg.mxu0
  %4163 = vmatpush.bf16.msra.mxu0 %v4115
  %4164 = vmatpush.bf16.msra.mxu0 %v4111
  %4165 = vmatpush.bf16.msra.mxu0 %v4107
  %4166 = vmatpush.bf16.msra.mxu0 %v4103
  %4167 = vmatpush.bf16.msra.mxu0 %v4099
  %4168 = vmatpush.bf16.msra.mxu0 %v4095
  %4169 = vmatpush.bf16.msra.mxu0 %v4091
  %4170 = vmatpush.bf16.msra.mxu0 %v4087
  %4171 = vmatmul.bf16.gmra.mxu0 %v3957
  %v4172 = vpop.f32.mrf.mxu0
  %v4173 = vadd.f32 0.0, %v4172
  %v4174 = vpop.f32.mrf.mxu0
  %4175 = vdwg.mxu0
  %4176 = vmatpush.bf16.msra.mxu0 %v4116
  %4177 = vmatpush.bf16.msra.mxu0 %v4112
  %4178 = vmatpush.bf16.msra.mxu0 %v4108
  %4179 = vmatpush.bf16.msra.mxu0 %v4104
  %4180 = vmatpush.bf16.msra.mxu0 %v4100
  %4181 = vmatpush.bf16.msra.mxu0 %v4096
  %4182 = vmatpush.bf16.msra.mxu0 %v4092
  %4183 = vmatpush.bf16.msra.mxu0 %v4088
  %4184 = vmatmul.bf16.gmra.mxu0 %v3957
  %v4185 = vpop.f32.mrf.mxu0
  %v4186 = vadd.f32 0.0, %v4185
  %v4187 = vpop.f32.mrf.mxu0
  %4188 = vdwg.mxu0
  %4189 = vmatpush.bf16.msra.mxu0 %v4117
  %4190 = vmatpush.bf16.msra.mxu0 %v4113
  %4191 = vmatpush.bf16.msra.mxu0 %v4109
  %4192 = vmatpush.bf16.msra.mxu0 %v4105
  %4193 = vmatpush.bf16.msra.mxu0 %v4101
  %4194 = vmatpush.bf16.msra.mxu0 %v4097
  %4195 = vmatpush.bf16.msra.mxu0 %v4093
  %4196 = vmatpush.bf16.msra.mxu0 %v4089
  %4197 = vmatmul.bf16.gmra.mxu0 %v3957
  %v4198 = vpop.f32.mrf.mxu0
  %v4199 = vadd.f32 0.0, %v4198
  %v4200 = vpop.f32.mrf.mxu0
  %4201 = vdwg.mxu0
  %v4202 = vadd.f32 %v3953, %v4160
  %v4203 = vadd.f32 %v3954, %v4173
  %v4204 = vadd.f32 %v3955, %v4186
  %v4205 = vadd.f32 %v3956, %v4199
  %v4206 = vld [vmem:[%s2037 + $0x20] sm:$0xff]
  %v4207 = vld [vmem:[%s2037 + $0x28] sm:$0xff]
  %v4208 = vld [vmem:[%s2037 + $0x30] sm:$0xff]
  %v4209 = vld [vmem:[%s2037 + $0x38] sm:$0xff]
  %v4210 = vpack.c.bf16 %v3950, %v3950
  %v4211 = vld [vmem:[%s4] sm:$0xff]
  %v4212 = vld [vmem:[%s4 + $0x8] sm:$0xff]
  %v4213 = vld [vmem:[%s4 + $0x10] sm:$0xff]
  %v4214 = vld [vmem:[%s4 + $0x18] sm:$0xff]
  %v4215 = vld [vmem:[%s4 + $0x20] sm:$0xff]
  %v4216 = vld [vmem:[%s4 + $0x28] sm:$0xff]
  %v4217 = vld [vmem:[%s4 + $0x30] sm:$0xff]
  %v4218 = vld [vmem:[%s4 + $0x38] sm:$0xff]
  %v4219 = vld [vmem:[%s4 + $0x40] sm:$0xff]
  %v4220 = vld [vmem:[%s4 + $0x48] sm:$0xff]
  %v4221 = vld [vmem:[%s4 + $0x50] sm:$0xff]
  %v4222 = vld [vmem:[%s4 + $0x58] sm:$0xff]
  %v4223 = vld [vmem:[%s4 + $0x60] sm:$0xff]
  %v4224 = vld [vmem:[%s4 + $0x68] sm:$0xff]
  %v4225 = vld [vmem:[%s4 + $0x70] sm:$0xff]
  %v4226 = vld [vmem:[%s4 + $0x78] sm:$0xff]
  %v4227 = vld [vmem:[%s4 + $0x80] sm:$0xff]
  %v4228 = vld [vmem:[%s4 + $0x88] sm:$0xff]
  %v4229 = vld [vmem:[%s4 + $0x90] sm:$0xff]
  %v4230 = vld [vmem:[%s4 + $0x98] sm:$0xff]
  %v4231 = vld [vmem:[%s4 + $0xa0] sm:$0xff]
  %v4232 = vld [vmem:[%s4 + $0xa8] sm:$0xff]
  %v4233 = vld [vmem:[%s4 + $0xb0] sm:$0xff]
  %v4234 = vld [vmem:[%s4 + $0xb8] sm:$0xff]
  %v4235 = vld [vmem:[%s4 + $0xc0] sm:$0xff]
  %v4236 = vld [vmem:[%s4 + $0xc8] sm:$0xff]
  %v4237 = vld [vmem:[%s4 + $0xd0] sm:$0xff]
  %v4238 = vld [vmem:[%s4 + $0xd8] sm:$0xff]
  %v4239 = vld [vmem:[%s4 + $0xe0] sm:$0xff]
  %v4240 = vld [vmem:[%s4 + $0xe8] sm:$0xff]
  %v4241 = vld [vmem:[%s4 + $0xf0] sm:$0xff]
  %v4242 = vld [vmem:[%s4 + $0xf8] sm:$0xff]
  %v4275 = vunpack.c.l.b16 %v4211
  %v4276 = vunpack.c.h.b16 %v4211
  %v4277 = vunpack.c.l.b16 %v4212
  %v4278 = vunpack.c.h.b16 %v4212
  %v4279 = vunpack.c.l.b16 %v4213
  %v4280 = vunpack.c.h.b16 %v4213
  %v4281 = vunpack.c.l.b16 %v4214
  %v4282 = vunpack.c.h.b16 %v4214
  %v4283 = vunpack.c.l.b16 %v4215
  %v4284 = vunpack.c.h.b16 %v4215
  %v4285 = vunpack.c.l.b16 %v4216
  %v4286 = vunpack.c.h.b16 %v4216
  %v4287 = vunpack.c.l.b16 %v4217
  %v4288 = vunpack.c.h.b16 %v4217
  %v4289 = vunpack.c.l.b16 %v4218
  %v4290 = vunpack.c.h.b16 %v4218
  %v4291 = vunpack.c.l.b16 %v4219
  %v4292 = vunpack.c.h.b16 %v4219
  %v4293 = vunpack.c.l.b16 %v4220
  %v4294 = vunpack.c.h.b16 %v4220
  %v4295 = vunpack.c.l.b16 %v4221
  %v4296 = vunpack.c.h.b16 %v4221
  %v4297 = vunpack.c.l.b16 %v4222
  %v4298 = vunpack.c.h.b16 %v4222
  %v4299 = vunpack.c.l.b16 %v4223
  %v4300 = vunpack.c.h.b16 %v4223
  %v4301 = vunpack.c.l.b16 %v4224
  %v4302 = vunpack.c.h.b16 %v4224
  %v4303 = vunpack.c.l.b16 %v4225
  %v4304 = vunpack.c.h.b16 %v4225
  %v4305 = vunpack.c.l.b16 %v4226
  %v4306 = vunpack.c.h.b16 %v4226
  %v4307 = vunpack.c.l.b16 %v4227
  %v4308 = vunpack.c.h.b16 %v4227
  %v4309 = vunpack.c.l.b16 %v4228
  %v4310 = vunpack.c.h.b16 %v4228
  %v4311 = vunpack.c.l.b16 %v4229
  %v4312 = vunpack.c.h.b16 %v4229
  %v4313 = vunpack.c.l.b16 %v4230
  %v4314 = vunpack.c.h.b16 %v4230
  %v4315 = vunpack.c.l.b16 %v4231
  %v4316 = vunpack.c.h.b16 %v4231
  %v4317 = vunpack.c.l.b16 %v4232
  %v4318 = vunpack.c.h.b16 %v4232
  %v4319 = vunpack.c.l.b16 %v4233
  %v4320 = vunpack.c.h.b16 %v4233
  %v4321 = vunpack.c.l.b16 %v4234
  %v4322 = vunpack.c.h.b16 %v4234
  %v4323 = vunpack.c.l.b16 %v4235
  %v4324 = vunpack.c.h.b16 %v4235
  %v4325 = vunpack.c.l.b16 %v4236
  %v4326 = vunpack.c.h.b16 %v4236
  %v4327 = vunpack.c.l.b16 %v4237
  %v4328 = vunpack.c.h.b16 %v4237
  %v4329 = vunpack.c.l.b16 %v4238
  %v4330 = vunpack.c.h.b16 %v4238
  %v4331 = vunpack.c.l.b16 %v4239
  %v4332 = vunpack.c.h.b16 %v4239
  %v4333 = vunpack.c.l.b16 %v4240
  %v4334 = vunpack.c.h.b16 %v4240
  %v4335 = vunpack.c.l.b16 %v4241
  %v4336 = vunpack.c.h.b16 %v4241
  %v4337 = vunpack.c.l.b16 %v4242
  %v4338 = vunpack.c.h.b16 %v4242
  %v4339 = vpack.c.b16 %v4279, %v4275
  %v4340 = vpack.c.b16 %v4280, %v4276
  %v4341 = vpack.c.b16 %v4281, %v4277
  %v4342 = vpack.c.b16 %v4282, %v4278
  %v4343 = vpack.c.b16 %v4287, %v4283
  %v4344 = vpack.c.b16 %v4288, %v4284
  %v4345 = vpack.c.b16 %v4289, %v4285
  %v4346 = vpack.c.b16 %v4290, %v4286
  %v4347 = vpack.c.b16 %v4295, %v4291
  %v4348 = vpack.c.b16 %v4296, %v4292
  %v4349 = vpack.c.b16 %v4297, %v4293
  %v4350 = vpack.c.b16 %v4298, %v4294
  %v4351 = vpack.c.b16 %v4303, %v4299
  %v4352 = vpack.c.b16 %v4304, %v4300
  %v4353 = vpack.c.b16 %v4305, %v4301
  %v4354 = vpack.c.b16 %v4306, %v4302
  %v4355 = vpack.c.b16 %v4311, %v4307
  %v4356 = vpack.c.b16 %v4312, %v4308
  %v4357 = vpack.c.b16 %v4313, %v4309
  %v4358 = vpack.c.b16 %v4314, %v4310
  %v4359 = vpack.c.b16 %v4319, %v4315
  %v4360 = vpack.c.b16 %v4320, %v4316
  %v4361 = vpack.c.b16 %v4321, %v4317
  %v4362 = vpack.c.b16 %v4322, %v4318
  %v4363 = vpack.c.b16 %v4327, %v4323
  %v4364 = vpack.c.b16 %v4328, %v4324
  %v4365 = vpack.c.b16 %v4329, %v4325
  %v4366 = vpack.c.b16 %v4330, %v4326
  %v4367 = vpack.c.b16 %v4335, %v4331
  %v4368 = vpack.c.b16 %v4336, %v4332
  %v4369 = vpack.c.b16 %v4337, %v4333
  %v4370 = vpack.c.b16 %v4338, %v4334
  %4403 = vmatpush.bf16.msra.mxu0 %v4367
  %4404 = vmatpush.bf16.msra.mxu0 %v4363
  %4405 = vmatpush.bf16.msra.mxu0 %v4359
  %4406 = vmatpush.bf16.msra.mxu0 %v4355
  %4407 = vmatpush.bf16.msra.mxu0 %v4351
  %4408 = vmatpush.bf16.msra.mxu0 %v4347
  %4409 = vmatpush.bf16.msra.mxu0 %v4343
  %4410 = vmatpush.bf16.msra.mxu0 %v4339
  %4411 = vmatmul.bf16.gmra.mxu0 %v4210
  %v4412 = vpop.f32.mrf.mxu0
  %v4413 = vadd.f32 0.0, %v4412
  %v4414 = vpop.f32.mrf.mxu0
  %4415 = vdwg.mxu0
  %4416 = vmatpush.bf16.msra.mxu0 %v4368
  %4417 = vmatpush.bf16.msra.mxu0 %v4364
  %4418 = vmatpush.bf16.msra.mxu0 %v4360
  %4419 = vmatpush.bf16.msra.mxu0 %v4356
  %4420 = vmatpush.bf16.msra.mxu0 %v4352
  %4421 = vmatpush.bf16.msra.mxu0 %v4348
  %4422 = vmatpush.bf16.msra.mxu0 %v4344
  %4423 = vmatpush.bf16.msra.mxu0 %v4340
  %4424 = vmatmul.bf16.gmra.mxu0 %v4210
  %v4425 = vpop.f32.mrf.mxu0
  %v4426 = vadd.f32 0.0, %v4425
  %v4427 = vpop.f32.mrf.mxu0
  %4428 = vdwg.mxu0
  %4429 = vmatpush.bf16.msra.mxu0 %v4369
  %4430 = vmatpush.bf16.msra.mxu0 %v4365
  %4431 = vmatpush.bf16.msra.mxu0 %v4361
  %4432 = vmatpush.bf16.msra.mxu0 %v4357
  %4433 = vmatpush.bf16.msra.mxu0 %v4353
  %4434 = vmatpush.bf16.msra.mxu0 %v4349
  %4435 = vmatpush.bf16.msra.mxu0 %v4345
  %4436 = vmatpush.bf16.msra.mxu0 %v4341
  %4437 = vmatmul.bf16.gmra.mxu0 %v4210
  %v4438 = vpop.f32.mrf.mxu0
  %v4439 = vadd.f32 0.0, %v4438
  %v4440 = vpop.f32.mrf.mxu0
  %4441 = vdwg.mxu0
  %4442 = vmatpush.bf16.msra.mxu0 %v4370
  %4443 = vmatpush.bf16.msra.mxu0 %v4366
  %4444 = vmatpush.bf16.msra.mxu0 %v4362
  %4445 = vmatpush.bf16.msra.mxu0 %v4358
  %4446 = vmatpush.bf16.msra.mxu0 %v4354
  %4447 = vmatpush.bf16.msra.mxu0 %v4350
  %4448 = vmatpush.bf16.msra.mxu0 %v4346
  %4449 = vmatpush.bf16.msra.mxu0 %v4342
  %4450 = vmatmul.bf16.gmra.mxu0 %v4210
  %v4451 = vpop.f32.mrf.mxu0
  %v4452 = vadd.f32 0.0, %v4451
  %v4453 = vpop.f32.mrf.mxu0
  %4454 = vdwg.mxu0
  %v4455 = vadd.f32 %v4206, %v4413
  %v4456 = vadd.f32 %v4207, %v4426
  %v4457 = vadd.f32 %v4208, %v4439
  %v4458 = vadd.f32 %v4209, %v4452
  %v4459 = vxor.u32 %v4202, 2147483648
  %v4460 = vxor.u32 %v4203, 2147483648
  %v4461 = vxor.u32 %v4204, 2147483648
  %v4462 = vmul.f32 %v4459, 1.442695
  %v4463 = vpow.pop %v4462
  %v4464 = vmul.f32 %v4460, 1.442695
  %v4465 = vpow.pop %v4464
  %v4466 = vmul.f32 %v4461, 1.442695
  %v4467 = vpow.pop %v4466
  %v4468 = vadd.f32 %v4463, 1.0
  %v4469 = vadd.f32 %v4465, 1.0
  %v4470 = vadd.f32 %v4467, 1.0
  %v4471 = vrcp.pop %v4468
  %v4472 = vmul.f32 %v4468, %v4471
  %v4473 = vsub.f32 1.0, %v4472
  %v4474 = vmul.f32 %v4471, %v4473
  %v4475 = vadd.f32 %v4471, %v4474
  %vm4476 = vweird.f32 %v4468
  %vm4477 = vweird.f32 %v4471
  %vm4478 = vmor %vm4476, %vm4477
  %v4479 = vsel %vm4478, %v4471, %v4475
  %v4480 = vand.u32 2147483647, %v4468
  %vm4481 = vcmp.eq.f32.partialorder %v4480, 8.507059e+37
  %v4482 = vand.u32 %v4468, 2147483648
  %v4483 = vor.u32 1.1754944e-38, %v4482
  %v4484 = vsel %vm4481, %v4483, %v4479
  %v4485 = vmul.f32 1.0, %v4484
  %v4486 = vrcp.pop %v4469
  %v4487 = vmul.f32 %v4469, %v4486
  %v4488 = vsub.f32 1.0, %v4487
  %v4489 = vmul.f32 %v4486, %v4488
  %v4490 = vadd.f32 %v4486, %v4489
  %vm4491 = vweird.f32 %v4469
  %vm4492 = vweird.f32 %v4486
  %vm4493 = vmor %vm4491, %vm4492
  %v4494 = vsel %vm4493, %v4486, %v4490
  %v4495 = vand.u32 2147483647, %v4469
  %vm4496 = vcmp.eq.f32.partialorder %v4495, 8.507059e+37
  %v4497 = vand.u32 %v4469, 2147483648
  %v4498 = vor.u32 1.1754944e-38, %v4497
  %v4499 = vsel %vm4496, %v4498, %v4494
  %v4500 = vmul.f32 1.0, %v4499
  %v4501 = vrcp.pop %v4470
  %v4502 = vmul.f32 %v4470, %v4501
  %v4503 = vsub.f32 1.0, %v4502
  %v4504 = vmul.f32 %v4501, %v4503
  %v4505 = vadd.f32 %v4501, %v4504
  %vm4506 = vweird.f32 %v4470
  %vm4507 = vweird.f32 %v4501
  %vm4508 = vmor %vm4506, %vm4507
  %v4509 = vsel %vm4508, %v4501, %v4505
  %v4510 = vand.u32 2147483647, %v4470
  %vm4511 = vcmp.eq.f32.partialorder %v4510, 8.507059e+37
  %v4512 = vand.u32 %v4470, 2147483648
  %v4513 = vor.u32 1.1754944e-38, %v4512
  %v4514 = vsel %vm4511, %v4513, %v4509
  %v4515 = vmul.f32 1.0, %v4514
  %v4516 = vtanh.pop %v4205
  %v4517 = vmul.f32 %v4500, %v3885
  %v4518 = vmul.f32 %v4485, %v4516
  %v4519 = vadd.f32 %v4517, %v4518
  %v4520 = vtanh.pop %v4519
  %v4521 = vmul.f32 %v4515, %v4520
  %v4522 = vxor.u32 %v4455, 2147483648
  %v4523 = vxor.u32 %v4456, 2147483648
  %v4524 = vxor.u32 %v4457, 2147483648
  %v4525 = vmul.f32 %v4522, 1.442695
  %v4526 = vpow.pop %v4525
  %v4527 = vmul.f32 %v4523, 1.442695
  %v4528 = vpow.pop %v4527
  %v4529 = vmul.f32 %v4524, 1.442695
  %v4530 = vpow.pop %v4529
  %v4531 = vadd.f32 %v4526, 1.0
  %v4532 = vadd.f32 %v4528, 1.0
  %v4533 = vadd.f32 %v4530, 1.0
  %v4534 = vrcp.pop %v4531
  %v4535 = vmul.f32 %v4531, %v4534
  %v4536 = vsub.f32 1.0, %v4535
  %v4537 = vmul.f32 %v4534, %v4536
  %v4538 = vadd.f32 %v4534, %v4537
  %vm4539 = vweird.f32 %v4531
  %vm4540 = vweird.f32 %v4534
  %vm4541 = vmor %vm4539, %vm4540
  %v4542 = vsel %vm4541, %v4534, %v4538
  %v4543 = vand.u32 2147483647, %v4531
  %vm4544 = vcmp.eq.f32.partialorder %v4543, 8.507059e+37
  %v4545 = vand.u32 %v4531, 2147483648
  %v4546 = vor.u32 1.1754944e-38, %v4545
  %v4547 = vsel %vm4544, %v4546, %v4542
  %v4548 = vmul.f32 1.0, %v4547
  %v4549 = vrcp.pop %v4532
  %v4550 = vmul.f32 %v4532, %v4549
  %v4551 = vsub.f32 1.0, %v4550
  %v4552 = vmul.f32 %v4549, %v4551
  %v4553 = vadd.f32 %v4549, %v4552
  %vm4554 = vweird.f32 %v4532
  %vm4555 = vweird.f32 %v4549
  %vm4556 = vmor %vm4554, %vm4555
  %v4557 = vsel %vm4556, %v4549, %v4553
  %v4558 = vand.u32 2147483647, %v4532
  %vm4559 = vcmp.eq.f32.partialorder %v4558, 8.507059e+37
  %v4560 = vand.u32 %v4532, 2147483648
  %v4561 = vor.u32 1.1754944e-38, %v4560
  %v4562 = vsel %vm4559, %v4561, %v4557
  %v4563 = vmul.f32 1.0, %v4562
  %v4564 = vrcp.pop %v4533
  %v4565 = vmul.f32 %v4533, %v4564
  %v4566 = vsub.f32 1.0, %v4565
  %v4567 = vmul.f32 %v4564, %v4566
  %v4568 = vadd.f32 %v4564, %v4567
  %vm4569 = vweird.f32 %v4533
  %vm4570 = vweird.f32 %v4564
  %vm4571 = vmor %vm4569, %vm4570
  %v4572 = vsel %vm4571, %v4564, %v4568
  %v4573 = vand.u32 2147483647, %v4533
  %vm4574 = vcmp.eq.f32.partialorder %v4573, 8.507059e+37
  %v4575 = vand.u32 %v4533, 2147483648
  %v4576 = vor.u32 1.1754944e-38, %v4575
  %v4577 = vsel %vm4574, %v4576, %v4572
  %v4578 = vmul.f32 1.0, %v4577
  %v4579 = vtanh.pop %v4458
  %v4580 = vmul.f32 %v4563, %v3948
  %v4581 = vmul.f32 %v4548, %v4579
  %v4582 = vadd.f32 %v4580, %v4581
  %v4583 = vtanh.pop %v4582
  %v4584 = vmul.f32 %v4578, %v4583
  %4585 = vst [vmem:[%s2675] sm:$0xff] %v4521
  %4586 = vst [vmem:[%s2673 + $0x8] sm:$0xff] %v4584
  %v4587 = vld [vmem:[%s1651] sm:$0xff]
  %v4588 = vld [vmem:[%s1651 + $0x8] sm:$0xff]
  %v4589 = vld [vmem:[%s1651 + $0x10] sm:$0xff]
  %v4590 = vld [vmem:[%s1651 + $0x18] sm:$0xff]
  %v4591 = vpack.c.bf16 %v4521, %v4521
  %v4592 = vld [vmem:[%s3] sm:$0xff]
  %v4593 = vld [vmem:[%s3 + $0x8] sm:$0xff]
  %v4594 = vld [vmem:[%s3 + $0x10] sm:$0xff]
  %v4595 = vld [vmem:[%s3 + $0x18] sm:$0xff]
  %v4596 = vld [vmem:[%s3 + $0x20] sm:$0xff]
  %v4597 = vld [vmem:[%s3 + $0x28] sm:$0xff]
  %v4598 = vld [vmem:[%s3 + $0x30] sm:$0xff]
  %v4599 = vld [vmem:[%s3 + $0x38] sm:$0xff]
  %v4600 = vld [vmem:[%s3 + $0x40] sm:$0xff]
  %v4601 = vld [vmem:[%s3 + $0x48] sm:$0xff]
  %v4602 = vld [vmem:[%s3 + $0x50] sm:$0xff]
  %v4603 = vld [vmem:[%s3 + $0x58] sm:$0xff]
  %v4604 = vld [vmem:[%s3 + $0x60] sm:$0xff]
  %v4605 = vld [vmem:[%s3 + $0x68] sm:$0xff]
  %v4606 = vld [vmem:[%s3 + $0x70] sm:$0xff]
  %v4607 = vld [vmem:[%s3 + $0x78] sm:$0xff]
  %v4608 = vld [vmem:[%s3 + $0x80] sm:$0xff]
  %v4609 = vld [vmem:[%s3 + $0x88] sm:$0xff]
  %v4610 = vld [vmem:[%s3 + $0x90] sm:$0xff]
  %v4611 = vld [vmem:[%s3 + $0x98] sm:$0xff]
  %v4612 = vld [vmem:[%s3 + $0xa0] sm:$0xff]
  %v4613 = vld [vmem:[%s3 + $0xa8] sm:$0xff]
  %v4614 = vld [vmem:[%s3 + $0xb0] sm:$0xff]
  %v4615 = vld [vmem:[%s3 + $0xb8] sm:$0xff]
  %v4616 = vld [vmem:[%s3 + $0xc0] sm:$0xff]
  %v4617 = vld [vmem:[%s3 + $0xc8] sm:$0xff]
  %v4618 = vld [vmem:[%s3 + $0xd0] sm:$0xff]
  %v4619 = vld [vmem:[%s3 + $0xd8] sm:$0xff]
  %v4620 = vld [vmem:[%s3 + $0xe0] sm:$0xff]
  %v4621 = vld [vmem:[%s3 + $0xe8] sm:$0xff]
  %v4622 = vld [vmem:[%s3 + $0xf0] sm:$0xff]
  %v4623 = vld [vmem:[%s3 + $0xf8] sm:$0xff]
  %v4656 = vunpack.c.l.b16 %v4592
  %v4657 = vunpack.c.h.b16 %v4592
  %v4658 = vunpack.c.l.b16 %v4593
  %v4659 = vunpack.c.h.b16 %v4593
  %v4660 = vunpack.c.l.b16 %v4594
  %v4661 = vunpack.c.h.b16 %v4594
  %v4662 = vunpack.c.l.b16 %v4595
  %v4663 = vunpack.c.h.b16 %v4595
  %v4664 = vunpack.c.l.b16 %v4596
  %v4665 = vunpack.c.h.b16 %v4596
  %v4666 = vunpack.c.l.b16 %v4597
  %v4667 = vunpack.c.h.b16 %v4597
  %v4668 = vunpack.c.l.b16 %v4598
  %v4669 = vunpack.c.h.b16 %v4598
  %v4670 = vunpack.c.l.b16 %v4599
  %v4671 = vunpack.c.h.b16 %v4599
  %v4672 = vunpack.c.l.b16 %v4600
  %v4673 = vunpack.c.h.b16 %v4600
  %v4674 = vunpack.c.l.b16 %v4601
  %v4675 = vunpack.c.h.b16 %v4601
  %v4676 = vunpack.c.l.b16 %v4602
  %v4677 = vunpack.c.h.b16 %v4602
  %v4678 = vunpack.c.l.b16 %v4603
  %v4679 = vunpack.c.h.b16 %v4603
  %v4680 = vunpack.c.l.b16 %v4604
  %v4681 = vunpack.c.h.b16 %v4604
  %v4682 = vunpack.c.l.b16 %v4605
  %v4683 = vunpack.c.h.b16 %v4605
  %v4684 = vunpack.c.l.b16 %v4606
  %v4685 = vunpack.c.h.b16 %v4606
  %v4686 = vunpack.c.l.b16 %v4607
  %v4687 = vunpack.c.h.b16 %v4607
  %v4688 = vunpack.c.l.b16 %v4608
  %v4689 = vunpack.c.h.b16 %v4608
  %v4690 = vunpack.c.l.b16 %v4609
  %v4691 = vunpack.c.h.b16 %v4609
  %v4692 = vunpack.c.l.b16 %v4610
  %v4693 = vunpack.c.h.b16 %v4610
  %v4694 = vunpack.c.l.b16 %v4611
  %v4695 = vunpack.c.h.b16 %v4611
  %v4696 = vunpack.c.l.b16 %v4612
  %v4697 = vunpack.c.h.b16 %v4612
  %v4698 = vunpack.c.l.b16 %v4613
  %v4699 = vunpack.c.h.b16 %v4613
  %v4700 = vunpack.c.l.b16 %v4614
  %v4701 = vunpack.c.h.b16 %v4614
  %v4702 = vunpack.c.l.b16 %v4615
  %v4703 = vunpack.c.h.b16 %v4615
  %v4704 = vunpack.c.l.b16 %v4616
  %v4705 = vunpack.c.h.b16 %v4616
  %v4706 = vunpack.c.l.b16 %v4617
  %v4707 = vunpack.c.h.b16 %v4617
  %v4708 = vunpack.c.l.b16 %v4618
  %v4709 = vunpack.c.h.b16 %v4618
  %v4710 = vunpack.c.l.b16 %v4619
  %v4711 = vunpack.c.h.b16 %v4619
  %v4712 = vunpack.c.l.b16 %v4620
  %v4713 = vunpack.c.h.b16 %v4620
  %v4714 = vunpack.c.l.b16 %v4621
  %v4715 = vunpack.c.h.b16 %v4621
  %v4716 = vunpack.c.l.b16 %v4622
  %v4717 = vunpack.c.h.b16 %v4622
  %v4718 = vunpack.c.l.b16 %v4623
  %v4719 = vunpack.c.h.b16 %v4623
  %v4720 = vpack.c.b16 %v4660, %v4656
  %v4721 = vpack.c.b16 %v4661, %v4657
  %v4722 = vpack.c.b16 %v4662, %v4658
  %v4723 = vpack.c.b16 %v4663, %v4659
  %v4724 = vpack.c.b16 %v4668, %v4664
  %v4725 = vpack.c.b16 %v4669, %v4665
  %v4726 = vpack.c.b16 %v4670, %v4666
  %v4727 = vpack.c.b16 %v4671, %v4667
  %v4728 = vpack.c.b16 %v4676, %v4672
  %v4729 = vpack.c.b16 %v4677, %v4673
  %v4730 = vpack.c.b16 %v4678, %v4674
  %v4731 = vpack.c.b16 %v4679, %v4675
  %v4732 = vpack.c.b16 %v4684, %v4680
  %v4733 = vpack.c.b16 %v4685, %v4681
  %v4734 = vpack.c.b16 %v4686, %v4682
  %v4735 = vpack.c.b16 %v4687, %v4683
  %v4736 = vpack.c.b16 %v4692, %v4688
  %v4737 = vpack.c.b16 %v4693, %v4689
  %v4738 = vpack.c.b16 %v4694, %v4690
  %v4739 = vpack.c.b16 %v4695, %v4691
  %v4740 = vpack.c.b16 %v4700, %v4696
  %v4741 = vpack.c.b16 %v4701, %v4697
  %v4742 = vpack.c.b16 %v4702, %v4698
  %v4743 = vpack.c.b16 %v4703, %v4699
  %v4744 = vpack.c.b16 %v4708, %v4704
  %v4745 = vpack.c.b16 %v4709, %v4705
  %v4746 = vpack.c.b16 %v4710, %v4706
  %v4747 = vpack.c.b16 %v4711, %v4707
  %v4748 = vpack.c.b16 %v4716, %v4712
  %v4749 = vpack.c.b16 %v4717, %v4713
  %v4750 = vpack.c.b16 %v4718, %v4714
  %v4751 = vpack.c.b16 %v4719, %v4715
  %4784 = vmatpush.bf16.msra.mxu0 %v4748
  %4785 = vmatpush.bf16.msra.mxu0 %v4744
  %4786 = vmatpush.bf16.msra.mxu0 %v4740
  %4787 = vmatpush.bf16.msra.mxu0 %v4736
  %4788 = vmatpush.bf16.msra.mxu0 %v4732
  %4789 = vmatpush.bf16.msra.mxu0 %v4728
  %4790 = vmatpush.bf16.msra.mxu0 %v4724
  %4791 = vmatpush.bf16.msra.mxu0 %v4720
  %4792 = vmatmul.bf16.gmra.mxu0 %v4591
  %v4793 = vpop.f32.mrf.mxu0
  %v4794 = vadd.f32 0.0, %v4793
  %v4795 = vpop.f32.mrf.mxu0
  %4796 = vdwg.mxu0
  %4797 = vmatpush.bf16.msra.mxu0 %v4749
  %4798 = vmatpush.bf16.msra.mxu0 %v4745
  %4799 = vmatpush.bf16.msra.mxu0 %v4741
  %4800 = vmatpush.bf16.msra.mxu0 %v4737
  %4801 = vmatpush.bf16.msra.mxu0 %v4733
  %4802 = vmatpush.bf16.msra.mxu0 %v4729
  %4803 = vmatpush.bf16.msra.mxu0 %v4725
  %4804 = vmatpush.bf16.msra.mxu0 %v4721
  %4805 = vmatmul.bf16.gmra.mxu0 %v4591
  %v4806 = vpop.f32.mrf.mxu0
  %v4807 = vadd.f32 0.0, %v4806
  %v4808 = vpop.f32.mrf.mxu0
  %4809 = vdwg.mxu0
  %4810 = vmatpush.bf16.msra.mxu0 %v4750
  %4811 = vmatpush.bf16.msra.mxu0 %v4746
  %4812 = vmatpush.bf16.msra.mxu0 %v4742
  %4813 = vmatpush.bf16.msra.mxu0 %v4738
  %4814 = vmatpush.bf16.msra.mxu0 %v4734
  %4815 = vmatpush.bf16.msra.mxu0 %v4730
  %4816 = vmatpush.bf16.msra.mxu0 %v4726
  %4817 = vmatpush.bf16.msra.mxu0 %v4722
  %4818 = vmatmul.bf16.gmra.mxu0 %v4591
  %v4819 = vpop.f32.mrf.mxu0
  %v4820 = vadd.f32 0.0, %v4819
  %v4821 = vpop.f32.mrf.mxu0
  %4822 = vdwg.mxu0
  %4823 = vmatpush.bf16.msra.mxu0 %v4751
  %4824 = vmatpush.bf16.msra.mxu0 %v4747
  %4825 = vmatpush.bf16.msra.mxu0 %v4743
  %4826 = vmatpush.bf16.msra.mxu0 %v4739
  %4827 = vmatpush.bf16.msra.mxu0 %v4735
  %4828 = vmatpush.bf16.msra.mxu0 %v4731
  %4829 = vmatpush.bf16.msra.mxu0 %v4727
  %4830 = vmatpush.bf16.msra.mxu0 %v4723
  %4831 = vmatmul.bf16.gmra.mxu0 %v4591
  %v4832 = vpop.f32.mrf.mxu0
  %v4833 = vadd.f32 0.0, %v4832
  %v4834 = vpop.f32.mrf.mxu0
  %4835 = vdwg.mxu0
  %v4836 = vadd.f32 %v4587, %v4794
  %v4837 = vadd.f32 %v4588, %v4807
  %v4838 = vadd.f32 %v4589, %v4820
  %v4839 = vadd.f32 %v4590, %v4833
  %v4840 = vld [vmem:[%s1395 + $0x20] sm:$0xff]
  %v4841 = vld [vmem:[%s1395 + $0x28] sm:$0xff]
  %v4842 = vld [vmem:[%s1395 + $0x30] sm:$0xff]
  %v4843 = vld [vmem:[%s1395 + $0x38] sm:$0xff]
  %v4844 = vpack.c.bf16 %v4584, %v4584
  %v4845 = vld [vmem:[%s4] sm:$0xff]
  %v4846 = vld [vmem:[%s4 + $0x8] sm:$0xff]
  %v4847 = vld [vmem:[%s4 + $0x10] sm:$0xff]
  %v4848 = vld [vmem:[%s4 + $0x18] sm:$0xff]
  %v4849 = vld [vmem:[%s4 + $0x20] sm:$0xff]
  %v4850 = vld [vmem:[%s4 + $0x28] sm:$0xff]
  %v4851 = vld [vmem:[%s4 + $0x30] sm:$0xff]
  %v4852 = vld [vmem:[%s4 + $0x38] sm:$0xff]
  %v4853 = vld [vmem:[%s4 + $0x40] sm:$0xff]
  %v4854 = vld [vmem:[%s4 + $0x48] sm:$0xff]
  %v4855 = vld [vmem:[%s4 + $0x50] sm:$0xff]
  %v4856 = vld [vmem:[%s4 + $0x58] sm:$0xff]
  %v4857 = vld [vmem:[%s4 + $0x60] sm:$0xff]
  %v4858 = vld [vmem:[%s4 + $0x68] sm:$0xff]
  %v4859 = vld [vmem:[%s4 + $0x70] sm:$0xff]
  %v4860 = vld [vmem:[%s4 + $0x78] sm:$0xff]
  %v4861 = vld [vmem:[%s4 + $0x80] sm:$0xff]
  %v4862 = vld [vmem:[%s4 + $0x88] sm:$0xff]
  %v4863 = vld [vmem:[%s4 + $0x90] sm:$0xff]
  %v4864 = vld [vmem:[%s4 + $0x98] sm:$0xff]
  %v4865 = vld [vmem:[%s4 + $0xa0] sm:$0xff]
  %v4866 = vld [vmem:[%s4 + $0xa8] sm:$0xff]
  %v4867 = vld [vmem:[%s4 + $0xb0] sm:$0xff]
  %v4868 = vld [vmem:[%s4 + $0xb8] sm:$0xff]
  %v4869 = vld [vmem:[%s4 + $0xc0] sm:$0xff]
  %v4870 = vld [vmem:[%s4 + $0xc8] sm:$0xff]
  %v4871 = vld [vmem:[%s4 + $0xd0] sm:$0xff]
  %v4872 = vld [vmem:[%s4 + $0xd8] sm:$0xff]
  %v4873 = vld [vmem:[%s4 + $0xe0] sm:$0xff]
  %v4874 = vld [vmem:[%s4 + $0xe8] sm:$0xff]
  %v4875 = vld [vmem:[%s4 + $0xf0] sm:$0xff]
  %v4876 = vld [vmem:[%s4 + $0xf8] sm:$0xff]
  %v4909 = vunpack.c.l.b16 %v4845
  %v4910 = vunpack.c.h.b16 %v4845
  %v4911 = vunpack.c.l.b16 %v4846
  %v4912 = vunpack.c.h.b16 %v4846
  %v4913 = vunpack.c.l.b16 %v4847
  %v4914 = vunpack.c.h.b16 %v4847
  %v4915 = vunpack.c.l.b16 %v4848
  %v4916 = vunpack.c.h.b16 %v4848
  %v4917 = vunpack.c.l.b16 %v4849
  %v4918 = vunpack.c.h.b16 %v4849
  %v4919 = vunpack.c.l.b16 %v4850
  %v4920 = vunpack.c.h.b16 %v4850
  %v4921 = vunpack.c.l.b16 %v4851
  %v4922 = vunpack.c.h.b16 %v4851
  %v4923 = vunpack.c.l.b16 %v4852
  %v4924 = vunpack.c.h.b16 %v4852
  %v4925 = vunpack.c.l.b16 %v4853
  %v4926 = vunpack.c.h.b16 %v4853
  %v4927 = vunpack.c.l.b16 %v4854
  %v4928 = vunpack.c.h.b16 %v4854
  %v4929 = vunpack.c.l.b16 %v4855
  %v4930 = vunpack.c.h.b16 %v4855
  %v4931 = vunpack.c.l.b16 %v4856
  %v4932 = vunpack.c.h.b16 %v4856
  %v4933 = vunpack.c.l.b16 %v4857
  %v4934 = vunpack.c.h.b16 %v4857
  %v4935 = vunpack.c.l.b16 %v4858
  %v4936 = vunpack.c.h.b16 %v4858
  %v4937 = vunpack.c.l.b16 %v4859
  %v4938 = vunpack.c.h.b16 %v4859
  %v4939 = vunpack.c.l.b16 %v4860
  %v4940 = vunpack.c.h.b16 %v4860
  %v4941 = vunpack.c.l.b16 %v4861
  %v4942 = vunpack.c.h.b16 %v4861
  %v4943 = vunpack.c.l.b16 %v4862
  %v4944 = vunpack.c.h.b16 %v4862
  %v4945 = vunpack.c.l.b16 %v4863
  %v4946 = vunpack.c.h.b16 %v4863
  %v4947 = vunpack.c.l.b16 %v4864
  %v4948 = vunpack.c.h.b16 %v4864
  %v4949 = vunpack.c.l.b16 %v4865
  %v4950 = vunpack.c.h.b16 %v4865
  %v4951 = vunpack.c.l.b16 %v4866
  %v4952 = vunpack.c.h.b16 %v4866
  %v4953 = vunpack.c.l.b16 %v4867
  %v4954 = vunpack.c.h.b16 %v4867
  %v4955 = vunpack.c.l.b16 %v4868
  %v4956 = vunpack.c.h.b16 %v4868
  %v4957 = vunpack.c.l.b16 %v4869
  %v4958 = vunpack.c.h.b16 %v4869
  %v4959 = vunpack.c.l.b16 %v4870
  %v4960 = vunpack.c.h.b16 %v4870
  %v4961 = vunpack.c.l.b16 %v4871
  %v4962 = vunpack.c.h.b16 %v4871
  %v4963 = vunpack.c.l.b16 %v4872
  %v4964 = vunpack.c.h.b16 %v4872
  %v4965 = vunpack.c.l.b16 %v4873
  %v4966 = vunpack.c.h.b16 %v4873
  %v4967 = vunpack.c.l.b16 %v4874
  %v4968 = vunpack.c.h.b16 %v4874
  %v4969 = vunpack.c.l.b16 %v4875
  %v4970 = vunpack.c.h.b16 %v4875
  %v4971 = vunpack.c.l.b16 %v4876
  %v4972 = vunpack.c.h.b16 %v4876
  %v4973 = vpack.c.b16 %v4913, %v4909
  %v4974 = vpack.c.b16 %v4914, %v4910
  %v4975 = vpack.c.b16 %v4915, %v4911
  %v4976 = vpack.c.b16 %v4916, %v4912
  %v4977 = vpack.c.b16 %v4921, %v4917
  %v4978 = vpack.c.b16 %v4922, %v4918
  %v4979 = vpack.c.b16 %v4923, %v4919
  %v4980 = vpack.c.b16 %v4924, %v4920
  %v4981 = vpack.c.b16 %v4929, %v4925
  %v4982 = vpack.c.b16 %v4930, %v4926
  %v4983 = vpack.c.b16 %v4931, %v4927
  %v4984 = vpack.c.b16 %v4932, %v4928
  %v4985 = vpack.c.b16 %v4937, %v4933
  %v4986 = vpack.c.b16 %v4938, %v4934
  %v4987 = vpack.c.b16 %v4939, %v4935
  %v4988 = vpack.c.b16 %v4940, %v4936
  %v4989 = vpack.c.b16 %v4945, %v4941
  %v4990 = vpack.c.b16 %v4946, %v4942
  %v4991 = vpack.c.b16 %v4947, %v4943
  %v4992 = vpack.c.b16 %v4948, %v4944
  %v4993 = vpack.c.b16 %v4953, %v4949
  %v4994 = vpack.c.b16 %v4954, %v4950
  %v4995 = vpack.c.b16 %v4955, %v4951
  %v4996 = vpack.c.b16 %v4956, %v4952
  %v4997 = vpack.c.b16 %v4961, %v4957
  %v4998 = vpack.c.b16 %v4962, %v4958
  %v4999 = vpack.c.b16 %v4963, %v4959
  %v5000 = vpack.c.b16 %v4964, %v4960
  %v5001 = vpack.c.b16 %v4969, %v4965
  %v5002 = vpack.c.b16 %v4970, %v4966
  %v5003 = vpack.c.b16 %v4971, %v4967
  %v5004 = vpack.c.b16 %v4972, %v4968
  %5037 = vmatpush.bf16.msra.mxu0 %v5001
  %5038 = vmatpush.bf16.msra.mxu0 %v4997
  %5039 = vmatpush.bf16.msra.mxu0 %v4993
  %5040 = vmatpush.bf16.msra.mxu0 %v4989
  %5041 = vmatpush.bf16.msra.mxu0 %v4985
  %5042 = vmatpush.bf16.msra.mxu0 %v4981
  %5043 = vmatpush.bf16.msra.mxu0 %v4977
  %5044 = vmatpush.bf16.msra.mxu0 %v4973
  %5045 = vmatmul.bf16.gmra.mxu0 %v4844
  %v5046 = vpop.f32.mrf.mxu0
  %v5047 = vadd.f32 0.0, %v5046
  %v5048 = vpop.f32.mrf.mxu0
  %5049 = vdwg.mxu0
  %5050 = vmatpush.bf16.msra.mxu0 %v5002
  %5051 = vmatpush.bf16.msra.mxu0 %v4998
  %5052 = vmatpush.bf16.msra.mxu0 %v4994
  %5053 = vmatpush.bf16.msra.mxu0 %v4990
  %5054 = vmatpush.bf16.msra.mxu0 %v4986
  %5055 = vmatpush.bf16.msra.mxu0 %v4982
  %5056 = vmatpush.bf16.msra.mxu0 %v4978
  %5057 = vmatpush.bf16.msra.mxu0 %v4974
  %5058 = vmatmul.bf16.gmra.mxu0 %v4844
  %v5059 = vpop.f32.mrf.mxu0
  %v5060 = vadd.f32 0.0, %v5059
  %v5061 = vpop.f32.mrf.mxu0
  %5062 = vdwg.mxu0
  %5063 = vmatpush.bf16.msra.mxu0 %v5003
  %5064 = vmatpush.bf16.msra.mxu0 %v4999
  %5065 = vmatpush.bf16.msra.mxu0 %v4995
  %5066 = vmatpush.bf16.msra.mxu0 %v4991
  %5067 = vmatpush.bf16.msra.mxu0 %v4987
  %5068 = vmatpush.bf16.msra.mxu0 %v4983
  %5069 = vmatpush.bf16.msra.mxu0 %v4979
  %5070 = vmatpush.bf16.msra.mxu0 %v4975
  %5071 = vmatmul.bf16.gmra.mxu0 %v4844
  %v5072 = vpop.f32.mrf.mxu0
  %v5073 = vadd.f32 0.0, %v5072
  %v5074 = vpop.f32.mrf.mxu0
  %5075 = vdwg.mxu0
  %5076 = vmatpush.bf16.msra.mxu0 %v5004
  %5077 = vmatpush.bf16.msra.mxu0 %v5000
  %5078 = vmatpush.bf16.msra.mxu0 %v4996
  %5079 = vmatpush.bf16.msra.mxu0 %v4992
  %5080 = vmatpush.bf16.msra.mxu0 %v4988
  %5081 = vmatpush.bf16.msra.mxu0 %v4984
  %5082 = vmatpush.bf16.msra.mxu0 %v4980
  %5083 = vmatpush.bf16.msra.mxu0 %v4976
  %5084 = vmatmul.bf16.gmra.mxu0 %v4844
  %v5085 = vpop.f32.mrf.mxu0
  %v5086 = vadd.f32 0.0, %v5085
  %v5087 = vpop.f32.mrf.mxu0
  %5088 = vdwg.mxu0
  %v5089 = vadd.f32 %v4840, %v5047
  %v5090 = vadd.f32 %v4841, %v5060
  %v5091 = vadd.f32 %v4842, %v5073
  %v5092 = vadd.f32 %v4843, %v5086
  %v5093 = vxor.u32 %v4836, 2147483648
  %v5094 = vxor.u32 %v4837, 2147483648
  %v5095 = vxor.u32 %v4838, 2147483648
  %v5096 = vmul.f32 %v5093, 1.442695
  %v5097 = vpow.pop %v5096
  %v5098 = vmul.f32 %v5094, 1.442695
  %v5099 = vpow.pop %v5098
  %v5100 = vmul.f32 %v5095, 1.442695
  %v5101 = vpow.pop %v5100
  %v5102 = vadd.f32 %v5097, 1.0
  %v5103 = vadd.f32 %v5099, 1.0
  %v5104 = vadd.f32 %v5101, 1.0
  %v5105 = vrcp.pop %v5102
  %v5106 = vmul.f32 %v5102, %v5105
  %v5107 = vsub.f32 1.0, %v5106
  %v5108 = vmul.f32 %v5105, %v5107
  %v5109 = vadd.f32 %v5105, %v5108
  %vm5110 = vweird.f32 %v5102
  %vm5111 = vweird.f32 %v5105
  %vm5112 = vmor %vm5110, %vm5111
  %v5113 = vsel %vm5112, %v5105, %v5109
  %v5114 = vand.u32 2147483647, %v5102
  %vm5115 = vcmp.eq.f32.partialorder %v5114, 8.507059e+37
  %v5116 = vand.u32 %v5102, 2147483648
  %v5117 = vor.u32 1.1754944e-38, %v5116
  %v5118 = vsel %vm5115, %v5117, %v5113
  %v5119 = vmul.f32 1.0, %v5118
  %v5120 = vrcp.pop %v5103
  %v5121 = vmul.f32 %v5103, %v5120
  %v5122 = vsub.f32 1.0, %v5121
  %v5123 = vmul.f32 %v5120, %v5122
  %v5124 = vadd.f32 %v5120, %v5123
  %vm5125 = vweird.f32 %v5103
  %vm5126 = vweird.f32 %v5120
  %vm5127 = vmor %vm5125, %vm5126
  %v5128 = vsel %vm5127, %v5120, %v5124
  %v5129 = vand.u32 2147483647, %v5103
  %vm5130 = vcmp.eq.f32.partialorder %v5129, 8.507059e+37
  %v5131 = vand.u32 %v5103, 2147483648
  %v5132 = vor.u32 1.1754944e-38, %v5131
  %v5133 = vsel %vm5130, %v5132, %v5128
  %v5134 = vmul.f32 1.0, %v5133
  %v5135 = vrcp.pop %v5104
  %v5136 = vmul.f32 %v5104, %v5135
  %v5137 = vsub.f32 1.0, %v5136
  %v5138 = vmul.f32 %v5135, %v5137
  %v5139 = vadd.f32 %v5135, %v5138
  %vm5140 = vweird.f32 %v5104
  %vm5141 = vweird.f32 %v5135
  %vm5142 = vmor %vm5140, %vm5141
  %v5143 = vsel %vm5142, %v5135, %v5139
  %v5144 = vand.u32 2147483647, %v5104
  %vm5145 = vcmp.eq.f32.partialorder %v5144, 8.507059e+37
  %v5146 = vand.u32 %v5104, 2147483648
  %v5147 = vor.u32 1.1754944e-38, %v5146
  %v5148 = vsel %vm5145, %v5147, %v5143
  %v5149 = vmul.f32 1.0, %v5148
  %v5150 = vtanh.pop %v4839
  %v5151 = vmul.f32 %v5134, %v4519
  %v5152 = vmul.f32 %v5119, %v5150
  %v5153 = vadd.f32 %v5151, %v5152
  %v5154 = vtanh.pop %v5153
  %v5155 = vmul.f32 %v5149, %v5154
  %v5156 = vxor.u32 %v5089, 2147483648
  %v5157 = vxor.u32 %v5090, 2147483648
  %v5158 = vxor.u32 %v5091, 2147483648
  %v5159 = vmul.f32 %v5156, 1.442695
  %v5160 = vpow.pop %v5159
  %v5161 = vmul.f32 %v5157, 1.442695
  %v5162 = vpow.pop %v5161
  %v5163 = vmul.f32 %v5158, 1.442695
  %v5164 = vpow.pop %v5163
  %v5165 = vadd.f32 %v5160, 1.0
  %v5166 = vadd.f32 %v5162, 1.0
  %v5167 = vadd.f32 %v5164, 1.0
  %v5168 = vrcp.pop %v5165
  %v5169 = vmul.f32 %v5165, %v5168
  %v5170 = vsub.f32 1.0, %v5169
  %v5171 = vmul.f32 %v5168, %v5170
  %v5172 = vadd.f32 %v5168, %v5171
  %vm5173 = vweird.f32 %v5165
  %vm5174 = vweird.f32 %v5168
  %vm5175 = vmor %vm5173, %vm5174
  %v5176 = vsel %vm5175, %v5168, %v5172
  %v5177 = vand.u32 2147483647, %v5165
  %vm5178 = vcmp.eq.f32.partialorder %v5177, 8.507059e+37
  %v5179 = vand.u32 %v5165, 2147483648
  %v5180 = vor.u32 1.1754944e-38, %v5179
  %v5181 = vsel %vm5178, %v5180, %v5176
  %v5182 = vmul.f32 1.0, %v5181
  %v5183 = vrcp.pop %v5166
  %v5184 = vmul.f32 %v5166, %v5183
  %v5185 = vsub.f32 1.0, %v5184
  %v5186 = vmul.f32 %v5183, %v5185
  %v5187 = vadd.f32 %v5183, %v5186
  %vm5188 = vweird.f32 %v5166
  %vm5189 = vweird.f32 %v5183
  %vm5190 = vmor %vm5188, %vm5189
  %v5191 = vsel %vm5190, %v5183, %v5187
  %v5192 = vand.u32 2147483647, %v5166
  %vm5193 = vcmp.eq.f32.partialorder %v5192, 8.507059e+37
  %v5194 = vand.u32 %v5166, 2147483648
  %v5195 = vor.u32 1.1754944e-38, %v5194
  %v5196 = vsel %vm5193, %v5195, %v5191
  %v5197 = vmul.f32 1.0, %v5196
  %v5198 = vrcp.pop %v5167
  %v5199 = vmul.f32 %v5167, %v5198
  %v5200 = vsub.f32 1.0, %v5199
  %v5201 = vmul.f32 %v5198, %v5200
  %v5202 = vadd.f32 %v5198, %v5201
  %vm5203 = vweird.f32 %v5167
  %vm5204 = vweird.f32 %v5198
  %vm5205 = vmor %vm5203, %vm5204
  %v5206 = vsel %vm5205, %v5198, %v5202
  %v5207 = vand.u32 2147483647, %v5167
  %vm5208 = vcmp.eq.f32.partialorder %v5207, 8.507059e+37
  %v5209 = vand.u32 %v5167, 2147483648
  %v5210 = vor.u32 1.1754944e-38, %v5209
  %v5211 = vsel %vm5208, %v5210, %v5206
  %v5212 = vmul.f32 1.0, %v5211
  %v5213 = vtanh.pop %v5092
  %v5214 = vmul.f32 %v5197, %v4582
  %v5215 = vmul.f32 %v5182, %v5213
  %v5216 = vadd.f32 %v5214, %v5215
  %v5217 = vtanh.pop %v5216
  %v5218 = vmul.f32 %v5212, %v5217
  %5219 = vst [vmem:[%s2033] sm:$0xff] %v5155
  %5220 = vst [vmem:[%s2031 + $0x8] sm:$0xff] %v5218
  %v5221 = vld [vmem:[%s1011] sm:$0xff]
  %v5222 = vld [vmem:[%s1011 + $0x8] sm:$0xff]
  %v5223 = vld [vmem:[%s1011 + $0x10] sm:$0xff]
  %v5224 = vld [vmem:[%s1011 + $0x18] sm:$0xff]
  %v5225 = vpack.c.bf16 %v5155, %v5155
  %v5226 = vld [vmem:[%s3] sm:$0xff]
  %v5227 = vld [vmem:[%s3 + $0x8] sm:$0xff]
  %v5228 = vld [vmem:[%s3 + $0x10] sm:$0xff]
  %v5229 = vld [vmem:[%s3 + $0x18] sm:$0xff]
  %v5230 = vld [vmem:[%s3 + $0x20] sm:$0xff]
  %v5231 = vld [vmem:[%s3 + $0x28] sm:$0xff]
  %v5232 = vld [vmem:[%s3 + $0x30] sm:$0xff]
  %v5233 = vld [vmem:[%s3 + $0x38] sm:$0xff]
  %v5234 = vld [vmem:[%s3 + $0x40] sm:$0xff]
  %v5235 = vld [vmem:[%s3 + $0x48] sm:$0xff]
  %v5236 = vld [vmem:[%s3 + $0x50] sm:$0xff]
  %v5237 = vld [vmem:[%s3 + $0x58] sm:$0xff]
  %v5238 = vld [vmem:[%s3 + $0x60] sm:$0xff]
  %v5239 = vld [vmem:[%s3 + $0x68] sm:$0xff]
  %v5240 = vld [vmem:[%s3 + $0x70] sm:$0xff]
  %v5241 = vld [vmem:[%s3 + $0x78] sm:$0xff]
  %v5242 = vld [vmem:[%s3 + $0x80] sm:$0xff]
  %v5243 = vld [vmem:[%s3 + $0x88] sm:$0xff]
  %v5244 = vld [vmem:[%s3 + $0x90] sm:$0xff]
  %v5245 = vld [vmem:[%s3 + $0x98] sm:$0xff]
  %v5246 = vld [vmem:[%s3 + $0xa0] sm:$0xff]
  %v5247 = vld [vmem:[%s3 + $0xa8] sm:$0xff]
  %v5248 = vld [vmem:[%s3 + $0xb0] sm:$0xff]
  %v5249 = vld [vmem:[%s3 + $0xb8] sm:$0xff]
  %v5250 = vld [vmem:[%s3 + $0xc0] sm:$0xff]
  %v5251 = vld [vmem:[%s3 + $0xc8] sm:$0xff]
  %v5252 = vld [vmem:[%s3 + $0xd0] sm:$0xff]
  %v5253 = vld [vmem:[%s3 + $0xd8] sm:$0xff]
  %v5254 = vld [vmem:[%s3 + $0xe0] sm:$0xff]
  %v5255 = vld [vmem:[%s3 + $0xe8] sm:$0xff]
  %v5256 = vld [vmem:[%s3 + $0xf0] sm:$0xff]
  %v5257 = vld [vmem:[%s3 + $0xf8] sm:$0xff]
  %v5290 = vunpack.c.l.b16 %v5226
  %v5291 = vunpack.c.h.b16 %v5226
  %v5292 = vunpack.c.l.b16 %v5227
  %v5293 = vunpack.c.h.b16 %v5227
  %v5294 = vunpack.c.l.b16 %v5228
  %v5295 = vunpack.c.h.b16 %v5228
  %v5296 = vunpack.c.l.b16 %v5229
  %v5297 = vunpack.c.h.b16 %v5229
  %v5298 = vunpack.c.l.b16 %v5230
  %v5299 = vunpack.c.h.b16 %v5230
  %v5300 = vunpack.c.l.b16 %v5231
  %v5301 = vunpack.c.h.b16 %v5231
  %v5302 = vunpack.c.l.b16 %v5232
  %v5303 = vunpack.c.h.b16 %v5232
  %v5304 = vunpack.c.l.b16 %v5233
  %v5305 = vunpack.c.h.b16 %v5233
  %v5306 = vunpack.c.l.b16 %v5234
  %v5307 = vunpack.c.h.b16 %v5234
  %v5308 = vunpack.c.l.b16 %v5235
  %v5309 = vunpack.c.h.b16 %v5235
  %v5310 = vunpack.c.l.b16 %v5236
  %v5311 = vunpack.c.h.b16 %v5236
  %v5312 = vunpack.c.l.b16 %v5237
  %v5313 = vunpack.c.h.b16 %v5237
  %v5314 = vunpack.c.l.b16 %v5238
  %v5315 = vunpack.c.h.b16 %v5238
  %v5316 = vunpack.c.l.b16 %v5239
  %v5317 = vunpack.c.h.b16 %v5239
  %v5318 = vunpack.c.l.b16 %v5240
  %v5319 = vunpack.c.h.b16 %v5240
  %v5320 = vunpack.c.l.b16 %v5241
  %v5321 = vunpack.c.h.b16 %v5241
  %v5322 = vunpack.c.l.b16 %v5242
  %v5323 = vunpack.c.h.b16 %v5242
  %v5324 = vunpack.c.l.b16 %v5243
  %v5325 = vunpack.c.h.b16 %v5243
  %v5326 = vunpack.c.l.b16 %v5244
  %v5327 = vunpack.c.h.b16 %v5244
  %v5328 = vunpack.c.l.b16 %v5245
  %v5329 = vunpack.c.h.b16 %v5245
  %v5330 = vunpack.c.l.b16 %v5246
  %v5331 = vunpack.c.h.b16 %v5246
  %v5332 = vunpack.c.l.b16 %v5247
  %v5333 = vunpack.c.h.b16 %v5247
  %v5334 = vunpack.c.l.b16 %v5248
  %v5335 = vunpack.c.h.b16 %v5248
  %v5336 = vunpack.c.l.b16 %v5249
  %v5337 = vunpack.c.h.b16 %v5249
  %v5338 = vunpack.c.l.b16 %v5250
  %v5339 = vunpack.c.h.b16 %v5250
  %v5340 = vunpack.c.l.b16 %v5251
  %v5341 = vunpack.c.h.b16 %v5251
  %v5342 = vunpack.c.l.b16 %v5252
  %v5343 = vunpack.c.h.b16 %v5252
  %v5344 = vunpack.c.l.b16 %v5253
  %v5345 = vunpack.c.h.b16 %v5253
  %v5346 = vunpack.c.l.b16 %v5254
  %v5347 = vunpack.c.h.b16 %v5254
  %v5348 = vunpack.c.l.b16 %v5255
  %v5349 = vunpack.c.h.b16 %v5255
  %v5350 = vunpack.c.l.b16 %v5256
  %v5351 = vunpack.c.h.b16 %v5256
  %v5352 = vunpack.c.l.b16 %v5257
  %v5353 = vunpack.c.h.b16 %v5257
  %v5354 = vpack.c.b16 %v5294, %v5290
  %v5355 = vpack.c.b16 %v5295, %v5291
  %v5356 = vpack.c.b16 %v5296, %v5292
  %v5357 = vpack.c.b16 %v5297, %v5293
  %v5358 = vpack.c.b16 %v5302, %v5298
  %v5359 = vpack.c.b16 %v5303, %v5299
  %v5360 = vpack.c.b16 %v5304, %v5300
  %v5361 = vpack.c.b16 %v5305, %v5301
  %v5362 = vpack.c.b16 %v5310, %v5306
  %v5363 = vpack.c.b16 %v5311, %v5307
  %v5364 = vpack.c.b16 %v5312, %v5308
  %v5365 = vpack.c.b16 %v5313, %v5309
  %v5366 = vpack.c.b16 %v5318, %v5314
  %v5367 = vpack.c.b16 %v5319, %v5315
  %v5368 = vpack.c.b16 %v5320, %v5316
  %v5369 = vpack.c.b16 %v5321, %v5317
  %v5370 = vpack.c.b16 %v5326, %v5322
  %v5371 = vpack.c.b16 %v5327, %v5323
  %v5372 = vpack.c.b16 %v5328, %v5324
  %v5373 = vpack.c.b16 %v5329, %v5325
  %v5374 = vpack.c.b16 %v5334, %v5330
  %v5375 = vpack.c.b16 %v5335, %v5331
  %v5376 = vpack.c.b16 %v5336, %v5332
  %v5377 = vpack.c.b16 %v5337, %v5333
  %v5378 = vpack.c.b16 %v5342, %v5338
  %v5379 = vpack.c.b16 %v5343, %v5339
  %v5380 = vpack.c.b16 %v5344, %v5340
  %v5381 = vpack.c.b16 %v5345, %v5341
  %v5382 = vpack.c.b16 %v5350, %v5346
  %v5383 = vpack.c.b16 %v5351, %v5347
  %v5384 = vpack.c.b16 %v5352, %v5348
  %v5385 = vpack.c.b16 %v5353, %v5349
  %5418 = vmatpush.bf16.msra.mxu0 %v5382
  %5419 = vmatpush.bf16.msra.mxu0 %v5378
  %5420 = vmatpush.bf16.msra.mxu0 %v5374
  %5421 = vmatpush.bf16.msra.mxu0 %v5370
  %5422 = vmatpush.bf16.msra.mxu0 %v5366
  %5423 = vmatpush.bf16.msra.mxu0 %v5362
  %5424 = vmatpush.bf16.msra.mxu0 %v5358
  %5425 = vmatpush.bf16.msra.mxu0 %v5354
  %5426 = vmatmul.bf16.gmra.mxu0 %v5225
  %v5427 = vpop.f32.mrf.mxu0
  %v5428 = vadd.f32 0.0, %v5427
  %v5429 = vpop.f32.mrf.mxu0
  %5430 = vdwg.mxu0
  %5431 = vmatpush.bf16.msra.mxu0 %v5383
  %5432 = vmatpush.bf16.msra.mxu0 %v5379
  %5433 = vmatpush.bf16.msra.mxu0 %v5375
  %5434 = vmatpush.bf16.msra.mxu0 %v5371
  %5435 = vmatpush.bf16.msra.mxu0 %v5367
  %5436 = vmatpush.bf16.msra.mxu0 %v5363
  %5437 = vmatpush.bf16.msra.mxu0 %v5359
  %5438 = vmatpush.bf16.msra.mxu0 %v5355
  %5439 = vmatmul.bf16.gmra.mxu0 %v5225
  %v5440 = vpop.f32.mrf.mxu0
  %v5441 = vadd.f32 0.0, %v5440
  %v5442 = vpop.f32.mrf.mxu0
  %5443 = vdwg.mxu0
  %5444 = vmatpush.bf16.msra.mxu0 %v5384
  %5445 = vmatpush.bf16.msra.mxu0 %v5380
  %5446 = vmatpush.bf16.msra.mxu0 %v5376
  %5447 = vmatpush.bf16.msra.mxu0 %v5372
  %5448 = vmatpush.bf16.msra.mxu0 %v5368
  %5449 = vmatpush.bf16.msra.mxu0 %v5364
  %5450 = vmatpush.bf16.msra.mxu0 %v5360
  %5451 = vmatpush.bf16.msra.mxu0 %v5356
  %5452 = vmatmul.bf16.gmra.mxu0 %v5225
  %v5453 = vpop.f32.mrf.mxu0
  %v5454 = vadd.f32 0.0, %v5453
  %v5455 = vpop.f32.mrf.mxu0
  %5456 = vdwg.mxu0
  %5457 = vmatpush.bf16.msra.mxu0 %v5385
  %5458 = vmatpush.bf16.msra.mxu0 %v5381
  %5459 = vmatpush.bf16.msra.mxu0 %v5377
  %5460 = vmatpush.bf16.msra.mxu0 %v5373
  %5461 = vmatpush.bf16.msra.mxu0 %v5369
  %5462 = vmatpush.bf16.msra.mxu0 %v5365
  %5463 = vmatpush.bf16.msra.mxu0 %v5361
  %5464 = vmatpush.bf16.msra.mxu0 %v5357
  %5465 = vmatmul.bf16.gmra.mxu0 %v5225
  %v5466 = vpop.f32.mrf.mxu0
  %v5467 = vadd.f32 0.0, %v5466
  %v5468 = vpop.f32.mrf.mxu0
  %5469 = vdwg.mxu0
  %v5470 = vadd.f32 %v5221, %v5428
  %v5471 = vadd.f32 %v5222, %v5441
  %v5472 = vadd.f32 %v5223, %v5454
  %v5473 = vadd.f32 %v5224, %v5467
  %v5474 = vld [vmem:[%s756 + $0x20] sm:$0xff]
  %v5475 = vld [vmem:[%s756 + $0x28] sm:$0xff]
  %v5476 = vld [vmem:[%s756 + $0x30] sm:$0xff]
  %v5477 = vld [vmem:[%s756 + $0x38] sm:$0xff]
  %v5478 = vpack.c.bf16 %v5218, %v5218
  %v5479 = vld [vmem:[%s4] sm:$0xff]
  %v5480 = vld [vmem:[%s4 + $0x8] sm:$0xff]
  %v5481 = vld [vmem:[%s4 + $0x10] sm:$0xff]
  %v5482 = vld [vmem:[%s4 + $0x18] sm:$0xff]
  %v5483 = vld [vmem:[%s4 + $0x20] sm:$0xff]
  %v5484 = vld [vmem:[%s4 + $0x28] sm:$0xff]
  %v5485 = vld [vmem:[%s4 + $0x30] sm:$0xff]
  %v5486 = vld [vmem:[%s4 + $0x38] sm:$0xff]
  %v5487 = vld [vmem:[%s4 + $0x40] sm:$0xff]
  %v5488 = vld [vmem:[%s4 + $0x48] sm:$0xff]
  %v5489 = vld [vmem:[%s4 + $0x50] sm:$0xff]
  %v5490 = vld [vmem:[%s4 + $0x58] sm:$0xff]
  %v5491 = vld [vmem:[%s4 + $0x60] sm:$0xff]
  %v5492 = vld [vmem:[%s4 + $0x68] sm:$0xff]
  %v5493 = vld [vmem:[%s4 + $0x70] sm:$0xff]
  %v5494 = vld [vmem:[%s4 + $0x78] sm:$0xff]
  %v5495 = vld [vmem:[%s4 + $0x80] sm:$0xff]
  %v5496 = vld [vmem:[%s4 + $0x88] sm:$0xff]
  %v5497 = vld [vmem:[%s4 + $0x90] sm:$0xff]
  %v5498 = vld [vmem:[%s4 + $0x98] sm:$0xff]
  %v5499 = vld [vmem:[%s4 + $0xa0] sm:$0xff]
  %v5500 = vld [vmem:[%s4 + $0xa8] sm:$0xff]
  %v5501 = vld [vmem:[%s4 + $0xb0] sm:$0xff]
  %v5502 = vld [vmem:[%s4 + $0xb8] sm:$0xff]
  %v5503 = vld [vmem:[%s4 + $0xc0] sm:$0xff]
  %v5504 = vld [vmem:[%s4 + $0xc8] sm:$0xff]
  %v5505 = vld [vmem:[%s4 + $0xd0] sm:$0xff]
  %v5506 = vld [vmem:[%s4 + $0xd8] sm:$0xff]
  %v5507 = vld [vmem:[%s4 + $0xe0] sm:$0xff]
  %v5508 = vld [vmem:[%s4 + $0xe8] sm:$0xff]
  %v5509 = vld [vmem:[%s4 + $0xf0] sm:$0xff]
  %v5510 = vld [vmem:[%s4 + $0xf8] sm:$0xff]
  %v5543 = vunpack.c.l.b16 %v5479
  %v5544 = vunpack.c.h.b16 %v5479
  %v5545 = vunpack.c.l.b16 %v5480
  %v5546 = vunpack.c.h.b16 %v5480
  %v5547 = vunpack.c.l.b16 %v5481
  %v5548 = vunpack.c.h.b16 %v5481
  %v5549 = vunpack.c.l.b16 %v5482
  %v5550 = vunpack.c.h.b16 %v5482
  %v5551 = vunpack.c.l.b16 %v5483
  %v5552 = vunpack.c.h.b16 %v5483
  %v5553 = vunpack.c.l.b16 %v5484
  %v5554 = vunpack.c.h.b16 %v5484
  %v5555 = vunpack.c.l.b16 %v5485
  %v5556 = vunpack.c.h.b16 %v5485
  %v5557 = vunpack.c.l.b16 %v5486
  %v5558 = vunpack.c.h.b16 %v5486
  %v5559 = vunpack.c.l.b16 %v5487
  %v5560 = vunpack.c.h.b16 %v5487
  %v5561 = vunpack.c.l.b16 %v5488
  %v5562 = vunpack.c.h.b16 %v5488
  %v5563 = vunpack.c.l.b16 %v5489
  %v5564 = vunpack.c.h.b16 %v5489
  %v5565 = vunpack.c.l.b16 %v5490
  %v5566 = vunpack.c.h.b16 %v5490
  %v5567 = vunpack.c.l.b16 %v5491
  %v5568 = vunpack.c.h.b16 %v5491
  %v5569 = vunpack.c.l.b16 %v5492
  %v5570 = vunpack.c.h.b16 %v5492
  %v5571 = vunpack.c.l.b16 %v5493
  %v5572 = vunpack.c.h.b16 %v5493
  %v5573 = vunpack.c.l.b16 %v5494
  %v5574 = vunpack.c.h.b16 %v5494
  %v5575 = vunpack.c.l.b16 %v5495
  %v5576 = vunpack.c.h.b16 %v5495
  %v5577 = vunpack.c.l.b16 %v5496
  %v5578 = vunpack.c.h.b16 %v5496
  %v5579 = vunpack.c.l.b16 %v5497
  %v5580 = vunpack.c.h.b16 %v5497
  %v5581 = vunpack.c.l.b16 %v5498
  %v5582 = vunpack.c.h.b16 %v5498
  %v5583 = vunpack.c.l.b16 %v5499
  %v5584 = vunpack.c.h.b16 %v5499
  %v5585 = vunpack.c.l.b16 %v5500
  %v5586 = vunpack.c.h.b16 %v5500
  %v5587 = vunpack.c.l.b16 %v5501
  %v5588 = vunpack.c.h.b16 %v5501
  %v5589 = vunpack.c.l.b16 %v5502
  %v5590 = vunpack.c.h.b16 %v5502
  %v5591 = vunpack.c.l.b16 %v5503
  %v5592 = vunpack.c.h.b16 %v5503
  %v5593 = vunpack.c.l.b16 %v5504
  %v5594 = vunpack.c.h.b16 %v5504
  %v5595 = vunpack.c.l.b16 %v5505
  %v5596 = vunpack.c.h.b16 %v5505
  %v5597 = vunpack.c.l.b16 %v5506
  %v5598 = vunpack.c.h.b16 %v5506
  %v5599 = vunpack.c.l.b16 %v5507
  %v5600 = vunpack.c.h.b16 %v5507
  %v5601 = vunpack.c.l.b16 %v5508
  %v5602 = vunpack.c.h.b16 %v5508
  %v5603 = vunpack.c.l.b16 %v5509
  %v5604 = vunpack.c.h.b16 %v5509
  %v5605 = vunpack.c.l.b16 %v5510
  %v5606 = vunpack.c.h.b16 %v5510
  %v5607 = vpack.c.b16 %v5547, %v5543
  %v5608 = vpack.c.b16 %v5548, %v5544
  %v5609 = vpack.c.b16 %v5549, %v5545
  %v5610 = vpack.c.b16 %v5550, %v5546
  %v5611 = vpack.c.b16 %v5555, %v5551
  %v5612 = vpack.c.b16 %v5556, %v5552
  %v5613 = vpack.c.b16 %v5557, %v5553
  %v5614 = vpack.c.b16 %v5558, %v5554
  %v5615 = vpack.c.b16 %v5563, %v5559
  %v5616 = vpack.c.b16 %v5564, %v5560
  %v5617 = vpack.c.b16 %v5565, %v5561
  %v5618 = vpack.c.b16 %v5566, %v5562
  %v5619 = vpack.c.b16 %v5571, %v5567
  %v5620 = vpack.c.b16 %v5572, %v5568
  %v5621 = vpack.c.b16 %v5573, %v5569
  %v5622 = vpack.c.b16 %v5574, %v5570
  %v5623 = vpack.c.b16 %v5579, %v5575
  %v5624 = vpack.c.b16 %v5580, %v5576
  %v5625 = vpack.c.b16 %v5581, %v5577
  %v5626 = vpack.c.b16 %v5582, %v5578
  %v5627 = vpack.c.b16 %v5587, %v5583
  %v5628 = vpack.c.b16 %v5588, %v5584
  %v5629 = vpack.c.b16 %v5589, %v5585
  %v5630 = vpack.c.b16 %v5590, %v5586
  %v5631 = vpack.c.b16 %v5595, %v5591
  %v5632 = vpack.c.b16 %v5596, %v5592
  %v5633 = vpack.c.b16 %v5597, %v5593
  %v5634 = vpack.c.b16 %v5598, %v5594
  %v5635 = vpack.c.b16 %v5603, %v5599
  %v5636 = vpack.c.b16 %v5604, %v5600
  %v5637 = vpack.c.b16 %v5605, %v5601
  %v5638 = vpack.c.b16 %v5606, %v5602
  %5671 = vmatpush.bf16.msra.mxu0 %v5635
  %5672 = vmatpush.bf16.msra.mxu0 %v5631
  %5673 = vmatpush.bf16.msra.mxu0 %v5627
  %5674 = vmatpush.bf16.msra.mxu0 %v5623
  %5675 = vmatpush.bf16.msra.mxu0 %v5619
  %5676 = vmatpush.bf16.msra.mxu0 %v5615
  %5677 = vmatpush.bf16.msra.mxu0 %v5611
  %5678 = vmatpush.bf16.msra.mxu0 %v5607
  %5679 = vmatmul.bf16.gmra.mxu0 %v5478
  %v5680 = vpop.f32.mrf.mxu0
  %v5681 = vadd.f32 0.0, %v5680
  %v5682 = vpop.f32.mrf.mxu0
  %5683 = vdwg.mxu0
  %5684 = vmatpush.bf16.msra.mxu0 %v5636
  %5685 = vmatpush.bf16.msra.mxu0 %v5632
  %5686 = vmatpush.bf16.msra.mxu0 %v5628
  %5687 = vmatpush.bf16.msra.mxu0 %v5624
  %5688 = vmatpush.bf16.msra.mxu0 %v5620
  %5689 = vmatpush.bf16.msra.mxu0 %v5616
  %5690 = vmatpush.bf16.msra.mxu0 %v5612
  %5691 = vmatpush.bf16.msra.mxu0 %v5608
  %5692 = vmatmul.bf16.gmra.mxu0 %v5478
  %v5693 = vpop.f32.mrf.mxu0
  %v5694 = vadd.f32 0.0, %v5693
  %v5695 = vpop.f32.mrf.mxu0
  %5696 = vdwg.mxu0
  %5697 = vmatpush.bf16.msra.mxu0 %v5637
  %5698 = vmatpush.bf16.msra.mxu0 %v5633
  %5699 = vmatpush.bf16.msra.mxu0 %v5629
  %5700 = vmatpush.bf16.msra.mxu0 %v5625
  %5701 = vmatpush.bf16.msra.mxu0 %v5621
  %5702 = vmatpush.bf16.msra.mxu0 %v5617
  %5703 = vmatpush.bf16.msra.mxu0 %v5613
  %5704 = vmatpush.bf16.msra.mxu0 %v5609
  %5705 = vmatmul.bf16.gmra.mxu0 %v5478
  %v5706 = vpop.f32.mrf.mxu0
  %v5707 = vadd.f32 0.0, %v5706
  %v5708 = vpop.f32.mrf.mxu0
  %5709 = vdwg.mxu0
  %5710 = vmatpush.bf16.msra.mxu0 %v5638
  %5711 = vmatpush.bf16.msra.mxu0 %v5634
  %5712 = vmatpush.bf16.msra.mxu0 %v5630
  %5713 = vmatpush.bf16.msra.mxu0 %v5626
  %5714 = vmatpush.bf16.msra.mxu0 %v5622
  %5715 = vmatpush.bf16.msra.mxu0 %v5618
  %5716 = vmatpush.bf16.msra.mxu0 %v5614
  %5717 = vmatpush.bf16.msra.mxu0 %v5610
  %5718 = vmatmul.bf16.gmra.mxu0 %v5478
  %v5719 = vpop.f32.mrf.mxu0
  %v5720 = vadd.f32 0.0, %v5719
  %v5721 = vpop.f32.mrf.mxu0
  %5722 = vdwg.mxu0
  %v5723 = vadd.f32 %v5474, %v5681
  %v5724 = vadd.f32 %v5475, %v5694
  %v5725 = vadd.f32 %v5476, %v5707
  %v5726 = vadd.f32 %v5477, %v5720
  %v5727 = vxor.u32 %v5470, 2147483648
  %v5728 = vxor.u32 %v5471, 2147483648
  %v5729 = vxor.u32 %v5472, 2147483648
  %v5730 = vmul.f32 %v5727, 1.442695
  %v5731 = vpow.pop %v5730
  %v5732 = vmul.f32 %v5728, 1.442695
  %v5733 = vpow.pop %v5732
  %v5734 = vmul.f32 %v5729, 1.442695
  %v5735 = vpow.pop %v5734
  %v5736 = vadd.f32 %v5731, 1.0
  %v5737 = vadd.f32 %v5733, 1.0
  %v5738 = vadd.f32 %v5735, 1.0
  %v5739 = vrcp.pop %v5736
  %v5740 = vmul.f32 %v5736, %v5739
  %v5741 = vsub.f32 1.0, %v5740
  %v5742 = vmul.f32 %v5739, %v5741
  %v5743 = vadd.f32 %v5739, %v5742
  %vm5744 = vweird.f32 %v5736
  %vm5745 = vweird.f32 %v5739
  %vm5746 = vmor %vm5744, %vm5745
  %v5747 = vsel %vm5746, %v5739, %v5743
  %v5748 = vand.u32 2147483647, %v5736
  %vm5749 = vcmp.eq.f32.partialorder %v5748, 8.507059e+37
  %v5750 = vand.u32 %v5736, 2147483648
  %v5751 = vor.u32 1.1754944e-38, %v5750
  %v5752 = vsel %vm5749, %v5751, %v5747
  %v5753 = vmul.f32 1.0, %v5752
  %v5754 = vrcp.pop %v5737
  %v5755 = vmul.f32 %v5737, %v5754
  %v5756 = vsub.f32 1.0, %v5755
  %v5757 = vmul.f32 %v5754, %v5756
  %v5758 = vadd.f32 %v5754, %v5757
  %vm5759 = vweird.f32 %v5737
  %vm5760 = vweird.f32 %v5754
  %vm5761 = vmor %vm5759, %vm5760
  %v5762 = vsel %vm5761, %v5754, %v5758
  %v5763 = vand.u32 2147483647, %v5737
  %vm5764 = vcmp.eq.f32.partialorder %v5763, 8.507059e+37
  %v5765 = vand.u32 %v5737, 2147483648
  %v5766 = vor.u32 1.1754944e-38, %v5765
  %v5767 = vsel %vm5764, %v5766, %v5762
  %v5768 = vmul.f32 1.0, %v5767
  %v5769 = vrcp.pop %v5738
  %v5770 = vmul.f32 %v5738, %v5769
  %v5771 = vsub.f32 1.0, %v5770
  %v5772 = vmul.f32 %v5769, %v5771
  %v5773 = vadd.f32 %v5769, %v5772
  %vm5774 = vweird.f32 %v5738
  %vm5775 = vweird.f32 %v5769
  %vm5776 = vmor %vm5774, %vm5775
  %v5777 = vsel %vm5776, %v5769, %v5773
  %v5778 = vand.u32 2147483647, %v5738
  %vm5779 = vcmp.eq.f32.partialorder %v5778, 8.507059e+37
  %v5780 = vand.u32 %v5738, 2147483648
  %v5781 = vor.u32 1.1754944e-38, %v5780
  %v5782 = vsel %vm5779, %v5781, %v5777
  %v5783 = vmul.f32 1.0, %v5782
  %v5784 = vtanh.pop %v5473
  %v5785 = vmul.f32 %v5768, %v5153
  %v5786 = vmul.f32 %v5753, %v5784
  %v5787 = vadd.f32 %v5785, %v5786
  %v5788 = vtanh.pop %v5787
  %v5789 = vmul.f32 %v5783, %v5788
  %v5790 = vxor.u32 %v5723, 2147483648
  %v5791 = vxor.u32 %v5724, 2147483648
  %v5792 = vxor.u32 %v5725, 2147483648
  %v5793 = vmul.f32 %v5790, 1.442695
  %v5794 = vpow.pop %v5793
  %v5795 = vmul.f32 %v5791, 1.442695
  %v5796 = vpow.pop %v5795
  %v5797 = vmul.f32 %v5792, 1.442695
  %v5798 = vpow.pop %v5797
  %v5799 = vadd.f32 %v5794, 1.0
  %v5800 = vadd.f32 %v5796, 1.0
  %v5801 = vadd.f32 %v5798, 1.0
  %v5802 = vrcp.pop %v5799
  %v5803 = vmul.f32 %v5799, %v5802
  %v5804 = vsub.f32 1.0, %v5803
  %v5805 = vmul.f32 %v5802, %v5804
  %v5806 = vadd.f32 %v5802, %v5805
  %vm5807 = vweird.f32 %v5799
  %vm5808 = vweird.f32 %v5802
  %vm5809 = vmor %vm5807, %vm5808
  %v5810 = vsel %vm5809, %v5802, %v5806
  %v5811 = vand.u32 2147483647, %v5799
  %vm5812 = vcmp.eq.f32.partialorder %v5811, 8.507059e+37
  %v5813 = vand.u32 %v5799, 2147483648
  %v5814 = vor.u32 1.1754944e-38, %v5813
  %v5815 = vsel %vm5812, %v5814, %v5810
  %v5816 = vmul.f32 1.0, %v5815
  %v5817 = vrcp.pop %v5800
  %v5818 = vmul.f32 %v5800, %v5817
  %v5819 = vsub.f32 1.0, %v5818
  %v5820 = vmul.f32 %v5817, %v5819
  %v5821 = vadd.f32 %v5817, %v5820
  %vm5822 = vweird.f32 %v5800
  %vm5823 = vweird.f32 %v5817
  %vm5824 = vmor %vm5822, %vm5823
  %v5825 = vsel %vm5824, %v5817, %v5821
  %v5826 = vand.u32 2147483647, %v5800
  %vm5827 = vcmp.eq.f32.partialorder %v5826, 8.507059e+37
  %v5828 = vand.u32 %v5800, 2147483648
  %v5829 = vor.u32 1.1754944e-38, %v5828
  %v5830 = vsel %vm5827, %v5829, %v5825
  %v5831 = vmul.f32 1.0, %v5830
  %v5832 = vrcp.pop %v5801
  %v5833 = vmul.f32 %v5801, %v5832
  %v5834 = vsub.f32 1.0, %v5833
  %v5835 = vmul.f32 %v5832, %v5834
  %v5836 = vadd.f32 %v5832, %v5835
  %vm5837 = vweird.f32 %v5801
  %vm5838 = vweird.f32 %v5832
  %vm5839 = vmor %vm5837, %vm5838
  %v5840 = vsel %vm5839, %v5832, %v5836
  %v5841 = vand.u32 2147483647, %v5801
  %vm5842 = vcmp.eq.f32.partialorder %v5841, 8.507059e+37
  %v5843 = vand.u32 %v5801, 2147483648
  %v5844 = vor.u32 1.1754944e-38, %v5843
  %v5845 = vsel %vm5842, %v5844, %v5840
  %v5846 = vmul.f32 1.0, %v5845
  %v5847 = vtanh.pop %v5726
  %v5848 = vmul.f32 %v5831, %v5216
  %v5849 = vmul.f32 %v5816, %v5847
  %v5850 = vadd.f32 %v5848, %v5849
  %v5851 = vtanh.pop %v5850
  %v5852 = vmul.f32 %v5846, %v5851
  %5853 = vst [vmem:[%s1391] sm:$0xff] %v5789
  %5854 = vst [vmem:[%s5 + $0x8] sm:$0xff] %v5852
  %5855 = vst [vmem:[%s6] sm:$0xff] %v5789
  %5856 = vst [vmem:[%s6 + $0x8] sm:$0xff] %v5852
  %5857 = vst [vmem:[%s7] sm:$0xff] %v5787
  %5858 = vst [vmem:[%s7 + $0x8] sm:$0xff] %v5850
  // Predicated region
  $region22: #{simple_lstm_encoder_forward.1} parent=0 // pred_check
    _
  $region23: #{simple_lstm_encoder_forward.1} parent=0 // pred_check_branch
    %5860 = sbr.rel (0) target = $region25
  $region24: #{simple_lstm_encoder_forward.1} parent=0 // pred_region
    _
  $region25: #{simple_lstm_encoder_forward.1} parent=0 // pred_fallthru
    _
  // Predicated region
  $region26: #{simple_lstm_encoder_forward.1} parent=0 // pred_check
    _
  $region27: #{simple_lstm_encoder_forward.1} parent=0 // pred_check_branch
    %5862 = sbr.rel (0) target = $region29
  $region28: #{simple_lstm_encoder_forward.1} parent=0 // pred_region
    _
  $region29: #{simple_lstm_encoder_forward.1} parent=0 // pred_fallthru
    _
  // Predicated region
  $region30: #{simple_lstm_encoder_forward.1} parent=0 // pred_check
    _
  $region31: #{simple_lstm_encoder_forward.1} parent=0 // pred_check_branch
    %5864 = sbr.rel (0) target = $region33
  $region32: #{simple_lstm_encoder_forward.1} parent=0 // pred_region
    _
  $region33: #{simple_lstm_encoder_forward.1} parent=0 // pred_fallthru
    _
  // Predicated region
  $region34: #{simple_lstm_encoder_forward.1} parent=0 // pred_check
    _
  $region35: #{simple_lstm_encoder_forward.1} parent=0 // pred_check_branch
    %5866 = sbr.rel (0) target = $region37
  $region36: #{simple_lstm_encoder_forward.1} parent=0 // pred_region
    _
  $region37: #{simple_lstm_encoder_forward.1} parent=0 // pred_fallthru
    _
  // Predicated region
  $region38: #{simple_lstm_encoder_forward.1} parent=0 // pred_check
    _
  $region39: #{simple_lstm_encoder_forward.1} parent=0 // pred_check_branch
    %5868 = sbr.rel (0) target = $region41
  $region40: #{simple_lstm_encoder_forward.1} parent=0 // pred_region
    _
  $region41: #{simple_lstm_encoder_forward.1} parent=0 // pred_fallthru
    _
  // Predicated region
  $region42: #{simple_lstm_encoder_forward.1} parent=0 // pred_check
    _
  $region43: #{simple_lstm_encoder_forward.1} parent=0 // pred_check_branch
    %5870 = sbr.rel (0) target = $region45
  $region44: #{simple_lstm_encoder_forward.1} parent=0 // pred_region
    _
  $region45: #{simple_lstm_encoder_forward.1} parent=0 // pred_fallthru
    _

</llo_original>
